<compile_context>
chip_gen: v5e
topology: v5e:2x2
jax: 0.10.0
libtpu: 0.0.40
codegen_flags: <defaults>
</compile_context>

<pallas_src>
import functools

import numpy as np
import jax
import jax.numpy as jnp
from jax import lax
from jax.experimental import pallas as pl
from jax.experimental.pallas import tpu as pltpu


_KS = (15, 9, 5, 5)                     # conv kernel widths (static architecture)
_SHRINK = sum(k - 1 for k in _KS)       # total length shrink = 30


def _round_up(x, m):
    return (x + m - 1) // m * m


def _prefers_deep_contraction():
    """v6e/v7x MXUs are 256-deep -> deep im2col contraction halves MXU pushes for the
    128-channel layers; v5 MXUs are 128-deep, so per-tap (Cin=128) already fills the
    contraction depth and the im2col copy is pure vld/vst overhead."""
    try:
        kind = jax.devices()[0].device_kind.lower()
        return "v5" not in kind
    except Exception:
        return True


_DEEP_MXU = _prefers_deep_contraction()


def similarity_kernel(ids_ref, table_ref,
                      w1, t1, w2, t2, w3, t3, w4, t4,
                      msel_ref, wf_ref, fcb_ref, out_ref, *, cins, deep_layers):
    ids = ids_ref[...]                   # (TBL, 1) int32: batch tile flattened at stride Lpad
    table = table_ref[...]               # (Vp, Ep) bf16 (padding rows/cols are zero)
    n0 = ids.shape[0]
    vp = table.shape[0]

    # Embedding lookup as one one-hot @ table MXU matmul (small vocab).
    # TODO(synk): for large vocabularies this should become a DMA gather from HBM.
    iota_v = lax.broadcasted_iota(jnp.int32, (n0, vp), 1)
    onehot = (ids == iota_v).astype(jnp.bfloat16)                            # (TBL, Vp)
    x = jnp.dot(onehot, table, preferred_element_type=jnp.float32)           # exact select
    x = x.astype(jnp.bfloat16)                                               # (TBL, Ep) bf16

    for idx, (w_ref, t_ref) in enumerate(((w1, t1), (w2, t2), (w3, t3), (w4, t4))):
        cin = cins[idx]
        k = w_ref.shape[0] // cin
        lout = x.shape[0] - k + 1
        if deep_layers[idx]:
            # im2col: K shifted windows side-by-side on the lane axis -> one deep matmul.
            cols = jnp.concatenate([x[i:i + lout, :] for i in range(k)], axis=-1)
            acc = jnp.dot(cols, w_ref[...], preferred_element_type=jnp.float32)
        else:
            # Per-tap accumulation: K (lout, Cin) @ (Cin, Cout) matmuls, f32 accumulate.
            acc = jnp.dot(x[0:lout, :], w_ref[pl.ds(0, cin), :],
                          preferred_element_type=jnp.float32)
            for i in range(1, k):
                acc = acc + jnp.dot(x[i:i + lout, :], w_ref[pl.ds(i * cin, cin), :],
                                    preferred_element_type=jnp.float32)
        y = acc + t_ref[...]             # BN shift (conv bias folded in; BN scale folded into w)
        y = jnp.maximum(y, 0.05 * y)     # LeakyReLU(0.05)
        # bf16 intermediates for the next bf16 matmul; keep layer-4 output f32 for pooling.
        x = y.astype(jnp.bfloat16) if idx < 3 else y

    # msel[b, r] = 1/Lout if row r is in example b's valid range else 0 -> mean over
    # length is one tiny matmul; then the final Linear; one single output store.
    pooled = jnp.dot(msel_ref[...], x, preferred_element_type=jnp.float32)   # (TB, 32)
    out_ref[...] = (jnp.dot(pooled, wf_ref[...], preferred_element_type=jnp.float32)
                    + fcb_ref[...])                                          # (TB, 1)


def make_params(key, vocab_size, pad_idx, emb_dim=100):
    conv_defs = [(emb_dim, 128, 15), (128, 64, 9), (64, 32, 5), (32, 32, 5)]
    keys = iter(jax.random.split(key, 32))
    emb = jax.random.normal(next(keys), (vocab_size, emb_dim), jnp.float32)
    emb = emb.at[pad_idx].set(0.0)       # nn.Embedding padding_idx row is zero
    convs = []
    for cin, cout, k in conv_defs:
        w = jax.random.normal(next(keys), (k, cin, cout), jnp.float32) / jnp.sqrt(cin * k)
        b = 0.1 * jax.random.normal(next(keys), (1, cout), jnp.float32)
        gamma = 1.0 + 0.1 * jax.random.normal(next(keys), (1, cout), jnp.float32)
        beta = 0.1 * jax.random.normal(next(keys), (1, cout), jnp.float32)
        rmean = 0.1 * jax.random.normal(next(keys), (1, cout), jnp.float32)
        rvar = jax.random.uniform(next(keys), (1, cout), jnp.float32, minval=0.5, maxval=1.5)
        scale = gamma / jnp.sqrt(rvar + 1e-5)   # eval-mode BN folded
        shift = beta - rmean * scale
        convs.append(dict(w=w, b=b, scale=scale, shift=shift))
    wf = jax.random.normal(next(keys), (32, 1), jnp.float32) / jnp.sqrt(32.0)
    bf = 0.1 * jax.random.normal(next(keys), (1, 1), jnp.float32)
    return dict(emb=emb, convs=convs, wf=wf, bf=bf)


@jax.jit
def similarity_net_forward(ids, params):
    B, L = ids.shape
    assert L > _SHRINK, "sequence must be longer than total conv shrink (30)"
    lout = L - _SHRINK

    lpad = _round_up(L, 8)               # per-example row stride (sublane aligned)

    # im2col only pays on the 256-deep MXUs (v6e/v7x) and only for the 128-channel layers;
    # layers 3-4 (Cin 64/32) always use per-tap matmuls (no lane-misaligned concats).
    deep = _DEEP_MXU
    deep_layers = (deep, deep, False, False)

    # --- batch tile: as large as the per-step VMEM budget allows (biggest lever), capped
    #     at 64, multiple of 8, and >=2 grid steps when B > 8 so both v7x TCs get work. ---
    per_row = (9 * 1024) if deep else (4 * 1024)   # rough kernel-temp bytes per activation row
    budget = 24 << 20                              # leave headroom inside the 48 MiB limit
    tb_cap = min(64, max(8, (budget // (lpad * per_row)) // 8 * 8))
    if B <= 8:
        tb = B
    else:
        n_steps = max(2, -(-B // tb_cap))
        tb = min(tb_cap, _round_up(-(-B // n_steps), 8))
    bp = _round_up(B, tb)
    nb = bp // tb
    tbl = tb * lpad                      # activation rows per grid step

    V, E = params['emb'].shape
    vp, ep = _round_up(V, 128), _round_up(E, 128)   # lane-aligned vocab / embedding dims

    # --- token ids: (B, L) -> (Bp*Lpad, 1); example b occupies rows [b*Lpad, b*Lpad+L) ---
    ids_p = jnp.zeros((bp, lpad), jnp.int32).at[:B, :L].set(ids.astype(jnp.int32))
    ids_flat = ids_p.reshape(bp * lpad, 1)

    # --- params: pad to lane-aligned shapes, fold BN scale into bf16 weights and conv
    #     bias into the BN shift (trace-time constant folds) ---
    table = jnp.zeros((vp, ep), jnp.float32).at[:V, :E].set(params['emb']).astype(jnp.bfloat16)
    layer_args = []
    cins = []
    cin_prev = ep
    for c in params['convs']:
        k, cin, cout = c['w'].shape
        w_scaled = c['w'] * c['scale']                               # fold BN scale into weight
        w = jnp.zeros((k, cin_prev, cout), jnp.float32).at[:, :cin, :].set(w_scaled)
        w = w.reshape(k * cin_prev, cout).astype(jnp.bfloat16)       # (K*Cin, Cout) bf16 layout
        shift = c['shift'] + c['b'] * c['scale']                     # fold conv bias into shift
        layer_args += [w, shift]
        cins.append(cin_prev)
        cin_prev = cout

    # --- pooling matrix: mean over each example's valid output rows (constant) ---
    n4 = tbl - _SHRINK
    msel_np = np.zeros((tb, n4), np.float32)
    for j in range(tb):
        msel_np[j, j * lpad:j * lpad + lout] = 1.0 / lout
    msel = jnp.asarray(msel_np)

    wf = params['wf'].astype(jnp.float32)        # (32, 1)
    fcb = params['bf'].astype(jnp.float32)       # (1, 1)

    inputs = [ids_flat, table] + layer_args + [msel, wf, fcb]

    # --- advisory cost estimate so XLA can overlap this call ---
    flops = 2 * nb * tbl * vp * ep
    n_rows, cin = tbl, ep
    for k_, c in zip(_KS, params['convs']):
        cout = c['w'].shape[2]
        n_rows -= k_ - 1
        flops += 2 * nb * n_rows * (k_ * cin) * cout
        cin = cout
    flops += 2 * nb * (tb * n_rows * cin + tb * cin)
    bytes_accessed = sum(int(a.size) * a.dtype.itemsize for a in inputs) + bp * 4

    def _whole(a):  # full-array block, same block index every grid step (fetched once)
        return pl.BlockSpec(a.shape, lambda i: (0, 0))

    in_specs = [pl.BlockSpec((tbl, 1), lambda i: (i, 0))] + [_whole(a) for a in inputs[1:]]

    kernel = functools.partial(similarity_kernel, cins=tuple(cins), deep_layers=deep_layers)

    out = pl.pallas_call(
        kernel,
        out_shape=jax.ShapeDtypeStruct((bp, 1), jnp.float32),
        grid=(nb,),
        in_specs=in_specs,
        out_specs=pl.BlockSpec((tb, 1), lambda i: (i, 0)),
        compiler_params=pltpu.CompilerParams(
            dimension_semantics=("parallel",),
            vmem_limit_bytes=48 * 1024 * 1024),
        cost_estimate=pl.CostEstimate(flops=flops, transcendentals=0,
                                      bytes_accessed=bytes_accessed),
    )(*inputs)
    return out[:B]


def reference_forward(ids, params):
    """Pure-JAX reference mirroring the kernel's numerics (bf16 scale-folded weights,
    f32 accumulation, bf16 intermediate activations)."""
    x = params['emb'].astype(jnp.bfloat16)[ids]                      # (B, L, E) bf16
    for li, c in enumerate(params['convs']):
        w = (c['w'] * c['scale']).astype(jnp.bfloat16)               # BN scale folded, bf16
        kk = w.shape[0]
        lout = x.shape[1] - kk + 1
        acc = jnp.zeros((x.shape[0], lout, w.shape[2]), jnp.float32)
        for k in range(kk):
            acc = acc + jnp.einsum('blc,co->blo', x[:, k:k + lout, :], w[k],
                                   preferred_element_type=jnp.float32)
        y = acc + (c['shift'] + c['b'] * c['scale'])
        y = jnp.maximum(y, 0.05 * y)
        x = y.astype(jnp.bfloat16) if li < 3 else y
    pooled = jnp.mean(x, axis=1)                 # (B, 32)
    return pooled @ params['wf'] + params['bf']


if __name__ == "__main__":
    VOCAB, PAD_IDX = 50, 0
    B, L = 2, 40                                 # L >= 31 so L - 30 >= 1 after the 4 convs
    key = jax.random.PRNGKey(0)
    k_ids, k_par = jax.random.split(key)
    ids = jax.random.randint(k_ids, (B, L), 1, VOCAB).astype(jnp.int32)
    ids = ids.at[:, -5:].set(PAD_IDX)            # some padding tokens
    params = make_params(k_par, VOCAB, PAD_IDX)

    out = similarity_net_forward(ids, params)
    out = jax.block_until_ready(out)
    assert out.shape == (B, 1)

    ref = reference_forward(ids, params)
    np.testing.assert_allclose(np.asarray(out), np.asarray(ref), rtol=2e-3, atol=2e-3)
    print("KERNEL_OK")
</pallas_src>

<mosaic_0001>
module attributes {stable_mosaic.version = 11 : i64} {
  func.func @similarity_kernel(%arg0: i32, %arg1: memref<80x1xi32, #tpu.memory_space<vmem>>, %arg2: memref<128x128xbf16, #tpu.memory_space<vmem>>, %arg3: memref<1920x128xbf16, #tpu.memory_space<vmem>>, %arg4: memref<1x128xf32, #tpu.memory_space<vmem>>, %arg5: memref<1152x64xbf16, #tpu.memory_space<vmem>>, %arg6: memref<1x64xf32, #tpu.memory_space<vmem>>, %arg7: memref<320x32xbf16, #tpu.memory_space<vmem>>, %arg8: memref<1x32xf32, #tpu.memory_space<vmem>>, %arg9: memref<160x32xbf16, #tpu.memory_space<vmem>>, %arg10: memref<1x32xf32, #tpu.memory_space<vmem>>, %arg11: memref<2x50xf32, #tpu.memory_space<vmem>>, %arg12: memref<32x1xf32, #tpu.memory_space<vmem>>, %arg13: memref<1x1xf32, #tpu.memory_space<vmem>>, %arg14: memref<2x1xf32, #tpu.memory_space<vmem>>) attributes {dimension_semantics = [#tpu.dimension_semantics<parallel>], iteration_bounds = array<i64: 1>, scalar_prefetch = 0 : i64, scratch_operands = 0 : i64, tpu.core_type = #tpu.core_type<tc>, window_params = [{transform_indices = @transform_0, window_bounds = array<i64: 80, 1>}, {pipeline_mode = #tpu.pipeline_mode<synchronous>, transform_indices = @transform_1, window_bounds = array<i64: 128, 128>}, {pipeline_mode = #tpu.pipeline_mode<synchronous>, transform_indices = @transform_2, window_bounds = array<i64: 1920, 128>}, {pipeline_mode = #tpu.pipeline_mode<synchronous>, transform_indices = @transform_3, window_bounds = array<i64: 1, 128>}, {pipeline_mode = #tpu.pipeline_mode<synchronous>, transform_indices = @transform_4, window_bounds = array<i64: 1152, 64>}, {pipeline_mode = #tpu.pipeline_mode<synchronous>, transform_indices = @transform_5, window_bounds = array<i64: 1, 64>}, {pipeline_mode = #tpu.pipeline_mode<synchronous>, transform_indices = @transform_6, window_bounds = array<i64: 320, 32>}, {pipeline_mode = #tpu.pipeline_mode<synchronous>, transform_indices = @transform_7, window_bounds = array<i64: 1, 32>}, {pipeline_mode = #tpu.pipeline_mode<synchronous>, transform_indices = @transform_8, window_bounds = array<i64: 160, 32>}, {pipeline_mode = #tpu.pipeline_mode<synchronous>, transform_indices = @transform_9, window_bounds = array<i64: 1, 32>}, {pipeline_mode = #tpu.pipeline_mode<synchronous>, transform_indices = @transform_10, window_bounds = array<i64: 2, 50>}, {pipeline_mode = #tpu.pipeline_mode<synchronous>, transform_indices = @transform_11, window_bounds = array<i64: 32, 1>}, {pipeline_mode = #tpu.pipeline_mode<synchronous>, transform_indices = @transform_12, window_bounds = array<i64: 1, 1>}, {transform_indices = @transform_13, window_bounds = array<i64: 2, 1>}]} {
    %c0 = arith.constant 0 : index
    %c0_0 = arith.constant 0 : index
    %0 = vector.load %arg1[%c0, %c0_0] : memref<80x1xi32, #tpu.memory_space<vmem>>, vector<80x1xi32>
    %c0_1 = arith.constant 0 : index
    %c0_2 = arith.constant 0 : index
    %1 = vector.load %arg2[%c0_1, %c0_2] : memref<128x128xbf16, #tpu.memory_space<vmem>>, vector<128x128xbf16>
    %2 = tpu.iota {dimensions = array<i32: 1>} : vector<80x128xi32>
    %3 = vector.broadcast %0 : vector<80x1xi32> to vector<80x128xi32>
    %4 = arith.cmpi eq, %3, %2 : vector<80x128xi32>
    %5 = arith.extui %4 : vector<80x128xi1> to vector<80x128xi32>
    %6 = arith.sitofp %5 : vector<80x128xi32> to vector<80x128xf32>
    %7 = arith.truncf %6 : vector<80x128xf32> to vector<80x128xbf16>
    %cst = arith.constant dense<0.000000e+00> : vector<80x128xf32>
    %8 = tpu.matmul %7, %1, %cst {dimension_numbers = #tpu.dot_dimension_numbers<[1], [0], [0], [1], [0, 0, 1, 1], [], []>} : vector<80x128xbf16>, vector<128x128xbf16>, vector<80x128xf32> -> vector<80x128xf32>
    %9 = arith.truncf %8 : vector<80x128xf32> to vector<80x128xbf16>
    %10 = vector.extract_strided_slice %9 {offsets = [0, 0], sizes = [66, 128], strides = [1, 1]} : vector<80x128xbf16> to vector<66x128xbf16>
    %11 = vector.extract_strided_slice %9 {offsets = [1, 0], sizes = [66, 128], strides = [1, 1]} : vector<80x128xbf16> to vector<66x128xbf16>
    %12 = vector.extract_strided_slice %9 {offsets = [2, 0], sizes = [66, 128], strides = [1, 1]} : vector<80x128xbf16> to vector<66x128xbf16>
    %13 = vector.extract_strided_slice %9 {offsets = [3, 0], sizes = [66, 128], strides = [1, 1]} : vector<80x128xbf16> to vector<66x128xbf16>
    %14 = vector.extract_strided_slice %9 {offsets = [4, 0], sizes = [66, 128], strides = [1, 1]} : vector<80x128xbf16> to vector<66x128xbf16>
    %15 = vector.extract_strided_slice %9 {offsets = [5, 0], sizes = [66, 128], strides = [1, 1]} : vector<80x128xbf16> to vector<66x128xbf16>
    %16 = vector.extract_strided_slice %9 {offsets = [6, 0], sizes = [66, 128], strides = [1, 1]} : vector<80x128xbf16> to vector<66x128xbf16>
    %17 = vector.extract_strided_slice %9 {offsets = [7, 0], sizes = [66, 128], strides = [1, 1]} : vector<80x128xbf16> to vector<66x128xbf16>
    %18 = vector.extract_strided_slice %9 {offsets = [8, 0], sizes = [66, 128], strides = [1, 1]} : vector<80x128xbf16> to vector<66x128xbf16>
    %19 = vector.extract_strided_slice %9 {offsets = [9, 0], sizes = [66, 128], strides = [1, 1]} : vector<80x128xbf16> to vector<66x128xbf16>
    %20 = vector.extract_strided_slice %9 {offsets = [10, 0], sizes = [66, 128], strides = [1, 1]} : vector<80x128xbf16> to vector<66x128xbf16>
    %21 = vector.extract_strided_slice %9 {offsets = [11, 0], sizes = [66, 128], strides = [1, 1]} : vector<80x128xbf16> to vector<66x128xbf16>
    %22 = vector.extract_strided_slice %9 {offsets = [12, 0], sizes = [66, 128], strides = [1, 1]} : vector<80x128xbf16> to vector<66x128xbf16>
    %23 = vector.extract_strided_slice %9 {offsets = [13, 0], sizes = [66, 128], strides = [1, 1]} : vector<80x128xbf16> to vector<66x128xbf16>
    %24 = vector.extract_strided_slice %9 {offsets = [14, 0], sizes = [66, 128], strides = [1, 1]} : vector<80x128xbf16> to vector<66x128xbf16>
    %25 = tpu.concatenate %10, %11, %12, %13, %14, %15, %16, %17, %18, %19, %20, %21, %22, %23, %24 in 1 : vector<66x128xbf16>, vector<66x128xbf16>, vector<66x128xbf16>, vector<66x128xbf16>, vector<66x128xbf16>, vector<66x128xbf16>, vector<66x128xbf16>, vector<66x128xbf16>, vector<66x128xbf16>, vector<66x128xbf16>, vector<66x128xbf16>, vector<66x128xbf16>, vector<66x128xbf16>, vector<66x128xbf16>, vector<66x128xbf16> -> vector<66x1920xbf16>
    %c0_3 = arith.constant 0 : index
    %c0_4 = arith.constant 0 : index
    %26 = vector.load %arg3[%c0_3, %c0_4] : memref<1920x128xbf16, #tpu.memory_space<vmem>>, vector<1920x128xbf16>
    %cst_5 = arith.constant dense<0.000000e+00> : vector<66x128xf32>
    %27 = tpu.matmul %25, %26, %cst_5 {dimension_numbers = #tpu.dot_dimension_numbers<[1], [0], [0], [1], [0, 0, 1, 1], [], []>} : vector<66x1920xbf16>, vector<1920x128xbf16>, vector<66x128xf32> -> vector<66x128xf32>
    %c0_6 = arith.constant 0 : index
    %c0_7 = arith.constant 0 : index
    %28 = vector.load %arg4[%c0_6, %c0_7] : memref<1x128xf32, #tpu.memory_space<vmem>>, vector<1x128xf32>
    %29 = vector.broadcast %28 : vector<1x128xf32> to vector<66x128xf32>
    %30 = arith.addf %27, %29 : vector<66x128xf32>
    %cst_8 = arith.constant 5.000000e-02 : f32
    %31 = vector.broadcast %cst_8 : f32 to vector<66x128xf32>
    %32 = arith.mulf %31, %30 : vector<66x128xf32>
    %33 = arith.maximumf %30, %32 : vector<66x128xf32>
    %34 = arith.truncf %33 : vector<66x128xf32> to vector<66x128xbf16>
    %35 = vector.extract_strided_slice %34 {offsets = [0, 0], sizes = [58, 128], strides = [1, 1]} : vector<66x128xbf16> to vector<58x128xbf16>
    %36 = vector.extract_strided_slice %34 {offsets = [1, 0], sizes = [58, 128], strides = [1, 1]} : vector<66x128xbf16> to vector<58x128xbf16>
    %37 = vector.extract_strided_slice %34 {offsets = [2, 0], sizes = [58, 128], strides = [1, 1]} : vector<66x128xbf16> to vector<58x128xbf16>
    %38 = vector.extract_strided_slice %34 {offsets = [3, 0], sizes = [58, 128], strides = [1, 1]} : vector<66x128xbf16> to vector<58x128xbf16>
    %39 = vector.extract_strided_slice %34 {offsets = [4, 0], sizes = [58, 128], strides = [1, 1]} : vector<66x128xbf16> to vector<58x128xbf16>
    %40 = vector.extract_strided_slice %34 {offsets = [5, 0], sizes = [58, 128], strides = [1, 1]} : vector<66x128xbf16> to vector<58x128xbf16>
    %41 = vector.extract_strided_slice %34 {offsets = [6, 0], sizes = [58, 128], strides = [1, 1]} : vector<66x128xbf16> to vector<58x128xbf16>
    %42 = vector.extract_strided_slice %34 {offsets = [7, 0], sizes = [58, 128], strides = [1, 1]} : vector<66x128xbf16> to vector<58x128xbf16>
    %43 = vector.extract_strided_slice %34 {offsets = [8, 0], sizes = [58, 128], strides = [1, 1]} : vector<66x128xbf16> to vector<58x128xbf16>
    %44 = tpu.concatenate %35, %36, %37, %38, %39, %40, %41, %42, %43 in 1 : vector<58x128xbf16>, vector<58x128xbf16>, vector<58x128xbf16>, vector<58x128xbf16>, vector<58x128xbf16>, vector<58x128xbf16>, vector<58x128xbf16>, vector<58x128xbf16>, vector<58x128xbf16> -> vector<58x1152xbf16>
    %c0_9 = arith.constant 0 : index
    %c0_10 = arith.constant 0 : index
    %45 = vector.load %arg5[%c0_9, %c0_10] : memref<1152x64xbf16, #tpu.memory_space<vmem>>, vector<1152x64xbf16>
    %cst_11 = arith.constant dense<0.000000e+00> : vector<58x64xf32>
    %46 = tpu.matmul %44, %45, %cst_11 {dimension_numbers = #tpu.dot_dimension_numbers<[1], [0], [0], [1], [0, 0, 1, 1], [], []>} : vector<58x1152xbf16>, vector<1152x64xbf16>, vector<58x64xf32> -> vector<58x64xf32>
    %c0_12 = arith.constant 0 : index
    %c0_13 = arith.constant 0 : index
    %47 = vector.load %arg6[%c0_12, %c0_13] : memref<1x64xf32, #tpu.memory_space<vmem>>, vector<1x64xf32>
    %48 = vector.broadcast %47 : vector<1x64xf32> to vector<58x64xf32>
    %49 = arith.addf %46, %48 : vector<58x64xf32>
    %cst_14 = arith.constant 5.000000e-02 : f32
    %50 = vector.broadcast %cst_14 : f32 to vector<58x64xf32>
    %51 = arith.mulf %50, %49 : vector<58x64xf32>
    %52 = arith.maximumf %49, %51 : vector<58x64xf32>
    %53 = arith.truncf %52 : vector<58x64xf32> to vector<58x64xbf16>
    %54 = vector.extract_strided_slice %53 {offsets = [0, 0], sizes = [54, 64], strides = [1, 1]} : vector<58x64xbf16> to vector<54x64xbf16>
    %c0_15 = arith.constant 0 : index
    %c0_16 = arith.constant 0 : index
    %55 = vector.load %arg7[%c0_15, %c0_16] : memref<320x32xbf16, #tpu.memory_space<vmem>>, vector<64x32xbf16>
    %cst_17 = arith.constant dense<0.000000e+00> : vector<54x32xf32>
    %56 = tpu.matmul %54, %55, %cst_17 {dimension_numbers = #tpu.dot_dimension_numbers<[1], [0], [0], [1], [0, 0, 1, 1], [], []>} : vector<54x64xbf16>, vector<64x32xbf16>, vector<54x32xf32> -> vector<54x32xf32>
    %57 = vector.extract_strided_slice %53 {offsets = [1, 0], sizes = [54, 64], strides = [1, 1]} : vector<58x64xbf16> to vector<54x64xbf16>
    %c64 = arith.constant 64 : index
    %c0_18 = arith.constant 0 : index
    %58 = vector.load %arg7[%c64, %c0_18] : memref<320x32xbf16, #tpu.memory_space<vmem>>, vector<64x32xbf16>
    %cst_19 = arith.constant dense<0.000000e+00> : vector<54x32xf32>
    %59 = tpu.matmul %57, %58, %cst_19 {dimension_numbers = #tpu.dot_dimension_numbers<[1], [0], [0], [1], [0, 0, 1, 1], [], []>} : vector<54x64xbf16>, vector<64x32xbf16>, vector<54x32xf32> -> vector<54x32xf32>
    %60 = arith.addf %56, %59 : vector<54x32xf32>
    %61 = vector.extract_strided_slice %53 {offsets = [2, 0], sizes = [54, 64], strides = [1, 1]} : vector<58x64xbf16> to vector<54x64xbf16>
    %c128 = arith.constant 128 : index
    %c0_20 = arith.constant 0 : index
    %62 = vector.load %arg7[%c128, %c0_20] : memref<320x32xbf16, #tpu.memory_space<vmem>>, vector<64x32xbf16>
    %cst_21 = arith.constant dense<0.000000e+00> : vector<54x32xf32>
    %63 = tpu.matmul %61, %62, %cst_21 {dimension_numbers = #tpu.dot_dimension_numbers<[1], [0], [0], [1], [0, 0, 1, 1], [], []>} : vector<54x64xbf16>, vector<64x32xbf16>, vector<54x32xf32> -> vector<54x32xf32>
    %64 = arith.addf %60, %63 : vector<54x32xf32>
    %65 = vector.extract_strided_slice %53 {offsets = [3, 0], sizes = [54, 64], strides = [1, 1]} : vector<58x64xbf16> to vector<54x64xbf16>
    %c192 = arith.constant 192 : index
    %c0_22 = arith.constant 0 : index
    %66 = vector.load %arg7[%c192, %c0_22] : memref<320x32xbf16, #tpu.memory_space<vmem>>, vector<64x32xbf16>
    %cst_23 = arith.constant dense<0.000000e+00> : vector<54x32xf32>
    %67 = tpu.matmul %65, %66, %cst_23 {dimension_numbers = #tpu.dot_dimension_numbers<[1], [0], [0], [1], [0, 0, 1, 1], [], []>} : vector<54x64xbf16>, vector<64x32xbf16>, vector<54x32xf32> -> vector<54x32xf32>
    %68 = arith.addf %64, %67 : vector<54x32xf32>
    %69 = vector.extract_strided_slice %53 {offsets = [4, 0], sizes = [54, 64], strides = [1, 1]} : vector<58x64xbf16> to vector<54x64xbf16>
    %c256 = arith.constant 256 : index
    %c0_24 = arith.constant 0 : index
    %70 = vector.load %arg7[%c256, %c0_24] : memref<320x32xbf16, #tpu.memory_space<vmem>>, vector<64x32xbf16>
    %cst_25 = arith.constant dense<0.000000e+00> : vector<54x32xf32>
    %71 = tpu.matmul %69, %70, %cst_25 {dimension_numbers = #tpu.dot_dimension_numbers<[1], [0], [0], [1], [0, 0, 1, 1], [], []>} : vector<54x64xbf16>, vector<64x32xbf16>, vector<54x32xf32> -> vector<54x32xf32>
    %72 = arith.addf %68, %71 : vector<54x32xf32>
    %c0_26 = arith.constant 0 : index
    %c0_27 = arith.constant 0 : index
    %73 = vector.load %arg8[%c0_26, %c0_27] : memref<1x32xf32, #tpu.memory_space<vmem>>, vector<1x32xf32>
    %74 = vector.broadcast %73 : vector<1x32xf32> to vector<54x32xf32>
    %75 = arith.addf %72, %74 : vector<54x32xf32>
    %cst_28 = arith.constant 5.000000e-02 : f32
    %76 = vector.broadcast %cst_28 : f32 to vector<54x32xf32>
    %77 = arith.mulf %76, %75 : vector<54x32xf32>
    %78 = arith.maximumf %75, %77 : vector<54x32xf32>
    %79 = arith.truncf %78 : vector<54x32xf32> to vector<54x32xbf16>
    %80 = vector.extract_strided_slice %79 {offsets = [0, 0], sizes = [50, 32], strides = [1, 1]} : vector<54x32xbf16> to vector<50x32xbf16>
    %c0_29 = arith.constant 0 : index
    %c0_30 = arith.constant 0 : index
    %81 = vector.load %arg9[%c0_29, %c0_30] : memref<160x32xbf16, #tpu.memory_space<vmem>>, vector<32x32xbf16>
    %cst_31 = arith.constant dense<0.000000e+00> : vector<50x32xf32>
    %82 = tpu.matmul %80, %81, %cst_31 {dimension_numbers = #tpu.dot_dimension_numbers<[1], [0], [0], [1], [0, 0, 1, 1], [], []>} : vector<50x32xbf16>, vector<32x32xbf16>, vector<50x32xf32> -> vector<50x32xf32>
    %83 = vector.extract_strided_slice %79 {offsets = [1, 0], sizes = [50, 32], strides = [1, 1]} : vector<54x32xbf16> to vector<50x32xbf16>
    %c32 = arith.constant 32 : index
    %c0_32 = arith.constant 0 : index
    %84 = vector.load %arg9[%c32, %c0_32] : memref<160x32xbf16, #tpu.memory_space<vmem>>, vector<32x32xbf16>
    %cst_33 = arith.constant dense<0.000000e+00> : vector<50x32xf32>
    %85 = tpu.matmul %83, %84, %cst_33 {dimension_numbers = #tpu.dot_dimension_numbers<[1], [0], [0], [1], [0, 0, 1, 1], [], []>} : vector<50x32xbf16>, vector<32x32xbf16>, vector<50x32xf32> -> vector<50x32xf32>
    %86 = arith.addf %82, %85 : vector<50x32xf32>
    %87 = vector.extract_strided_slice %79 {offsets = [2, 0], sizes = [50, 32], strides = [1, 1]} : vector<54x32xbf16> to vector<50x32xbf16>
    %c64_34 = arith.constant 64 : index
    %c0_35 = arith.constant 0 : index
    %88 = vector.load %arg9[%c64_34, %c0_35] : memref<160x32xbf16, #tpu.memory_space<vmem>>, vector<32x32xbf16>
    %cst_36 = arith.constant dense<0.000000e+00> : vector<50x32xf32>
    %89 = tpu.matmul %87, %88, %cst_36 {dimension_numbers = #tpu.dot_dimension_numbers<[1], [0], [0], [1], [0, 0, 1, 1], [], []>} : vector<50x32xbf16>, vector<32x32xbf16>, vector<50x32xf32> -> vector<50x32xf32>
    %90 = arith.addf %86, %89 : vector<50x32xf32>
    %91 = vector.extract_strided_slice %79 {offsets = [3, 0], sizes = [50, 32], strides = [1, 1]} : vector<54x32xbf16> to vector<50x32xbf16>
    %c96 = arith.constant 96 : index
    %c0_37 = arith.constant 0 : index
    %92 = vector.load %arg9[%c96, %c0_37] : memref<160x32xbf16, #tpu.memory_space<vmem>>, vector<32x32xbf16>
    %cst_38 = arith.constant dense<0.000000e+00> : vector<50x32xf32>
    %93 = tpu.matmul %91, %92, %cst_38 {dimension_numbers = #tpu.dot_dimension_numbers<[1], [0], [0], [1], [0, 0, 1, 1], [], []>} : vector<50x32xbf16>, vector<32x32xbf16>, vector<50x32xf32> -> vector<50x32xf32>
    %94 = arith.addf %90, %93 : vector<50x32xf32>
    %95 = vector.extract_strided_slice %79 {offsets = [4, 0], sizes = [50, 32], strides = [1, 1]} : vector<54x32xbf16> to vector<50x32xbf16>
    %c128_39 = arith.constant 128 : index
    %c0_40 = arith.constant 0 : index
    %96 = vector.load %arg9[%c128_39, %c0_40] : memref<160x32xbf16, #tpu.memory_space<vmem>>, vector<32x32xbf16>
    %cst_41 = arith.constant dense<0.000000e+00> : vector<50x32xf32>
    %97 = tpu.matmul %95, %96, %cst_41 {dimension_numbers = #tpu.dot_dimension_numbers<[1], [0], [0], [1], [0, 0, 1, 1], [], []>} : vector<50x32xbf16>, vector<32x32xbf16>, vector<50x32xf32> -> vector<50x32xf32>
    %98 = arith.addf %94, %97 : vector<50x32xf32>
    %c0_42 = arith.constant 0 : index
    %c0_43 = arith.constant 0 : index
    %99 = vector.load %arg10[%c0_42, %c0_43] : memref<1x32xf32, #tpu.memory_space<vmem>>, vector<1x32xf32>
    %100 = vector.broadcast %99 : vector<1x32xf32> to vector<50x32xf32>
    %101 = arith.addf %98, %100 : vector<50x32xf32>
    %cst_44 = arith.constant 5.000000e-02 : f32
    %102 = vector.broadcast %cst_44 : f32 to vector<50x32xf32>
    %103 = arith.mulf %102, %101 : vector<50x32xf32>
    %104 = arith.maximumf %101, %103 : vector<50x32xf32>
    %c0_45 = arith.constant 0 : index
    %c0_46 = arith.constant 0 : index
    %105 = vector.load %arg11[%c0_45, %c0_46] : memref<2x50xf32, #tpu.memory_space<vmem>>, vector<2x50xf32>
    %cst_47 = arith.constant dense<0.000000e+00> : vector<2x32xf32>
    %106 = tpu.matmul %105, %104, %cst_47 {dimension_numbers = #tpu.dot_dimension_numbers<[1], [0], [0], [1], [0, 0, 1, 1], [], []>} : vector<2x50xf32>, vector<50x32xf32>, vector<2x32xf32> -> vector<2x32xf32>
    %c0_48 = arith.constant 0 : index
    %c0_49 = arith.constant 0 : index
    %107 = vector.load %arg12[%c0_48, %c0_49] : memref<32x1xf32, #tpu.memory_space<vmem>>, vector<32x1xf32>
    %cst_50 = arith.constant dense<0.000000e+00> : vector<2x1xf32>
    %108 = tpu.matmul %106, %107, %cst_50 {dimension_numbers = #tpu.dot_dimension_numbers<[1], [0], [0], [1], [0, 0, 1, 1], [], []>} : vector<2x32xf32>, vector<32x1xf32>, vector<2x1xf32> -> vector<2x1xf32>
    %c0_51 = arith.constant 0 : index
    %c0_52 = arith.constant 0 : index
    %109 = vector.load %arg13[%c0_51, %c0_52] : memref<1x1xf32, #tpu.memory_space<vmem>>, vector<1x1xf32>
    %110 = vector.broadcast %109 : vector<1x1xf32> to vector<2x1xf32>
    %111 = arith.addf %108, %110 : vector<2x1xf32>
    %c0_53 = arith.constant 0 : index
    %c0_54 = arith.constant 0 : index
    %112 = vector.load %arg14[%c0_53, %c0_54] : memref<2x1xf32, #tpu.memory_space<vmem>>, vector<2x1xf32>
    tpu.vector_store %arg14[%c0_53, %c0_54], %111 {strides = array<i32>} : memref<2x1xf32, #tpu.memory_space<vmem>>, vector<2x1xf32>,
    return
  }
  func.func @transform_0(%arg0: i32) -> (i32, i32) {
    %c0_i32 = arith.constant 0 : i32
    %c0_i32_0 = arith.constant 0 : i32
    return %arg0, %c0_i32 : i32, i32
  }
  func.func @transform_1(%arg0: i32) -> (i32, i32) {
    %c0_i32 = arith.constant 0 : i32
    %c0_i32_0 = arith.constant 0 : i32
    %c0_i32_1 = arith.constant 0 : i32
    return %c0_i32, %c0_i32_0 : i32, i32
  }
  func.func @transform_2(%arg0: i32) -> (i32, i32) {
    %c0_i32 = arith.constant 0 : i32
    %c0_i32_0 = arith.constant 0 : i32
    %c0_i32_1 = arith.constant 0 : i32
    return %c0_i32, %c0_i32_0 : i32, i32
  }
  func.func @transform_3(%arg0: i32) -> (i32, i32) {
    %c0_i32 = arith.constant 0 : i32
    %c0_i32_0 = arith.constant 0 : i32
    %c0_i32_1 = arith.constant 0 : i32
    return %c0_i32, %c0_i32_0 : i32, i32
  }
  func.func @transform_4(%arg0: i32) -> (i32, i32) {
    %c0_i32 = arith.constant 0 : i32
    %c0_i32_0 = arith.constant 0 : i32
    %c0_i32_1 = arith.constant 0 : i32
    return %c0_i32, %c0_i32_0 : i32, i32
  }
  func.func @transform_5(%arg0: i32) -> (i32, i32) {
    %c0_i32 = arith.constant 0 : i32
    %c0_i32_0 = arith.constant 0 : i32
    %c0_i32_1 = arith.constant 0 : i32
    return %c0_i32, %c0_i32_0 : i32, i32
  }
  func.func @transform_6(%arg0: i32) -> (i32, i32) {
    %c0_i32 = arith.constant 0 : i32
    %c0_i32_0 = arith.constant 0 : i32
    %c0_i32_1 = arith.constant 0 : i32
    return %c0_i32, %c0_i32_0 : i32, i32
  }
  func.func @transform_7(%arg0: i32) -> (i32, i32) {
    %c0_i32 = arith.constant 0 : i32
    %c0_i32_0 = arith.constant 0 : i32
    %c0_i32_1 = arith.constant 0 : i32
    return %c0_i32, %c0_i32_0 : i32, i32
  }
  func.func @transform_8(%arg0: i32) -> (i32, i32) {
    %c0_i32 = arith.constant 0 : i32
    %c0_i32_0 = arith.constant 0 : i32
    %c0_i32_1 = arith.constant 0 : i32
    return %c0_i32, %c0_i32_0 : i32, i32
  }
  func.func @transform_9(%arg0: i32) -> (i32, i32) {
    %c0_i32 = arith.constant 0 : i32
    %c0_i32_0 = arith.constant 0 : i32
    %c0_i32_1 = arith.constant 0 : i32
    return %c0_i32, %c0_i32_0 : i32, i32
  }
  func.func @transform_10(%arg0: i32) -> (i32, i32) {
    %c0_i32 = arith.constant 0 : i32
    %c0_i32_0 = arith.constant 0 : i32
    %c0_i32_1 = arith.constant 0 : i32
    return %c0_i32, %c0_i32_0 : i32, i32
  }
  func.func @transform_11(%arg0: i32) -> (i32, i32) {
    %c0_i32 = arith.constant 0 : i32
    %c0_i32_0 = arith.constant 0 : i32
    %c0_i32_1 = arith.constant 0 : i32
    return %c0_i32, %c0_i32_0 : i32, i32
  }
  func.func @transform_12(%arg0: i32) -> (i32, i32) {
    %c0_i32 = arith.constant 0 : i32
    %c0_i32_0 = arith.constant 0 : i32
    %c0_i32_1 = arith.constant 0 : i32
    return %c0_i32, %c0_i32_0 : i32, i32
  }
  func.func @transform_13(%arg0: i32) -> (i32, i32) {
    %c0_i32 = arith.constant 0 : i32
    %c0_i32_0 = arith.constant 0 : i32
    return %arg0, %c0_i32 : i32, i32
  }
}

</mosaic_0001>

<llo_original>
// kernel: similarity_net_forward.1
$region0: #{similarity_net_forward.1}
  #allocation0 [shape = 'u32[]', space=smem, size = 0x4, offset = 0x4, fixed_abs, tag = 'smem constant byte address 0x4 - core index']
  #allocation1 [shape = 'u32[72,128]{1,0:T(1,128)}', space=vmem, size = 0x9000, scoped, tag = 'internal scratch']
  #allocation2 [shape = 'f32[1,1]{1,0:T(1,128)S(1)}', space=vmem, size = 0x200, scoped, tag = 'scoped memory for similarity_net_forward.1']
  %s0 = inlined_call_operand.vmem [shape: s32[80,1], index: 0, kind: input, shape index: {}]
  %s1 = inlined_call_operand.vmem [shape: bf16[128,128], index: 1, kind: input, shape index: {}]
  %s2 = inlined_call_operand.vmem [shape: bf16[1920,128], index: 2, kind: input, shape index: {}]
  %s3 = inlined_call_operand.vmem [shape: f32[1,128], index: 3, kind: input, shape index: {}]
  %s4 = inlined_call_operand.vmem [shape: bf16[1152,64], index: 4, kind: input, shape index: {}]
  %s5 = inlined_call_operand.vmem [shape: f32[1,64], index: 5, kind: input, shape index: {}]
  %s6 = inlined_call_operand.vmem [shape: bf16[320,32], index: 6, kind: input, shape index: {}]
  %s7 = inlined_call_operand.vmem [shape: f32[1,32], index: 7, kind: input, shape index: {}]
  %s8 = inlined_call_operand.vmem [shape: bf16[160,32], index: 8, kind: input, shape index: {}]
  %s9 = inlined_call_operand.vmem [shape: f32[1,32], index: 9, kind: input, shape index: {}]
  %s10 = inlined_call_operand.vmem [shape: f32[2,50], index: 10, kind: input, shape index: {}]
  %s11 = inlined_call_operand.vmem [shape: f32[32,1], index: 11, kind: input, shape index: {}]
  %s12 = inlined_call_operand.<no memory space> [shape: f32[1,1], index: 12, kind: input, shape index: {}]
  %s13 = inlined_call_operand.vmem [shape: f32[2,1], index: 13, kind: output, shape index: {}]
  %s14 = sld [smem:[#allocation0]]
  $region62: #{similarity_net_forward.1} parent=0
    _
  %s16 = ssub.s32 1, %s14
  %s17 = scalar_select 0, %s16, %s14
  %v18 = vstv %s12
  %19 = vst [vmem:[#allocation2] sm:$0x1] %v18
  // Predicated region
  $region2: #{similarity_net_forward.1} parent=0 // pred_check
    _
  $region3: #{similarity_net_forward.1} parent=0 // pred_check_branch
    %21 = sbr.rel (0) target = $region5
  $region4: #{similarity_net_forward.1} parent=0 // pred_region
    _
  $region5: #{similarity_net_forward.1} parent=0 // pred_fallthru
    _
  // Predicated region
  $region6: #{similarity_net_forward.1} parent=0 // pred_check
    _
  $region7: #{similarity_net_forward.1} parent=0 // pred_check_branch
    %23 = sbr.rel (0) target = $region9
  $region8: #{similarity_net_forward.1} parent=0 // pred_region
    _
  $region9: #{similarity_net_forward.1} parent=0 // pred_fallthru
    _
  // Predicated region
  $region10: #{similarity_net_forward.1} parent=0 // pred_check
    _
  $region11: #{similarity_net_forward.1} parent=0 // pred_check_branch
    %25 = sbr.rel (0) target = $region13
  $region12: #{similarity_net_forward.1} parent=0 // pred_region
    _
  $region13: #{similarity_net_forward.1} parent=0 // pred_fallthru
    _
  // Predicated region
  $region14: #{similarity_net_forward.1} parent=0 // pred_check
    _
  $region15: #{similarity_net_forward.1} parent=0 // pred_check_branch
    %27 = sbr.rel (0) target = $region17
  $region16: #{similarity_net_forward.1} parent=0 // pred_region
    _
  $region17: #{similarity_net_forward.1} parent=0 // pred_fallthru
    _
  // Predicated region
  $region18: #{similarity_net_forward.1} parent=0 // pred_check
    _
  $region19: #{similarity_net_forward.1} parent=0 // pred_check_branch
    %29 = sbr.rel (0) target = $region21
  $region20: #{similarity_net_forward.1} parent=0 // pred_region
    _
  $region21: #{similarity_net_forward.1} parent=0 // pred_fallthru
    _
  // Predicated region
  $region22: #{similarity_net_forward.1} parent=0 // pred_check
    _
  $region23: #{similarity_net_forward.1} parent=0 // pred_check_branch
    %31 = sbr.rel (0) target = $region25
  $region24: #{similarity_net_forward.1} parent=0 // pred_region
    _
  $region25: #{similarity_net_forward.1} parent=0 // pred_fallthru
    _
  // Predicated region
  $region26: #{similarity_net_forward.1} parent=0 // pred_check
    _
  $region27: #{similarity_net_forward.1} parent=0 // pred_check_branch
    %33 = sbr.rel (0) target = $region29
  $region28: #{similarity_net_forward.1} parent=0 // pred_region
    _
  $region29: #{similarity_net_forward.1} parent=0 // pred_fallthru
    _
  // Predicated region
  $region30: #{similarity_net_forward.1} parent=0 // pred_check
    _
  $region31: #{similarity_net_forward.1} parent=0 // pred_check_branch
    %35 = sbr.rel (0) target = $region33
  $region32: #{similarity_net_forward.1} parent=0 // pred_region
    _
  $region33: #{similarity_net_forward.1} parent=0 // pred_fallthru
    _
  // Predicated region
  $region34: #{similarity_net_forward.1} parent=0 // pred_check
    _
  $region35: #{similarity_net_forward.1} parent=0 // pred_check_branch
    %37 = sbr.rel (0) target = $region37
  $region36: #{similarity_net_forward.1} parent=0 // pred_region
    _
  $region37: #{similarity_net_forward.1} parent=0 // pred_fallthru
    _
  // Predicated region
  $region38: #{similarity_net_forward.1} parent=0 // pred_check
    _
  $region39: #{similarity_net_forward.1} parent=0 // pred_check_branch
    %39 = sbr.rel (0) target = $region41
  $region40: #{similarity_net_forward.1} parent=0 // pred_region
    _
  $region41: #{similarity_net_forward.1} parent=0 // pred_fallthru
    _
  // Predicated region
  $region42: #{similarity_net_forward.1} parent=0 // pred_check
    _
  $region43: #{similarity_net_forward.1} parent=0 // pred_check_branch
    %41 = sbr.rel (0) target = $region45
  $region44: #{similarity_net_forward.1} parent=0 // pred_region
    _
  $region45: #{similarity_net_forward.1} parent=0 // pred_fallthru
    _
  // Predicated region
  $region46: #{similarity_net_forward.1} parent=0 // pred_check
    _
  $region47: #{similarity_net_forward.1} parent=0 // pred_check_branch
    %43 = sbr.rel (0) target = $region49
  $region48: #{similarity_net_forward.1} parent=0 // pred_region
    _
  $region49: #{similarity_net_forward.1} parent=0 // pred_fallthru
    _
  // Predicated region
  $region50: #{similarity_net_forward.1} parent=0 // pred_check
    _
  $region51: #{similarity_net_forward.1} parent=0 // pred_check_branch
    %45 = sbr.rel (0) target = $region53
  $region52: #{similarity_net_forward.1} parent=0 // pred_region
    _
  $region53: #{similarity_net_forward.1} parent=0 // pred_fallthru
    _
  %v47 = vld [vmem:[%s0] sm:$0xff]
  %v48 = vld [vmem:[%s0 + $0x8] sm:$0xff]
  %v49 = vld [vmem:[%s0 + $0x10] sm:$0xff]
  %v50 = vld [vmem:[%s0 + $0x18] sm:$0xff]
  %v51 = vld [vmem:[%s0 + $0x20] sm:$0xff]
  %v52 = vld [vmem:[%s0 + $0x28] sm:$0xff]
  %v53 = vld [vmem:[%s0 + $0x30] sm:$0xff]
  %v54 = vld [vmem:[%s0 + $0x38] sm:$0xff]
  %v55 = vld [vmem:[%s0 + $0x40] sm:$0xff]
  %v56 = vld [vmem:[%s0 + $0x48] sm:$0xff]
  %v57 = vld [vmem:[%s1] sm:$0xf]
  %v58 = vld [vmem:[%s1 + $0x4] sm:$0xf]
  %v59 = vld [vmem:[%s1 + $0x8] sm:$0xf]
  %v60 = vld [vmem:[%s1 + $0xc] sm:$0xf]
  %v61 = vld [vmem:[%s1 + $0x10] sm:$0xf]
  %v62 = vld [vmem:[%s1 + $0x14] sm:$0xf]
  %v63 = vld [vmem:[%s1 + $0x18] sm:$0xf]
  %v64 = vld [vmem:[%s1 + $0x1c] sm:$0xf]
  %v65 = vld [vmem:[%s1 + $0x20] sm:$0xf]
  %v66 = vld [vmem:[%s1 + $0x24] sm:$0xf]
  %v67 = vld [vmem:[%s1 + $0x28] sm:$0xf]
  %v68 = vld [vmem:[%s1 + $0x2c] sm:$0xf]
  %v69 = vld [vmem:[%s1 + $0x30] sm:$0xf]
  %v70 = vld [vmem:[%s1 + $0x34] sm:$0xf]
  %v71 = vld [vmem:[%s1 + $0x38] sm:$0xf]
  %v72 = vld [vmem:[%s1 + $0x3c] sm:$0xf]
  %v73 = vlaneseq
  %v74 = vand.u32 %v73, 127
  %75 = vset.pattern.permute.xlu0 0
  %76 = vperm.xlu0 %75, %v47
  %v77 = vpop.permute.xlu0 %76
  %78 = vset.pattern.permute.xlu0 0
  %79 = vperm.xlu0 %78, %v48
  %v80 = vpop.permute.xlu0 %79
  %81 = vset.pattern.permute.xlu0 0
  %82 = vperm.xlu0 %81, %v49
  %v83 = vpop.permute.xlu0 %82
  %84 = vset.pattern.permute.xlu0 0
  %85 = vperm.xlu0 %84, %v50
  %v86 = vpop.permute.xlu0 %85
  %87 = vset.pattern.permute.xlu0 0
  %88 = vperm.xlu0 %87, %v51
  %v89 = vpop.permute.xlu0 %88
  %90 = vset.pattern.permute.xlu0 0
  %91 = vperm.xlu0 %90, %v52
  %v92 = vpop.permute.xlu0 %91
  %93 = vset.pattern.permute.xlu0 0
  %94 = vperm.xlu0 %93, %v53
  %v95 = vpop.permute.xlu0 %94
  %96 = vset.pattern.permute.xlu0 0
  %97 = vperm.xlu0 %96, %v54
  %v98 = vpop.permute.xlu0 %97
  %99 = vset.pattern.permute.xlu0 0
  %100 = vperm.xlu0 %99, %v55
  %v101 = vpop.permute.xlu0 %100
  %102 = vset.pattern.permute.xlu0 0
  %103 = vperm.xlu0 %102, %v56
  %v104 = vpop.permute.xlu0 %103
  %vm105 = vcmp.eq.s32.totalorder %v77, %v74
  %vm106 = vcmp.eq.s32.totalorder %v80, %v74
  %vm107 = vcmp.eq.s32.totalorder %v83, %v74
  %vm108 = vcmp.eq.s32.totalorder %v86, %v74
  %vm109 = vcmp.eq.s32.totalorder %v89, %v74
  %vm110 = vcmp.eq.s32.totalorder %v92, %v74
  %vm111 = vcmp.eq.s32.totalorder %v95, %v74
  %vm112 = vcmp.eq.s32.totalorder %v98, %v74
  %vm113 = vcmp.eq.s32.totalorder %v101, %v74
  %vm114 = vcmp.eq.s32.totalorder %v104, %v74
  %v115 = vsel %vm105, 1, 0
  %v116 = vsel %vm106, 1, 0
  %v117 = vsel %vm107, 1, 0
  %v118 = vsel %vm108, 1, 0
  %v119 = vsel %vm109, 1, 0
  %v120 = vsel %vm110, 1, 0
  %v121 = vsel %vm111, 1, 0
  %v122 = vsel %vm112, 1, 0
  %v123 = vsel %vm113, 1, 0
  %v124 = vsel %vm114, 1, 0
  %v125 = vcvt.s32.f32 %v115
  %v126 = vcvt.s32.f32 %v116
  %v127 = vcvt.s32.f32 %v117
  %v128 = vcvt.s32.f32 %v118
  %v129 = vcvt.s32.f32 %v119
  %v130 = vcvt.s32.f32 %v120
  %v131 = vcvt.s32.f32 %v121
  %v132 = vcvt.s32.f32 %v122
  %v133 = vcvt.s32.f32 %v123
  %v134 = vcvt.s32.f32 %v124
  %v135 = vpack.c.bf16 %v126, %v125
  %v136 = vpack.c.bf16 %v128, %v127
  %v137 = vpack.c.bf16 %v130, %v129
  %v138 = vpack.c.bf16 %v132, %v131
  %v139 = vpack.c.bf16 %v134, %v133
  %v156 = vunpack.c.l.b16 %v57
  %v157 = vunpack.c.l.b16 %v58
  %v158 = vunpack.c.l.b16 %v59
  %v159 = vunpack.c.l.b16 %v60
  %v160 = vunpack.c.l.b16 %v61
  %v161 = vunpack.c.l.b16 %v62
  %v162 = vunpack.c.l.b16 %v63
  %v163 = vunpack.c.l.b16 %v64
  %v164 = vunpack.c.l.b16 %v65
  %v165 = vunpack.c.l.b16 %v66
  %v166 = vunpack.c.l.b16 %v67
  %v167 = vunpack.c.l.b16 %v68
  %v168 = vunpack.c.l.b16 %v69
  %v169 = vunpack.c.l.b16 %v70
  %v170 = vunpack.c.l.b16 %v71
  %v171 = vunpack.c.l.b16 %v72
  %v172 = vpack.c.b16 %v157, %v156
  %v173 = vpack.c.b16 %v159, %v158
  %v174 = vpack.c.b16 %v161, %v160
  %v175 = vpack.c.b16 %v163, %v162
  %v176 = vpack.c.b16 %v165, %v164
  %v177 = vpack.c.b16 %v167, %v166
  %v178 = vpack.c.b16 %v169, %v168
  %v179 = vpack.c.b16 %v171, %v170
  %188 = vmatpush.bf16.msra.mxu0 %v179
  %189 = vmatpush.bf16.msra.mxu0 %v178
  %190 = vmatpush.bf16.msra.mxu0 %v177
  %191 = vmatpush.bf16.msra.mxu0 %v176
  %192 = vmatpush.bf16.msra.mxu0 %v175
  %193 = vmatpush.bf16.msra.mxu0 %v174
  %194 = vmatpush.bf16.msra.mxu0 %v173
  %195 = vmatpush.bf16.msra.mxu0 %v172
  %196 = vmatmul.bf16.gmra.mxu0 %v135
  %v197 = vpop.f32.mrf.mxu0
  %v198 = vadd.f32 0.0, %v197
  %v199 = vpop.f32.mrf.mxu0
  %v200 = vadd.f32 0.0, %v199
  %201 = vmatmul.bf16.gmra.mxu0 %v136
  %v202 = vpop.f32.mrf.mxu0
  %v203 = vadd.f32 0.0, %v202
  %v204 = vpop.f32.mrf.mxu0
  %v205 = vadd.f32 0.0, %v204
  %206 = vmatmul.bf16.gmra.mxu0 %v137
  %v207 = vpop.f32.mrf.mxu0
  %v208 = vadd.f32 0.0, %v207
  %v209 = vpop.f32.mrf.mxu0
  %v210 = vadd.f32 0.0, %v209
  %211 = vmatmul.bf16.gmra.mxu0 %v138
  %v212 = vpop.f32.mrf.mxu0
  %v213 = vadd.f32 0.0, %v212
  %v214 = vpop.f32.mrf.mxu0
  %v215 = vadd.f32 0.0, %v214
  %216 = vmatmul.bf16.gmra.mxu0 %v139
  %v217 = vpop.f32.mrf.mxu0
  %v218 = vadd.f32 0.0, %v217
  %v219 = vpop.f32.mrf.mxu0
  %v220 = vadd.f32 0.0, %v219
  %221 = vdwg.mxu0
  %v222 = vpack.c.bf16 %v198, %v198
  %v223 = vpack.c.bf16 %v200, %v200
  %v224 = vpack.c.bf16 %v203, %v203
  %v225 = vpack.c.bf16 %v205, %v205
  %v226 = vpack.c.bf16 %v208, %v208
  %v227 = vpack.c.bf16 %v210, %v210
  %v228 = vpack.c.bf16 %v213, %v213
  %v229 = vpack.c.bf16 %v215, %v215
  %v230 = vpack.c.bf16 %v218, %v218
  %v231 = vpack.c.bf16 %v220, %v220
  %v241 = vunpack.c.l.b16 %v222
  %v242 = vunpack.c.l.b16 %v223
  %v243 = vunpack.c.l.b16 %v224
  %v244 = vunpack.c.l.b16 %v225
  %v245 = vunpack.c.l.b16 %v226
  %v246 = vunpack.c.l.b16 %v227
  %v247 = vunpack.c.l.b16 %v228
  %v248 = vunpack.c.l.b16 %v229
  %v249 = vunpack.c.l.b16 %v230
  %v250 = vpack.c.b16 %v242, %v241
  %v251 = vpack.c.b16 %v244, %v243
  %v252 = vpack.c.b16 %v246, %v245
  %v253 = vpack.c.b16 %v248, %v247
  %v254 = vpack.c.b16 %v249, %v249
  %vm260 = vsmask.f32 7424
  %v262 = vshrl.u32 %v250, 16
  %v264 = vshll.u32 %v250, 16
  %v266 = vrot.slane %v264, 1
  %v267 = vor.u32 %v262, %v266
  %v269 = vshll.u32 %v251, 16
  %v271 = vrot.slane %v269, 1
  %v272 = vsel %vm260, %v267, %v271
  %v273 = vshrl.u32 %v251, 16
  %v275 = vor.u32 %v273, %v271
  %v277 = vshll.u32 %v252, 16
  %v279 = vrot.slane %v277, 1
  %v280 = vsel %vm260, %v275, %v279
  %v281 = vshrl.u32 %v252, 16
  %v283 = vor.u32 %v281, %v279
  %v285 = vshll.u32 %v253, 16
  %v287 = vrot.slane %v285, 1
  %v288 = vsel %vm260, %v283, %v287
  %v289 = vshrl.u32 %v253, 16
  %v291 = vor.u32 %v289, %v287
  %v293 = vshll.u32 %v254, 16
  %v295 = vrot.slane %v293, 1
  %v296 = vsel %vm260, %v291, %v295
  %v297 = vshrl.u32 %v254, 16
  %v299 = vor.u32 %v297, %v295
  %vm305 = vcmask 1046528
  %v306 = vrot.slane %v250, 1
  %v307 = vrot.slane %v251, 1
  %v308 = vsel %vm305, %v306, %v307
  %v309 = vrot.slane %v252, 1
  %v310 = vsel %vm305, %v307, %v309
  %v311 = vrot.slane %v253, 1
  %v312 = vsel %vm305, %v309, %v311
  %v313 = vrot.slane %v254, 1
  %v314 = vsel %vm305, %v311, %v313
  %vm320 = vsmask.f32 6400
  %v321 = vrot.slane %v262, 1
  %v322 = vrot.slane %v264, 2
  %v323 = vor.u32 %v321, %v322
  %v324 = vrot.slane %v273, 1
  %v325 = vrot.slane %v269, 2
  %v326 = vor.u32 %v324, %v325
  %v327 = vsel %vm320, %v323, %v326
  %v328 = vrot.slane %v281, 1
  %v329 = vrot.slane %v277, 2
  %v330 = vor.u32 %v328, %v329
  %v331 = vsel %vm320, %v326, %v330
  %v332 = vrot.slane %v289, 1
  %v333 = vrot.slane %v285, 2
  %v334 = vor.u32 %v332, %v333
  %v335 = vsel %vm320, %v330, %v334
  %v336 = vrot.slane %v297, 1
  %v337 = vrot.slane %v293, 2
  %v338 = vor.u32 %v336, %v337
  %v339 = vsel %vm320, %v334, %v338
  %vm345 = vcmask 1045504
  %v346 = vrot.slane %v250, 2
  %v347 = vrot.slane %v251, 2
  %v348 = vsel %vm345, %v346, %v347
  %v349 = vrot.slane %v252, 2
  %v350 = vsel %vm345, %v347, %v349
  %v351 = vrot.slane %v253, 2
  %v352 = vsel %vm345, %v349, %v351
  %v353 = vrot.slane %v254, 2
  %v354 = vsel %vm345, %v351, %v353
  %vm360 = vsmask.f32 5376
  %v361 = vrot.slane %v262, 2
  %v362 = vrot.slane %v264, 3
  %v363 = vor.u32 %v361, %v362
  %v364 = vrot.slane %v273, 2
  %v365 = vrot.slane %v269, 3
  %v366 = vor.u32 %v364, %v365
  %v367 = vsel %vm360, %v363, %v366
  %v368 = vrot.slane %v281, 2
  %v369 = vrot.slane %v277, 3
  %v370 = vor.u32 %v368, %v369
  %v371 = vsel %vm360, %v366, %v370
  %v372 = vrot.slane %v289, 2
  %v373 = vrot.slane %v285, 3
  %v374 = vor.u32 %v372, %v373
  %v375 = vsel %vm360, %v370, %v374
  %v376 = vrot.slane %v297, 2
  %v377 = vrot.slane %v293, 3
  %v378 = vor.u32 %v376, %v377
  %v379 = vsel %vm360, %v374, %v378
  %vm385 = vcmask 1044480
  %v386 = vrot.slane %v250, 3
  %v387 = vrot.slane %v251, 3
  %v388 = vsel %vm385, %v386, %v387
  %v389 = vrot.slane %v252, 3
  %v390 = vsel %vm385, %v387, %v389
  %v391 = vrot.slane %v253, 3
  %v392 = vsel %vm385, %v389, %v391
  %v393 = vrot.slane %v254, 3
  %v394 = vsel %vm385, %v391, %v393
  %v401 = vunpack.c.l.b16 %v231
  %v402 = vpack.c.b16 %v401, %v249
  %vm403 = vsmask.f32 4352
  %v404 = vrot.slane %v262, 3
  %v405 = vrot.slane %v264, 4
  %v406 = vor.u32 %v404, %v405
  %v407 = vrot.slane %v273, 3
  %v408 = vrot.slane %v269, 4
  %v409 = vor.u32 %v407, %v408
  %v410 = vsel %vm403, %v406, %v409
  %v411 = vrot.slane %v281, 3
  %v412 = vrot.slane %v277, 4
  %v413 = vor.u32 %v411, %v412
  %v414 = vsel %vm403, %v409, %v413
  %v415 = vrot.slane %v289, 3
  %v416 = vrot.slane %v285, 4
  %v417 = vor.u32 %v415, %v416
  %v418 = vsel %vm403, %v413, %v417
  %v420 = vshrl.u32 %v402, 16
  %v422 = vrot.slane %v420, 3
  %v423 = vshll.u32 %v402, 16
  %v425 = vrot.slane %v423, 4
  %v426 = vor.u32 %v422, %v425
  %v427 = vsel %vm403, %v417, %v426
  %v433 = vpack.c.b16 %v243, %v242
  %v434 = vpack.c.b16 %v245, %v244
  %v435 = vpack.c.b16 %v247, %v246
  %v436 = vpack.c.b16 %v249, %v248
  %v437 = vpack.c.b16 %v401, %v401
  %v444 = vshrl.u32 %v433, 16
  %v446 = vshll.u32 %v433, 16
  %v448 = vrot.slane %v446, 1
  %v449 = vor.u32 %v444, %v448
  %v451 = vshll.u32 %v434, 16
  %v453 = vrot.slane %v451, 1
  %v454 = vsel %vm260, %v449, %v453
  %v455 = vshrl.u32 %v434, 16
  %v457 = vor.u32 %v455, %v453
  %v459 = vshll.u32 %v435, 16
  %v461 = vrot.slane %v459, 1
  %v462 = vsel %vm260, %v457, %v461
  %v463 = vshrl.u32 %v435, 16
  %v465 = vor.u32 %v463, %v461
  %v467 = vshll.u32 %v436, 16
  %v469 = vrot.slane %v467, 1
  %v470 = vsel %vm260, %v465, %v469
  %v471 = vshrl.u32 %v436, 16
  %v473 = vor.u32 %v471, %v469
  %v475 = vshll.u32 %v437, 16
  %v477 = vrot.slane %v475, 1
  %v478 = vsel %vm260, %v473, %v477
  %v479 = vshrl.u32 %v437, 16
  %v481 = vor.u32 %v479, %v477
  %v487 = vrot.slane %v433, 1
  %v488 = vrot.slane %v434, 1
  %v489 = vsel %vm305, %v487, %v488
  %v490 = vrot.slane %v435, 1
  %v491 = vsel %vm305, %v488, %v490
  %v492 = vrot.slane %v436, 1
  %v493 = vsel %vm305, %v490, %v492
  %v494 = vrot.slane %v437, 1
  %v495 = vsel %vm305, %v492, %v494
  %v501 = vrot.slane %v444, 1
  %v502 = vrot.slane %v446, 2
  %v503 = vor.u32 %v501, %v502
  %v504 = vrot.slane %v455, 1
  %v505 = vrot.slane %v451, 2
  %v506 = vor.u32 %v504, %v505
  %v507 = vsel %vm320, %v503, %v506
  %v508 = vrot.slane %v463, 1
  %v509 = vrot.slane %v459, 2
  %v510 = vor.u32 %v508, %v509
  %v511 = vsel %vm320, %v506, %v510
  %v512 = vrot.slane %v471, 1
  %v513 = vrot.slane %v467, 2
  %v514 = vor.u32 %v512, %v513
  %v515 = vsel %vm320, %v510, %v514
  %v516 = vrot.slane %v479, 1
  %v517 = vrot.slane %v475, 2
  %v518 = vor.u32 %v516, %v517
  %v519 = vsel %vm320, %v514, %v518
  %v525 = vrot.slane %v433, 2
  %v526 = vrot.slane %v434, 2
  %v527 = vsel %vm345, %v525, %v526
  %v528 = vrot.slane %v435, 2
  %v529 = vsel %vm345, %v526, %v528
  %v530 = vrot.slane %v436, 2
  %v531 = vsel %vm345, %v528, %v530
  %v532 = vrot.slane %v437, 2
  %v533 = vsel %vm345, %v530, %v532
  %v539 = vrot.slane %v444, 2
  %v540 = vrot.slane %v446, 3
  %v541 = vor.u32 %v539, %v540
  %v542 = vrot.slane %v455, 2
  %v543 = vrot.slane %v451, 3
  %v544 = vor.u32 %v542, %v543
  %v545 = vsel %vm360, %v541, %v544
  %v546 = vrot.slane %v463, 2
  %v547 = vrot.slane %v459, 3
  %v548 = vor.u32 %v546, %v547
  %v549 = vsel %vm360, %v544, %v548
  %v550 = vrot.slane %v471, 2
  %v551 = vrot.slane %v467, 3
  %v552 = vor.u32 %v550, %v551
  %v553 = vsel %vm360, %v548, %v552
  %v554 = vrot.slane %v479, 2
  %v555 = vrot.slane %v475, 3
  %v556 = vor.u32 %v554, %v555
  %v557 = vsel %vm360, %v552, %v556
  %v563 = vrot.slane %v433, 3
  %v564 = vrot.slane %v434, 3
  %v565 = vsel %vm385, %v563, %v564
  %v566 = vrot.slane %v435, 3
  %v567 = vsel %vm385, %v564, %v566
  %v568 = vrot.slane %v436, 3
  %v569 = vsel %vm385, %v566, %v568
  %v570 = vrot.slane %v437, 3
  %v571 = vsel %vm385, %v568, %v570
  %v577 = vld [vmem:[%s2] sm:$0xf]
  %v578 = vld [vmem:[%s2 + $0x4] sm:$0xf]
  %v579 = vld [vmem:[%s2 + $0x8] sm:$0xf]
  %v580 = vld [vmem:[%s2 + $0xc] sm:$0xf]
  %v581 = vld [vmem:[%s2 + $0x10] sm:$0xf]
  %v582 = vld [vmem:[%s2 + $0x14] sm:$0xf]
  %v583 = vld [vmem:[%s2 + $0x18] sm:$0xf]
  %v584 = vld [vmem:[%s2 + $0x1c] sm:$0xf]
  %v585 = vld [vmem:[%s2 + $0x20] sm:$0xf]
  %v586 = vld [vmem:[%s2 + $0x24] sm:$0xf]
  %v587 = vld [vmem:[%s2 + $0x28] sm:$0xf]
  %v588 = vld [vmem:[%s2 + $0x2c] sm:$0xf]
  %v589 = vld [vmem:[%s2 + $0x30] sm:$0xf]
  %v590 = vld [vmem:[%s2 + $0x34] sm:$0xf]
  %v591 = vld [vmem:[%s2 + $0x38] sm:$0xf]
  %v592 = vld [vmem:[%s2 + $0x3c] sm:$0xf]
  %v593 = vld [vmem:[%s2 + $0x40] sm:$0xf]
  %v594 = vld [vmem:[%s2 + $0x44] sm:$0xf]
  %v595 = vld [vmem:[%s2 + $0x48] sm:$0xf]
  %v596 = vld [vmem:[%s2 + $0x4c] sm:$0xf]
  %v597 = vld [vmem:[%s2 + $0x50] sm:$0xf]
  %v598 = vld [vmem:[%s2 + $0x54] sm:$0xf]
  %v599 = vld [vmem:[%s2 + $0x58] sm:$0xf]
  %v600 = vld [vmem:[%s2 + $0x5c] sm:$0xf]
  %v601 = vld [vmem:[%s2 + $0x60] sm:$0xf]
  %v602 = vld [vmem:[%s2 + $0x64] sm:$0xf]
  %v603 = vld [vmem:[%s2 + $0x68] sm:$0xf]
  %v604 = vld [vmem:[%s2 + $0x6c] sm:$0xf]
  %v605 = vld [vmem:[%s2 + $0x70] sm:$0xf]
  %v606 = vld [vmem:[%s2 + $0x74] sm:$0xf]
  %v607 = vld [vmem:[%s2 + $0x78] sm:$0xf]
  %v608 = vld [vmem:[%s2 + $0x7c] sm:$0xf]
  %v609 = vld [vmem:[%s2 + $0x80] sm:$0xf]
  %v610 = vld [vmem:[%s2 + $0x84] sm:$0xf]
  %v611 = vld [vmem:[%s2 + $0x88] sm:$0xf]
  %v612 = vld [vmem:[%s2 + $0x8c] sm:$0xf]
  %v613 = vld [vmem:[%s2 + $0x90] sm:$0xf]
  %v614 = vld [vmem:[%s2 + $0x94] sm:$0xf]
  %v615 = vld [vmem:[%s2 + $0x98] sm:$0xf]
  %v616 = vld [vmem:[%s2 + $0x9c] sm:$0xf]
  %v617 = vld [vmem:[%s2 + $0xa0] sm:$0xf]
  %v618 = vld [vmem:[%s2 + $0xa4] sm:$0xf]
  %v619 = vld [vmem:[%s2 + $0xa8] sm:$0xf]
  %v620 = vld [vmem:[%s2 + $0xac] sm:$0xf]
  %v621 = vld [vmem:[%s2 + $0xb0] sm:$0xf]
  %v622 = vld [vmem:[%s2 + $0xb4] sm:$0xf]
  %v623 = vld [vmem:[%s2 + $0xb8] sm:$0xf]
  %v624 = vld [vmem:[%s2 + $0xbc] sm:$0xf]
  %v625 = vld [vmem:[%s2 + $0xc0] sm:$0xf]
  %v626 = vld [vmem:[%s2 + $0xc4] sm:$0xf]
  %v627 = vld [vmem:[%s2 + $0xc8] sm:$0xf]
  %v628 = vld [vmem:[%s2 + $0xcc] sm:$0xf]
  %v629 = vld [vmem:[%s2 + $0xd0] sm:$0xf]
  %v630 = vld [vmem:[%s2 + $0xd4] sm:$0xf]
  %v631 = vld [vmem:[%s2 + $0xd8] sm:$0xf]
  %v632 = vld [vmem:[%s2 + $0xdc] sm:$0xf]
  %v633 = vld [vmem:[%s2 + $0xe0] sm:$0xf]
  %v634 = vld [vmem:[%s2 + $0xe4] sm:$0xf]
  %v635 = vld [vmem:[%s2 + $0xe8] sm:$0xf]
  %v636 = vld [vmem:[%s2 + $0xec] sm:$0xf]
  %v637 = vld [vmem:[%s2 + $0xf0] sm:$0xf]
  %v638 = vld [vmem:[%s2 + $0xf4] sm:$0xf]
  %v639 = vld [vmem:[%s2 + $0xf8] sm:$0xf]
  %v640 = vld [vmem:[%s2 + $0xfc] sm:$0xf]
  %v641 = vld [vmem:[%s2 + $0x100] sm:$0xf]
  %v642 = vld [vmem:[%s2 + $0x104] sm:$0xf]
  %v643 = vld [vmem:[%s2 + $0x108] sm:$0xf]
  %v644 = vld [vmem:[%s2 + $0x10c] sm:$0xf]
  %v645 = vld [vmem:[%s2 + $0x110] sm:$0xf]
  %v646 = vld [vmem:[%s2 + $0x114] sm:$0xf]
  %v647 = vld [vmem:[%s2 + $0x118] sm:$0xf]
  %v648 = vld [vmem:[%s2 + $0x11c] sm:$0xf]
  %v649 = vld [vmem:[%s2 + $0x120] sm:$0xf]
  %v650 = vld [vmem:[%s2 + $0x124] sm:$0xf]
  %v651 = vld [vmem:[%s2 + $0x128] sm:$0xf]
  %v652 = vld [vmem:[%s2 + $0x12c] sm:$0xf]
  %v653 = vld [vmem:[%s2 + $0x130] sm:$0xf]
  %v654 = vld [vmem:[%s2 + $0x134] sm:$0xf]
  %v655 = vld [vmem:[%s2 + $0x138] sm:$0xf]
  %v656 = vld [vmem:[%s2 + $0x13c] sm:$0xf]
  %v657 = vld [vmem:[%s2 + $0x140] sm:$0xf]
  %v658 = vld [vmem:[%s2 + $0x144] sm:$0xf]
  %v659 = vld [vmem:[%s2 + $0x148] sm:$0xf]
  %v660 = vld [vmem:[%s2 + $0x14c] sm:$0xf]
  %v661 = vld [vmem:[%s2 + $0x150] sm:$0xf]
  %v662 = vld [vmem:[%s2 + $0x154] sm:$0xf]
  %v663 = vld [vmem:[%s2 + $0x158] sm:$0xf]
  %v664 = vld [vmem:[%s2 + $0x15c] sm:$0xf]
  %v665 = vld [vmem:[%s2 + $0x160] sm:$0xf]
  %v666 = vld [vmem:[%s2 + $0x164] sm:$0xf]
  %v667 = vld [vmem:[%s2 + $0x168] sm:$0xf]
  %v668 = vld [vmem:[%s2 + $0x16c] sm:$0xf]
  %v669 = vld [vmem:[%s2 + $0x170] sm:$0xf]
  %v670 = vld [vmem:[%s2 + $0x174] sm:$0xf]
  %v671 = vld [vmem:[%s2 + $0x178] sm:$0xf]
  %v672 = vld [vmem:[%s2 + $0x17c] sm:$0xf]
  %v673 = vld [vmem:[%s2 + $0x180] sm:$0xf]
  %v674 = vld [vmem:[%s2 + $0x184] sm:$0xf]
  %v675 = vld [vmem:[%s2 + $0x188] sm:$0xf]
  %v676 = vld [vmem:[%s2 + $0x18c] sm:$0xf]
  %v677 = vld [vmem:[%s2 + $0x190] sm:$0xf]
  %v678 = vld [vmem:[%s2 + $0x194] sm:$0xf]
  %v679 = vld [vmem:[%s2 + $0x198] sm:$0xf]
  %v680 = vld [vmem:[%s2 + $0x19c] sm:$0xf]
  %v681 = vld [vmem:[%s2 + $0x1a0] sm:$0xf]
  %v682 = vld [vmem:[%s2 + $0x1a4] sm:$0xf]
  %v683 = vld [vmem:[%s2 + $0x1a8] sm:$0xf]
  %v684 = vld [vmem:[%s2 + $0x1ac] sm:$0xf]
  %v685 = vld [vmem:[%s2 + $0x1b0] sm:$0xf]
  %v686 = vld [vmem:[%s2 + $0x1b4] sm:$0xf]
  %v687 = vld [vmem:[%s2 + $0x1b8] sm:$0xf]
  %v688 = vld [vmem:[%s2 + $0x1bc] sm:$0xf]
  %v689 = vld [vmem:[%s2 + $0x1c0] sm:$0xf]
  %v690 = vld [vmem:[%s2 + $0x1c4] sm:$0xf]
  %v691 = vld [vmem:[%s2 + $0x1c8] sm:$0xf]
  %v692 = vld [vmem:[%s2 + $0x1cc] sm:$0xf]
  %v693 = vld [vmem:[%s2 + $0x1d0] sm:$0xf]
  %v694 = vld [vmem:[%s2 + $0x1d4] sm:$0xf]
  %v695 = vld [vmem:[%s2 + $0x1d8] sm:$0xf]
  %v696 = vld [vmem:[%s2 + $0x1dc] sm:$0xf]
  %v697 = vld [vmem:[%s2 + $0x1e0] sm:$0xf]
  %v698 = vld [vmem:[%s2 + $0x1e4] sm:$0xf]
  %v699 = vld [vmem:[%s2 + $0x1e8] sm:$0xf]
  %v700 = vld [vmem:[%s2 + $0x1ec] sm:$0xf]
  %v701 = vld [vmem:[%s2 + $0x1f0] sm:$0xf]
  %v702 = vld [vmem:[%s2 + $0x1f4] sm:$0xf]
  %v703 = vld [vmem:[%s2 + $0x1f8] sm:$0xf]
  %v704 = vld [vmem:[%s2 + $0x1fc] sm:$0xf]
  %v705 = vld [vmem:[%s2 + $0x200] sm:$0xf]
  %v706 = vld [vmem:[%s2 + $0x204] sm:$0xf]
  %v707 = vld [vmem:[%s2 + $0x208] sm:$0xf]
  %v708 = vld [vmem:[%s2 + $0x20c] sm:$0xf]
  %v709 = vld [vmem:[%s2 + $0x210] sm:$0xf]
  %v710 = vld [vmem:[%s2 + $0x214] sm:$0xf]
  %v711 = vld [vmem:[%s2 + $0x218] sm:$0xf]
  %v712 = vld [vmem:[%s2 + $0x21c] sm:$0xf]
  %v713 = vld [vmem:[%s2 + $0x220] sm:$0xf]
  %v714 = vld [vmem:[%s2 + $0x224] sm:$0xf]
  %v715 = vld [vmem:[%s2 + $0x228] sm:$0xf]
  %v716 = vld [vmem:[%s2 + $0x22c] sm:$0xf]
  %v717 = vld [vmem:[%s2 + $0x230] sm:$0xf]
  %v718 = vld [vmem:[%s2 + $0x234] sm:$0xf]
  %v719 = vld [vmem:[%s2 + $0x238] sm:$0xf]
  %v720 = vld [vmem:[%s2 + $0x23c] sm:$0xf]
  %v721 = vld [vmem:[%s2 + $0x240] sm:$0xf]
  %v722 = vld [vmem:[%s2 + $0x244] sm:$0xf]
  %v723 = vld [vmem:[%s2 + $0x248] sm:$0xf]
  %v724 = vld [vmem:[%s2 + $0x24c] sm:$0xf]
  %v725 = vld [vmem:[%s2 + $0x250] sm:$0xf]
  %v726 = vld [vmem:[%s2 + $0x254] sm:$0xf]
  %v727 = vld [vmem:[%s2 + $0x258] sm:$0xf]
  %v728 = vld [vmem:[%s2 + $0x25c] sm:$0xf]
  %v729 = vld [vmem:[%s2 + $0x260] sm:$0xf]
  %v730 = vld [vmem:[%s2 + $0x264] sm:$0xf]
  %v731 = vld [vmem:[%s2 + $0x268] sm:$0xf]
  %v732 = vld [vmem:[%s2 + $0x26c] sm:$0xf]
  %v733 = vld [vmem:[%s2 + $0x270] sm:$0xf]
  %v734 = vld [vmem:[%s2 + $0x274] sm:$0xf]
  %v735 = vld [vmem:[%s2 + $0x278] sm:$0xf]
  %v736 = vld [vmem:[%s2 + $0x27c] sm:$0xf]
  %v737 = vld [vmem:[%s2 + $0x280] sm:$0xf]
  %v738 = vld [vmem:[%s2 + $0x284] sm:$0xf]
  %v739 = vld [vmem:[%s2 + $0x288] sm:$0xf]
  %v740 = vld [vmem:[%s2 + $0x28c] sm:$0xf]
  %v741 = vld [vmem:[%s2 + $0x290] sm:$0xf]
  %v742 = vld [vmem:[%s2 + $0x294] sm:$0xf]
  %v743 = vld [vmem:[%s2 + $0x298] sm:$0xf]
  %v744 = vld [vmem:[%s2 + $0x29c] sm:$0xf]
  %v745 = vld [vmem:[%s2 + $0x2a0] sm:$0xf]
  %v746 = vld [vmem:[%s2 + $0x2a4] sm:$0xf]
  %v747 = vld [vmem:[%s2 + $0x2a8] sm:$0xf]
  %v748 = vld [vmem:[%s2 + $0x2ac] sm:$0xf]
  %v749 = vld [vmem:[%s2 + $0x2b0] sm:$0xf]
  %v750 = vld [vmem:[%s2 + $0x2b4] sm:$0xf]
  %v751 = vld [vmem:[%s2 + $0x2b8] sm:$0xf]
  %v752 = vld [vmem:[%s2 + $0x2bc] sm:$0xf]
  %v753 = vld [vmem:[%s2 + $0x2c0] sm:$0xf]
  %v754 = vld [vmem:[%s2 + $0x2c4] sm:$0xf]
  %v755 = vld [vmem:[%s2 + $0x2c8] sm:$0xf]
  %v756 = vld [vmem:[%s2 + $0x2cc] sm:$0xf]
  %v757 = vld [vmem:[%s2 + $0x2d0] sm:$0xf]
  %v758 = vld [vmem:[%s2 + $0x2d4] sm:$0xf]
  %v759 = vld [vmem:[%s2 + $0x2d8] sm:$0xf]
  %v760 = vld [vmem:[%s2 + $0x2dc] sm:$0xf]
  %v761 = vld [vmem:[%s2 + $0x2e0] sm:$0xf]
  %v762 = vld [vmem:[%s2 + $0x2e4] sm:$0xf]
  %v763 = vld [vmem:[%s2 + $0x2e8] sm:$0xf]
  %v764 = vld [vmem:[%s2 + $0x2ec] sm:$0xf]
  %v765 = vld [vmem:[%s2 + $0x2f0] sm:$0xf]
  %v766 = vld [vmem:[%s2 + $0x2f4] sm:$0xf]
  %v767 = vld [vmem:[%s2 + $0x2f8] sm:$0xf]
  %v768 = vld [vmem:[%s2 + $0x2fc] sm:$0xf]
  %v769 = vld [vmem:[%s2 + $0x300] sm:$0xf]
  %v770 = vld [vmem:[%s2 + $0x304] sm:$0xf]
  %v771 = vld [vmem:[%s2 + $0x308] sm:$0xf]
  %v772 = vld [vmem:[%s2 + $0x30c] sm:$0xf]
  %v773 = vld [vmem:[%s2 + $0x310] sm:$0xf]
  %v774 = vld [vmem:[%s2 + $0x314] sm:$0xf]
  %v775 = vld [vmem:[%s2 + $0x318] sm:$0xf]
  %v776 = vld [vmem:[%s2 + $0x31c] sm:$0xf]
  %v777 = vld [vmem:[%s2 + $0x320] sm:$0xf]
  %v778 = vld [vmem:[%s2 + $0x324] sm:$0xf]
  %v779 = vld [vmem:[%s2 + $0x328] sm:$0xf]
  %v780 = vld [vmem:[%s2 + $0x32c] sm:$0xf]
  %v781 = vld [vmem:[%s2 + $0x330] sm:$0xf]
  %v782 = vld [vmem:[%s2 + $0x334] sm:$0xf]
  %v783 = vld [vmem:[%s2 + $0x338] sm:$0xf]
  %v784 = vld [vmem:[%s2 + $0x33c] sm:$0xf]
  %v785 = vld [vmem:[%s2 + $0x340] sm:$0xf]
  %v786 = vld [vmem:[%s2 + $0x344] sm:$0xf]
  %v787 = vld [vmem:[%s2 + $0x348] sm:$0xf]
  %v788 = vld [vmem:[%s2 + $0x34c] sm:$0xf]
  %v789 = vld [vmem:[%s2 + $0x350] sm:$0xf]
  %v790 = vld [vmem:[%s2 + $0x354] sm:$0xf]
  %v791 = vld [vmem:[%s2 + $0x358] sm:$0xf]
  %v792 = vld [vmem:[%s2 + $0x35c] sm:$0xf]
  %v793 = vld [vmem:[%s2 + $0x360] sm:$0xf]
  %v794 = vld [vmem:[%s2 + $0x364] sm:$0xf]
  %v795 = vld [vmem:[%s2 + $0x368] sm:$0xf]
  %v796 = vld [vmem:[%s2 + $0x36c] sm:$0xf]
  %v797 = vld [vmem:[%s2 + $0x370] sm:$0xf]
  %v798 = vld [vmem:[%s2 + $0x374] sm:$0xf]
  %v799 = vld [vmem:[%s2 + $0x378] sm:$0xf]
  %v800 = vld [vmem:[%s2 + $0x37c] sm:$0xf]
  %v801 = vld [vmem:[%s2 + $0x380] sm:$0xf]
  %v802 = vld [vmem:[%s2 + $0x384] sm:$0xf]
  %v803 = vld [vmem:[%s2 + $0x388] sm:$0xf]
  %v804 = vld [vmem:[%s2 + $0x38c] sm:$0xf]
  %v805 = vld [vmem:[%s2 + $0x390] sm:$0xf]
  %v806 = vld [vmem:[%s2 + $0x394] sm:$0xf]
  %v807 = vld [vmem:[%s2 + $0x398] sm:$0xf]
  %v808 = vld [vmem:[%s2 + $0x39c] sm:$0xf]
  %v809 = vld [vmem:[%s2 + $0x3a0] sm:$0xf]
  %v810 = vld [vmem:[%s2 + $0x3a4] sm:$0xf]
  %v811 = vld [vmem:[%s2 + $0x3a8] sm:$0xf]
  %v812 = vld [vmem:[%s2 + $0x3ac] sm:$0xf]
  %v813 = vld [vmem:[%s2 + $0x3b0] sm:$0xf]
  %v814 = vld [vmem:[%s2 + $0x3b4] sm:$0xf]
  %v815 = vld [vmem:[%s2 + $0x3b8] sm:$0xf]
  %v816 = vld [vmem:[%s2 + $0x3bc] sm:$0xf]
  %v817 = vld [vmem:[%s3] sm:$0x1]
  %v819 = vperm.slane %v817, 0
  %v1061 = vunpack.c.l.b16 %v577
  %v1062 = vunpack.c.l.b16 %v578
  %v1063 = vunpack.c.l.b16 %v579
  %v1064 = vunpack.c.l.b16 %v580
  %v1065 = vunpack.c.l.b16 %v581
  %v1066 = vunpack.c.l.b16 %v582
  %v1067 = vunpack.c.l.b16 %v583
  %v1068 = vunpack.c.l.b16 %v584
  %v1069 = vunpack.c.l.b16 %v585
  %v1070 = vunpack.c.l.b16 %v586
  %v1071 = vunpack.c.l.b16 %v587
  %v1072 = vunpack.c.l.b16 %v588
  %v1073 = vunpack.c.l.b16 %v589
  %v1074 = vunpack.c.l.b16 %v590
  %v1075 = vunpack.c.l.b16 %v591
  %v1076 = vunpack.c.l.b16 %v592
  %v1077 = vunpack.c.l.b16 %v593
  %v1078 = vunpack.c.l.b16 %v594
  %v1079 = vunpack.c.l.b16 %v595
  %v1080 = vunpack.c.l.b16 %v596
  %v1081 = vunpack.c.l.b16 %v597
  %v1082 = vunpack.c.l.b16 %v598
  %v1083 = vunpack.c.l.b16 %v599
  %v1084 = vunpack.c.l.b16 %v600
  %v1085 = vunpack.c.l.b16 %v601
  %v1086 = vunpack.c.l.b16 %v602
  %v1087 = vunpack.c.l.b16 %v603
  %v1088 = vunpack.c.l.b16 %v604
  %v1089 = vunpack.c.l.b16 %v605
  %v1090 = vunpack.c.l.b16 %v606
  %v1091 = vunpack.c.l.b16 %v607
  %v1092 = vunpack.c.l.b16 %v608
  %v1093 = vunpack.c.l.b16 %v609
  %v1094 = vunpack.c.l.b16 %v610
  %v1095 = vunpack.c.l.b16 %v611
  %v1096 = vunpack.c.l.b16 %v612
  %v1097 = vunpack.c.l.b16 %v613
  %v1098 = vunpack.c.l.b16 %v614
  %v1099 = vunpack.c.l.b16 %v615
  %v1100 = vunpack.c.l.b16 %v616
  %v1101 = vunpack.c.l.b16 %v617
  %v1102 = vunpack.c.l.b16 %v618
  %v1103 = vunpack.c.l.b16 %v619
  %v1104 = vunpack.c.l.b16 %v620
  %v1105 = vunpack.c.l.b16 %v621
  %v1106 = vunpack.c.l.b16 %v622
  %v1107 = vunpack.c.l.b16 %v623
  %v1108 = vunpack.c.l.b16 %v624
  %v1109 = vunpack.c.l.b16 %v625
  %v1110 = vunpack.c.l.b16 %v626
  %v1111 = vunpack.c.l.b16 %v627
  %v1112 = vunpack.c.l.b16 %v628
  %v1113 = vunpack.c.l.b16 %v629
  %v1114 = vunpack.c.l.b16 %v630
  %v1115 = vunpack.c.l.b16 %v631
  %v1116 = vunpack.c.l.b16 %v632
  %v1117 = vunpack.c.l.b16 %v633
  %v1118 = vunpack.c.l.b16 %v634
  %v1119 = vunpack.c.l.b16 %v635
  %v1120 = vunpack.c.l.b16 %v636
  %v1121 = vunpack.c.l.b16 %v637
  %v1122 = vunpack.c.l.b16 %v638
  %v1123 = vunpack.c.l.b16 %v639
  %v1124 = vunpack.c.l.b16 %v640
  %v1125 = vunpack.c.l.b16 %v641
  %v1126 = vunpack.c.l.b16 %v642
  %v1127 = vunpack.c.l.b16 %v643
  %v1128 = vunpack.c.l.b16 %v644
  %v1129 = vunpack.c.l.b16 %v645
  %v1130 = vunpack.c.l.b16 %v646
  %v1131 = vunpack.c.l.b16 %v647
  %v1132 = vunpack.c.l.b16 %v648
  %v1133 = vunpack.c.l.b16 %v649
  %v1134 = vunpack.c.l.b16 %v650
  %v1135 = vunpack.c.l.b16 %v651
  %v1136 = vunpack.c.l.b16 %v652
  %v1137 = vunpack.c.l.b16 %v653
  %v1138 = vunpack.c.l.b16 %v654
  %v1139 = vunpack.c.l.b16 %v655
  %v1140 = vunpack.c.l.b16 %v656
  %v1141 = vunpack.c.l.b16 %v657
  %v1142 = vunpack.c.l.b16 %v658
  %v1143 = vunpack.c.l.b16 %v659
  %v1144 = vunpack.c.l.b16 %v660
  %v1145 = vunpack.c.l.b16 %v661
  %v1146 = vunpack.c.l.b16 %v662
  %v1147 = vunpack.c.l.b16 %v663
  %v1148 = vunpack.c.l.b16 %v664
  %v1149 = vunpack.c.l.b16 %v665
  %v1150 = vunpack.c.l.b16 %v666
  %v1151 = vunpack.c.l.b16 %v667
  %v1152 = vunpack.c.l.b16 %v668
  %v1153 = vunpack.c.l.b16 %v669
  %v1154 = vunpack.c.l.b16 %v670
  %v1155 = vunpack.c.l.b16 %v671
  %v1156 = vunpack.c.l.b16 %v672
  %v1157 = vunpack.c.l.b16 %v673
  %v1158 = vunpack.c.l.b16 %v674
  %v1159 = vunpack.c.l.b16 %v675
  %v1160 = vunpack.c.l.b16 %v676
  %v1161 = vunpack.c.l.b16 %v677
  %v1162 = vunpack.c.l.b16 %v678
  %v1163 = vunpack.c.l.b16 %v679
  %v1164 = vunpack.c.l.b16 %v680
  %v1165 = vunpack.c.l.b16 %v681
  %v1166 = vunpack.c.l.b16 %v682
  %v1167 = vunpack.c.l.b16 %v683
  %v1168 = vunpack.c.l.b16 %v684
  %v1169 = vunpack.c.l.b16 %v685
  %v1170 = vunpack.c.l.b16 %v686
  %v1171 = vunpack.c.l.b16 %v687
  %v1172 = vunpack.c.l.b16 %v688
  %v1173 = vunpack.c.l.b16 %v689
  %v1174 = vunpack.c.l.b16 %v690
  %v1175 = vunpack.c.l.b16 %v691
  %v1176 = vunpack.c.l.b16 %v692
  %v1177 = vunpack.c.l.b16 %v693
  %v1178 = vunpack.c.l.b16 %v694
  %v1179 = vunpack.c.l.b16 %v695
  %v1180 = vunpack.c.l.b16 %v696
  %v1181 = vunpack.c.l.b16 %v697
  %v1182 = vunpack.c.l.b16 %v698
  %v1183 = vunpack.c.l.b16 %v699
  %v1184 = vunpack.c.l.b16 %v700
  %v1185 = vunpack.c.l.b16 %v701
  %v1186 = vunpack.c.l.b16 %v702
  %v1187 = vunpack.c.l.b16 %v703
  %v1188 = vunpack.c.l.b16 %v704
  %v1189 = vunpack.c.l.b16 %v705
  %v1190 = vunpack.c.l.b16 %v706
  %v1191 = vunpack.c.l.b16 %v707
  %v1192 = vunpack.c.l.b16 %v708
  %v1193 = vunpack.c.l.b16 %v709
  %v1194 = vunpack.c.l.b16 %v710
  %v1195 = vunpack.c.l.b16 %v711
  %v1196 = vunpack.c.l.b16 %v712
  %v1197 = vunpack.c.l.b16 %v713
  %v1198 = vunpack.c.l.b16 %v714
  %v1199 = vunpack.c.l.b16 %v715
  %v1200 = vunpack.c.l.b16 %v716
  %v1201 = vunpack.c.l.b16 %v717
  %v1202 = vunpack.c.l.b16 %v718
  %v1203 = vunpack.c.l.b16 %v719
  %v1204 = vunpack.c.l.b16 %v720
  %v1205 = vunpack.c.l.b16 %v721
  %v1206 = vunpack.c.l.b16 %v722
  %v1207 = vunpack.c.l.b16 %v723
  %v1208 = vunpack.c.l.b16 %v724
  %v1209 = vunpack.c.l.b16 %v725
  %v1210 = vunpack.c.l.b16 %v726
  %v1211 = vunpack.c.l.b16 %v727
  %v1212 = vunpack.c.l.b16 %v728
  %v1213 = vunpack.c.l.b16 %v729
  %v1214 = vunpack.c.l.b16 %v730
  %v1215 = vunpack.c.l.b16 %v731
  %v1216 = vunpack.c.l.b16 %v732
  %v1217 = vunpack.c.l.b16 %v733
  %v1218 = vunpack.c.l.b16 %v734
  %v1219 = vunpack.c.l.b16 %v735
  %v1220 = vunpack.c.l.b16 %v736
  %v1221 = vunpack.c.l.b16 %v737
  %v1222 = vunpack.c.l.b16 %v738
  %v1223 = vunpack.c.l.b16 %v739
  %v1224 = vunpack.c.l.b16 %v740
  %v1225 = vunpack.c.l.b16 %v741
  %v1226 = vunpack.c.l.b16 %v742
  %v1227 = vunpack.c.l.b16 %v743
  %v1228 = vunpack.c.l.b16 %v744
  %v1229 = vunpack.c.l.b16 %v745
  %v1230 = vunpack.c.l.b16 %v746
  %v1231 = vunpack.c.l.b16 %v747
  %v1232 = vunpack.c.l.b16 %v748
  %v1233 = vunpack.c.l.b16 %v749
  %v1234 = vunpack.c.l.b16 %v750
  %v1235 = vunpack.c.l.b16 %v751
  %v1236 = vunpack.c.l.b16 %v752
  %v1237 = vunpack.c.l.b16 %v753
  %v1238 = vunpack.c.l.b16 %v754
  %v1239 = vunpack.c.l.b16 %v755
  %v1240 = vunpack.c.l.b16 %v756
  %v1241 = vunpack.c.l.b16 %v757
  %v1242 = vunpack.c.l.b16 %v758
  %v1243 = vunpack.c.l.b16 %v759
  %v1244 = vunpack.c.l.b16 %v760
  %v1245 = vunpack.c.l.b16 %v761
  %v1246 = vunpack.c.l.b16 %v762
  %v1247 = vunpack.c.l.b16 %v763
  %v1248 = vunpack.c.l.b16 %v764
  %v1249 = vunpack.c.l.b16 %v765
  %v1250 = vunpack.c.l.b16 %v766
  %v1251 = vunpack.c.l.b16 %v767
  %v1252 = vunpack.c.l.b16 %v768
  %v1253 = vunpack.c.l.b16 %v769
  %v1254 = vunpack.c.l.b16 %v770
  %v1255 = vunpack.c.l.b16 %v771
  %v1256 = vunpack.c.l.b16 %v772
  %v1257 = vunpack.c.l.b16 %v773
  %v1258 = vunpack.c.l.b16 %v774
  %v1259 = vunpack.c.l.b16 %v775
  %v1260 = vunpack.c.l.b16 %v776
  %v1261 = vunpack.c.l.b16 %v777
  %v1262 = vunpack.c.l.b16 %v778
  %v1263 = vunpack.c.l.b16 %v779
  %v1264 = vunpack.c.l.b16 %v780
  %v1265 = vunpack.c.l.b16 %v781
  %v1266 = vunpack.c.l.b16 %v782
  %v1267 = vunpack.c.l.b16 %v783
  %v1268 = vunpack.c.l.b16 %v784
  %v1269 = vunpack.c.l.b16 %v785
  %v1270 = vunpack.c.l.b16 %v786
  %v1271 = vunpack.c.l.b16 %v787
  %v1272 = vunpack.c.l.b16 %v788
  %v1273 = vunpack.c.l.b16 %v789
  %v1274 = vunpack.c.l.b16 %v790
  %v1275 = vunpack.c.l.b16 %v791
  %v1276 = vunpack.c.l.b16 %v792
  %v1277 = vunpack.c.l.b16 %v793
  %v1278 = vunpack.c.l.b16 %v794
  %v1279 = vunpack.c.l.b16 %v795
  %v1280 = vunpack.c.l.b16 %v796
  %v1281 = vunpack.c.l.b16 %v797
  %v1282 = vunpack.c.l.b16 %v798
  %v1283 = vunpack.c.l.b16 %v799
  %v1284 = vunpack.c.l.b16 %v800
  %v1285 = vunpack.c.l.b16 %v801
  %v1286 = vunpack.c.l.b16 %v802
  %v1287 = vunpack.c.l.b16 %v803
  %v1288 = vunpack.c.l.b16 %v804
  %v1289 = vunpack.c.l.b16 %v805
  %v1290 = vunpack.c.l.b16 %v806
  %v1291 = vunpack.c.l.b16 %v807
  %v1292 = vunpack.c.l.b16 %v808
  %v1293 = vunpack.c.l.b16 %v809
  %v1294 = vunpack.c.l.b16 %v810
  %v1295 = vunpack.c.l.b16 %v811
  %v1296 = vunpack.c.l.b16 %v812
  %v1297 = vunpack.c.l.b16 %v813
  %v1298 = vunpack.c.l.b16 %v814
  %v1299 = vunpack.c.l.b16 %v815
  %v1300 = vunpack.c.l.b16 %v816
  %v1301 = vpack.c.b16 %v1062, %v1061
  %v1302 = vpack.c.b16 %v1064, %v1063
  %v1303 = vpack.c.b16 %v1066, %v1065
  %v1304 = vpack.c.b16 %v1068, %v1067
  %v1305 = vpack.c.b16 %v1070, %v1069
  %v1306 = vpack.c.b16 %v1072, %v1071
  %v1307 = vpack.c.b16 %v1074, %v1073
  %v1308 = vpack.c.b16 %v1076, %v1075
  %v1309 = vpack.c.b16 %v1078, %v1077
  %v1310 = vpack.c.b16 %v1080, %v1079
  %v1311 = vpack.c.b16 %v1082, %v1081
  %v1312 = vpack.c.b16 %v1084, %v1083
  %v1313 = vpack.c.b16 %v1086, %v1085
  %v1314 = vpack.c.b16 %v1088, %v1087
  %v1315 = vpack.c.b16 %v1090, %v1089
  %v1316 = vpack.c.b16 %v1092, %v1091
  %v1317 = vpack.c.b16 %v1094, %v1093
  %v1318 = vpack.c.b16 %v1096, %v1095
  %v1319 = vpack.c.b16 %v1098, %v1097
  %v1320 = vpack.c.b16 %v1100, %v1099
  %v1321 = vpack.c.b16 %v1102, %v1101
  %v1322 = vpack.c.b16 %v1104, %v1103
  %v1323 = vpack.c.b16 %v1106, %v1105
  %v1324 = vpack.c.b16 %v1108, %v1107
  %v1325 = vpack.c.b16 %v1110, %v1109
  %v1326 = vpack.c.b16 %v1112, %v1111
  %v1327 = vpack.c.b16 %v1114, %v1113
  %v1328 = vpack.c.b16 %v1116, %v1115
  %v1329 = vpack.c.b16 %v1118, %v1117
  %v1330 = vpack.c.b16 %v1120, %v1119
  %v1331 = vpack.c.b16 %v1122, %v1121
  %v1332 = vpack.c.b16 %v1124, %v1123
  %v1333 = vpack.c.b16 %v1126, %v1125
  %v1334 = vpack.c.b16 %v1128, %v1127
  %v1335 = vpack.c.b16 %v1130, %v1129
  %v1336 = vpack.c.b16 %v1132, %v1131
  %v1337 = vpack.c.b16 %v1134, %v1133
  %v1338 = vpack.c.b16 %v1136, %v1135
  %v1339 = vpack.c.b16 %v1138, %v1137
  %v1340 = vpack.c.b16 %v1140, %v1139
  %v1341 = vpack.c.b16 %v1142, %v1141
  %v1342 = vpack.c.b16 %v1144, %v1143
  %v1343 = vpack.c.b16 %v1146, %v1145
  %v1344 = vpack.c.b16 %v1148, %v1147
  %v1345 = vpack.c.b16 %v1150, %v1149
  %v1346 = vpack.c.b16 %v1152, %v1151
  %v1347 = vpack.c.b16 %v1154, %v1153
  %v1348 = vpack.c.b16 %v1156, %v1155
  %v1349 = vpack.c.b16 %v1158, %v1157
  %v1350 = vpack.c.b16 %v1160, %v1159
  %v1351 = vpack.c.b16 %v1162, %v1161
  %v1352 = vpack.c.b16 %v1164, %v1163
  %v1353 = vpack.c.b16 %v1166, %v1165
  %v1354 = vpack.c.b16 %v1168, %v1167
  %v1355 = vpack.c.b16 %v1170, %v1169
  %v1356 = vpack.c.b16 %v1172, %v1171
  %v1357 = vpack.c.b16 %v1174, %v1173
  %v1358 = vpack.c.b16 %v1176, %v1175
  %v1359 = vpack.c.b16 %v1178, %v1177
  %v1360 = vpack.c.b16 %v1180, %v1179
  %v1361 = vpack.c.b16 %v1182, %v1181
  %v1362 = vpack.c.b16 %v1184, %v1183
  %v1363 = vpack.c.b16 %v1186, %v1185
  %v1364 = vpack.c.b16 %v1188, %v1187
  %v1365 = vpack.c.b16 %v1190, %v1189
  %v1366 = vpack.c.b16 %v1192, %v1191
  %v1367 = vpack.c.b16 %v1194, %v1193
  %v1368 = vpack.c.b16 %v1196, %v1195
  %v1369 = vpack.c.b16 %v1198, %v1197
  %v1370 = vpack.c.b16 %v1200, %v1199
  %v1371 = vpack.c.b16 %v1202, %v1201
  %v1372 = vpack.c.b16 %v1204, %v1203
  %v1373 = vpack.c.b16 %v1206, %v1205
  %v1374 = vpack.c.b16 %v1208, %v1207
  %v1375 = vpack.c.b16 %v1210, %v1209
  %v1376 = vpack.c.b16 %v1212, %v1211
  %v1377 = vpack.c.b16 %v1214, %v1213
  %v1378 = vpack.c.b16 %v1216, %v1215
  %v1379 = vpack.c.b16 %v1218, %v1217
  %v1380 = vpack.c.b16 %v1220, %v1219
  %v1381 = vpack.c.b16 %v1222, %v1221
  %v1382 = vpack.c.b16 %v1224, %v1223
  %v1383 = vpack.c.b16 %v1226, %v1225
  %v1384 = vpack.c.b16 %v1228, %v1227
  %v1385 = vpack.c.b16 %v1230, %v1229
  %v1386 = vpack.c.b16 %v1232, %v1231
  %v1387 = vpack.c.b16 %v1234, %v1233
  %v1388 = vpack.c.b16 %v1236, %v1235
  %v1389 = vpack.c.b16 %v1238, %v1237
  %v1390 = vpack.c.b16 %v1240, %v1239
  %v1391 = vpack.c.b16 %v1242, %v1241
  %v1392 = vpack.c.b16 %v1244, %v1243
  %v1393 = vpack.c.b16 %v1246, %v1245
  %v1394 = vpack.c.b16 %v1248, %v1247
  %v1395 = vpack.c.b16 %v1250, %v1249
  %v1396 = vpack.c.b16 %v1252, %v1251
  %v1397 = vpack.c.b16 %v1254, %v1253
  %v1398 = vpack.c.b16 %v1256, %v1255
  %v1399 = vpack.c.b16 %v1258, %v1257
  %v1400 = vpack.c.b16 %v1260, %v1259
  %v1401 = vpack.c.b16 %v1262, %v1261
  %v1402 = vpack.c.b16 %v1264, %v1263
  %v1403 = vpack.c.b16 %v1266, %v1265
  %v1404 = vpack.c.b16 %v1268, %v1267
  %v1405 = vpack.c.b16 %v1270, %v1269
  %v1406 = vpack.c.b16 %v1272, %v1271
  %v1407 = vpack.c.b16 %v1274, %v1273
  %v1408 = vpack.c.b16 %v1276, %v1275
  %v1409 = vpack.c.b16 %v1278, %v1277
  %v1410 = vpack.c.b16 %v1280, %v1279
  %v1411 = vpack.c.b16 %v1282, %v1281
  %v1412 = vpack.c.b16 %v1284, %v1283
  %v1413 = vpack.c.b16 %v1286, %v1285
  %v1414 = vpack.c.b16 %v1288, %v1287
  %v1415 = vpack.c.b16 %v1290, %v1289
  %v1416 = vpack.c.b16 %v1292, %v1291
  %v1417 = vpack.c.b16 %v1294, %v1293
  %v1418 = vpack.c.b16 %v1296, %v1295
  %v1419 = vpack.c.b16 %v1298, %v1297
  %v1420 = vpack.c.b16 %v1300, %v1299
  %1541 = vmatpush.bf16.msra.mxu0 %v1308
  %1542 = vmatpush.bf16.msra.mxu0 %v1307
  %1543 = vmatpush.bf16.msra.mxu0 %v1306
  %1544 = vmatpush.bf16.msra.mxu0 %v1305
  %1545 = vmatpush.bf16.msra.mxu0 %v1304
  %1546 = vmatpush.bf16.msra.mxu0 %v1303
  %1547 = vmatpush.bf16.msra.mxu0 %v1302
  %1548 = vmatpush.bf16.msra.mxu0 %v1301
  %1549 = vmatmul.bf16.gmra.mxu0 %v250
  %v1550 = vpop.f32.mrf.mxu0
  %v1551 = vadd.f32 %v819, %v1550
  %v1552 = vpop.f32.mrf.mxu0
  %v1553 = vadd.f32 %v819, %v1552
  %1554 = vmatmul.bf16.gmra.mxu0 %v251
  %v1555 = vpop.f32.mrf.mxu0
  %v1556 = vadd.f32 %v819, %v1555
  %v1557 = vpop.f32.mrf.mxu0
  %v1558 = vadd.f32 %v819, %v1557
  %1559 = vmatmul.bf16.gmra.mxu0 %v252
  %v1560 = vpop.f32.mrf.mxu0
  %v1561 = vadd.f32 %v819, %v1560
  %v1562 = vpop.f32.mrf.mxu0
  %v1563 = vadd.f32 %v819, %v1562
  %1564 = vmatmul.bf16.gmra.mxu0 %v253
  %v1565 = vpop.f32.mrf.mxu0
  %v1566 = vadd.f32 %v819, %v1565
  %v1567 = vpop.f32.mrf.mxu0
  %v1568 = vadd.f32 %v819, %v1567
  %1569 = vmatmul.bf16.gmra.mxu0 %v254
  %v1570 = vpop.f32.mrf.mxu0
  %v1571 = vadd.f32 %v819, %v1570
  %v1572 = vpop.f32.mrf.mxu0
  %1573 = vdwg.mxu0
  %1574 = vmatpush.bf16.msra.mxu0 %v1316
  %1575 = vmatpush.bf16.msra.mxu0 %v1315
  %1576 = vmatpush.bf16.msra.mxu0 %v1314
  %1577 = vmatpush.bf16.msra.mxu0 %v1313
  %1578 = vmatpush.bf16.msra.mxu0 %v1312
  %1579 = vmatpush.bf16.msra.mxu0 %v1311
  %1580 = vmatpush.bf16.msra.mxu0 %v1310
  %1581 = vmatpush.bf16.msra.mxu0 %v1309
  %1582 = vmatmul.bf16.gmra.mxu0 %v272
  %v1583 = vpop.f32.mrf.mxu0
  %v1584 = vadd.f32 %v1551, %v1583
  %v1585 = vpop.f32.mrf.mxu0
  %v1586 = vadd.f32 %v1553, %v1585
  %1587 = vmatmul.bf16.gmra.mxu0 %v280
  %v1588 = vpop.f32.mrf.mxu0
  %v1589 = vadd.f32 %v1556, %v1588
  %v1590 = vpop.f32.mrf.mxu0
  %v1591 = vadd.f32 %v1558, %v1590
  %1592 = vmatmul.bf16.gmra.mxu0 %v288
  %v1593 = vpop.f32.mrf.mxu0
  %v1594 = vadd.f32 %v1561, %v1593
  %v1595 = vpop.f32.mrf.mxu0
  %v1596 = vadd.f32 %v1563, %v1595
  %1597 = vmatmul.bf16.gmra.mxu0 %v296
  %v1598 = vpop.f32.mrf.mxu0
  %v1599 = vadd.f32 %v1566, %v1598
  %v1600 = vpop.f32.mrf.mxu0
  %v1601 = vadd.f32 %v1568, %v1600
  %1602 = vmatmul.bf16.gmra.mxu0 %v299
  %v1603 = vpop.f32.mrf.mxu0
  %v1604 = vadd.f32 %v1571, %v1603
  %v1605 = vpop.f32.mrf.mxu0
  %1606 = vdwg.mxu0
  %1607 = vmatpush.bf16.msra.mxu0 %v1324
  %1608 = vmatpush.bf16.msra.mxu0 %v1323
  %1609 = vmatpush.bf16.msra.mxu0 %v1322
  %1610 = vmatpush.bf16.msra.mxu0 %v1321
  %1611 = vmatpush.bf16.msra.mxu0 %v1320
  %1612 = vmatpush.bf16.msra.mxu0 %v1319
  %1613 = vmatpush.bf16.msra.mxu0 %v1318
  %1614 = vmatpush.bf16.msra.mxu0 %v1317
  %1615 = vmatmul.bf16.gmra.mxu0 %v308
  %v1616 = vpop.f32.mrf.mxu0
  %v1617 = vadd.f32 %v1584, %v1616
  %v1618 = vpop.f32.mrf.mxu0
  %v1619 = vadd.f32 %v1586, %v1618
  %1620 = vmatmul.bf16.gmra.mxu0 %v310
  %v1621 = vpop.f32.mrf.mxu0
  %v1622 = vadd.f32 %v1589, %v1621
  %v1623 = vpop.f32.mrf.mxu0
  %v1624 = vadd.f32 %v1591, %v1623
  %1625 = vmatmul.bf16.gmra.mxu0 %v312
  %v1626 = vpop.f32.mrf.mxu0
  %v1627 = vadd.f32 %v1594, %v1626
  %v1628 = vpop.f32.mrf.mxu0
  %v1629 = vadd.f32 %v1596, %v1628
  %1630 = vmatmul.bf16.gmra.mxu0 %v314
  %v1631 = vpop.f32.mrf.mxu0
  %v1632 = vadd.f32 %v1599, %v1631
  %v1633 = vpop.f32.mrf.mxu0
  %v1634 = vadd.f32 %v1601, %v1633
  %1635 = vmatmul.bf16.gmra.mxu0 %v313
  %v1636 = vpop.f32.mrf.mxu0
  %v1637 = vadd.f32 %v1604, %v1636
  %v1638 = vpop.f32.mrf.mxu0
  %1639 = vdwg.mxu0
  %1640 = vmatpush.bf16.msra.mxu0 %v1332
  %1641 = vmatpush.bf16.msra.mxu0 %v1331
  %1642 = vmatpush.bf16.msra.mxu0 %v1330
  %1643 = vmatpush.bf16.msra.mxu0 %v1329
  %1644 = vmatpush.bf16.msra.mxu0 %v1328
  %1645 = vmatpush.bf16.msra.mxu0 %v1327
  %1646 = vmatpush.bf16.msra.mxu0 %v1326
  %1647 = vmatpush.bf16.msra.mxu0 %v1325
  %1648 = vmatmul.bf16.gmra.mxu0 %v327
  %v1649 = vpop.f32.mrf.mxu0
  %v1650 = vadd.f32 %v1617, %v1649
  %v1651 = vpop.f32.mrf.mxu0
  %v1652 = vadd.f32 %v1619, %v1651
  %1653 = vmatmul.bf16.gmra.mxu0 %v331
  %v1654 = vpop.f32.mrf.mxu0
  %v1655 = vadd.f32 %v1622, %v1654
  %v1656 = vpop.f32.mrf.mxu0
  %v1657 = vadd.f32 %v1624, %v1656
  %1658 = vmatmul.bf16.gmra.mxu0 %v335
  %v1659 = vpop.f32.mrf.mxu0
  %v1660 = vadd.f32 %v1627, %v1659
  %v1661 = vpop.f32.mrf.mxu0
  %v1662 = vadd.f32 %v1629, %v1661
  %1663 = vmatmul.bf16.gmra.mxu0 %v339
  %v1664 = vpop.f32.mrf.mxu0
  %v1665 = vadd.f32 %v1632, %v1664
  %v1666 = vpop.f32.mrf.mxu0
  %v1667 = vadd.f32 %v1634, %v1666
  %1668 = vmatmul.bf16.gmra.mxu0 %v338
  %v1669 = vpop.f32.mrf.mxu0
  %v1670 = vadd.f32 %v1637, %v1669
  %v1671 = vpop.f32.mrf.mxu0
  %1672 = vdwg.mxu0
  %1673 = vmatpush.bf16.msra.mxu0 %v1340
  %1674 = vmatpush.bf16.msra.mxu0 %v1339
  %1675 = vmatpush.bf16.msra.mxu0 %v1338
  %1676 = vmatpush.bf16.msra.mxu0 %v1337
  %1677 = vmatpush.bf16.msra.mxu0 %v1336
  %1678 = vmatpush.bf16.msra.mxu0 %v1335
  %1679 = vmatpush.bf16.msra.mxu0 %v1334
  %1680 = vmatpush.bf16.msra.mxu0 %v1333
  %1681 = vmatmul.bf16.gmra.mxu0 %v348
  %v1682 = vpop.f32.mrf.mxu0
  %v1683 = vadd.f32 %v1650, %v1682
  %v1684 = vpop.f32.mrf.mxu0
  %v1685 = vadd.f32 %v1652, %v1684
  %1686 = vmatmul.bf16.gmra.mxu0 %v350
  %v1687 = vpop.f32.mrf.mxu0
  %v1688 = vadd.f32 %v1655, %v1687
  %v1689 = vpop.f32.mrf.mxu0
  %v1690 = vadd.f32 %v1657, %v1689
  %1691 = vmatmul.bf16.gmra.mxu0 %v352
  %v1692 = vpop.f32.mrf.mxu0
  %v1693 = vadd.f32 %v1660, %v1692
  %v1694 = vpop.f32.mrf.mxu0
  %v1695 = vadd.f32 %v1662, %v1694
  %1696 = vmatmul.bf16.gmra.mxu0 %v354
  %v1697 = vpop.f32.mrf.mxu0
  %v1698 = vadd.f32 %v1665, %v1697
  %v1699 = vpop.f32.mrf.mxu0
  %v1700 = vadd.f32 %v1667, %v1699
  %1701 = vmatmul.bf16.gmra.mxu0 %v353
  %v1702 = vpop.f32.mrf.mxu0
  %v1703 = vadd.f32 %v1670, %v1702
  %v1704 = vpop.f32.mrf.mxu0
  %1705 = vdwg.mxu0
  %1706 = vmatpush.bf16.msra.mxu0 %v1348
  %1707 = vmatpush.bf16.msra.mxu0 %v1347
  %1708 = vmatpush.bf16.msra.mxu0 %v1346
  %1709 = vmatpush.bf16.msra.mxu0 %v1345
  %1710 = vmatpush.bf16.msra.mxu0 %v1344
  %1711 = vmatpush.bf16.msra.mxu0 %v1343
  %1712 = vmatpush.bf16.msra.mxu0 %v1342
  %1713 = vmatpush.bf16.msra.mxu0 %v1341
  %1714 = vmatmul.bf16.gmra.mxu0 %v367
  %v1715 = vpop.f32.mrf.mxu0
  %v1716 = vadd.f32 %v1683, %v1715
  %v1717 = vpop.f32.mrf.mxu0
  %v1718 = vadd.f32 %v1685, %v1717
  %1719 = vmatmul.bf16.gmra.mxu0 %v371
  %v1720 = vpop.f32.mrf.mxu0
  %v1721 = vadd.f32 %v1688, %v1720
  %v1722 = vpop.f32.mrf.mxu0
  %v1723 = vadd.f32 %v1690, %v1722
  %1724 = vmatmul.bf16.gmra.mxu0 %v375
  %v1725 = vpop.f32.mrf.mxu0
  %v1726 = vadd.f32 %v1693, %v1725
  %v1727 = vpop.f32.mrf.mxu0
  %v1728 = vadd.f32 %v1695, %v1727
  %1729 = vmatmul.bf16.gmra.mxu0 %v379
  %v1730 = vpop.f32.mrf.mxu0
  %v1731 = vadd.f32 %v1698, %v1730
  %v1732 = vpop.f32.mrf.mxu0
  %v1733 = vadd.f32 %v1700, %v1732
  %1734 = vmatmul.bf16.gmra.mxu0 %v378
  %v1735 = vpop.f32.mrf.mxu0
  %v1736 = vadd.f32 %v1703, %v1735
  %v1737 = vpop.f32.mrf.mxu0
  %1738 = vdwg.mxu0
  %1739 = vmatpush.bf16.msra.mxu0 %v1356
  %1740 = vmatpush.bf16.msra.mxu0 %v1355
  %1741 = vmatpush.bf16.msra.mxu0 %v1354
  %1742 = vmatpush.bf16.msra.mxu0 %v1353
  %1743 = vmatpush.bf16.msra.mxu0 %v1352
  %1744 = vmatpush.bf16.msra.mxu0 %v1351
  %1745 = vmatpush.bf16.msra.mxu0 %v1350
  %1746 = vmatpush.bf16.msra.mxu0 %v1349
  %1747 = vmatmul.bf16.gmra.mxu0 %v388
  %v1748 = vpop.f32.mrf.mxu0
  %v1749 = vadd.f32 %v1716, %v1748
  %v1750 = vpop.f32.mrf.mxu0
  %v1751 = vadd.f32 %v1718, %v1750
  %1752 = vmatmul.bf16.gmra.mxu0 %v390
  %v1753 = vpop.f32.mrf.mxu0
  %v1754 = vadd.f32 %v1721, %v1753
  %v1755 = vpop.f32.mrf.mxu0
  %v1756 = vadd.f32 %v1723, %v1755
  %1757 = vmatmul.bf16.gmra.mxu0 %v392
  %v1758 = vpop.f32.mrf.mxu0
  %v1759 = vadd.f32 %v1726, %v1758
  %v1760 = vpop.f32.mrf.mxu0
  %v1761 = vadd.f32 %v1728, %v1760
  %1762 = vmatmul.bf16.gmra.mxu0 %v394
  %v1763 = vpop.f32.mrf.mxu0
  %v1764 = vadd.f32 %v1731, %v1763
  %v1765 = vpop.f32.mrf.mxu0
  %v1766 = vadd.f32 %v1733, %v1765
  %1767 = vmatmul.bf16.gmra.mxu0 %v393
  %v1768 = vpop.f32.mrf.mxu0
  %v1769 = vadd.f32 %v1736, %v1768
  %v1770 = vpop.f32.mrf.mxu0
  %1771 = vdwg.mxu0
  %1772 = vmatpush.bf16.msra.mxu0 %v1364
  %1773 = vmatpush.bf16.msra.mxu0 %v1363
  %1774 = vmatpush.bf16.msra.mxu0 %v1362
  %1775 = vmatpush.bf16.msra.mxu0 %v1361
  %1776 = vmatpush.bf16.msra.mxu0 %v1360
  %1777 = vmatpush.bf16.msra.mxu0 %v1359
  %1778 = vmatpush.bf16.msra.mxu0 %v1358
  %1779 = vmatpush.bf16.msra.mxu0 %v1357
  %1780 = vmatmul.bf16.gmra.mxu0 %v410
  %v1781 = vpop.f32.mrf.mxu0
  %v1782 = vadd.f32 %v1749, %v1781
  %v1783 = vpop.f32.mrf.mxu0
  %v1784 = vadd.f32 %v1751, %v1783
  %1785 = vmatmul.bf16.gmra.mxu0 %v414
  %v1786 = vpop.f32.mrf.mxu0
  %v1787 = vadd.f32 %v1754, %v1786
  %v1788 = vpop.f32.mrf.mxu0
  %v1789 = vadd.f32 %v1756, %v1788
  %1790 = vmatmul.bf16.gmra.mxu0 %v418
  %v1791 = vpop.f32.mrf.mxu0
  %v1792 = vadd.f32 %v1759, %v1791
  %v1793 = vpop.f32.mrf.mxu0
  %v1794 = vadd.f32 %v1761, %v1793
  %1795 = vmatmul.bf16.gmra.mxu0 %v427
  %v1796 = vpop.f32.mrf.mxu0
  %v1797 = vadd.f32 %v1764, %v1796
  %v1798 = vpop.f32.mrf.mxu0
  %v1799 = vadd.f32 %v1766, %v1798
  %1800 = vmatmul.bf16.gmra.mxu0 %v426
  %v1801 = vpop.f32.mrf.mxu0
  %v1802 = vadd.f32 %v1769, %v1801
  %v1803 = vpop.f32.mrf.mxu0
  %1804 = vdwg.mxu0
  %1805 = vmatpush.bf16.msra.mxu0 %v1372
  %1806 = vmatpush.bf16.msra.mxu0 %v1371
  %1807 = vmatpush.bf16.msra.mxu0 %v1370
  %1808 = vmatpush.bf16.msra.mxu0 %v1369
  %1809 = vmatpush.bf16.msra.mxu0 %v1368
  %1810 = vmatpush.bf16.msra.mxu0 %v1367
  %1811 = vmatpush.bf16.msra.mxu0 %v1366
  %1812 = vmatpush.bf16.msra.mxu0 %v1365
  %1813 = vmatmul.bf16.gmra.mxu0 %v433
  %v1814 = vpop.f32.mrf.mxu0
  %v1815 = vadd.f32 %v1782, %v1814
  %v1816 = vpop.f32.mrf.mxu0
  %v1817 = vadd.f32 %v1784, %v1816
  %1818 = vmatmul.bf16.gmra.mxu0 %v434
  %v1819 = vpop.f32.mrf.mxu0
  %v1820 = vadd.f32 %v1787, %v1819
  %v1821 = vpop.f32.mrf.mxu0
  %v1822 = vadd.f32 %v1789, %v1821
  %1823 = vmatmul.bf16.gmra.mxu0 %v435
  %v1824 = vpop.f32.mrf.mxu0
  %v1825 = vadd.f32 %v1792, %v1824
  %v1826 = vpop.f32.mrf.mxu0
  %v1827 = vadd.f32 %v1794, %v1826
  %1828 = vmatmul.bf16.gmra.mxu0 %v436
  %v1829 = vpop.f32.mrf.mxu0
  %v1830 = vadd.f32 %v1797, %v1829
  %v1831 = vpop.f32.mrf.mxu0
  %v1832 = vadd.f32 %v1799, %v1831
  %1833 = vmatmul.bf16.gmra.mxu0 %v437
  %v1834 = vpop.f32.mrf.mxu0
  %v1835 = vadd.f32 %v1802, %v1834
  %v1836 = vpop.f32.mrf.mxu0
  %1837 = vdwg.mxu0
  %1838 = vmatpush.bf16.msra.mxu0 %v1380
  %1839 = vmatpush.bf16.msra.mxu0 %v1379
  %1840 = vmatpush.bf16.msra.mxu0 %v1378
  %1841 = vmatpush.bf16.msra.mxu0 %v1377
  %1842 = vmatpush.bf16.msra.mxu0 %v1376
  %1843 = vmatpush.bf16.msra.mxu0 %v1375
  %1844 = vmatpush.bf16.msra.mxu0 %v1374
  %1845 = vmatpush.bf16.msra.mxu0 %v1373
  %1846 = vmatmul.bf16.gmra.mxu0 %v454
  %v1847 = vpop.f32.mrf.mxu0
  %v1848 = vadd.f32 %v1815, %v1847
  %v1849 = vpop.f32.mrf.mxu0
  %v1850 = vadd.f32 %v1817, %v1849
  %1851 = vmatmul.bf16.gmra.mxu0 %v462
  %v1852 = vpop.f32.mrf.mxu0
  %v1853 = vadd.f32 %v1820, %v1852
  %v1854 = vpop.f32.mrf.mxu0
  %v1855 = vadd.f32 %v1822, %v1854
  %1856 = vmatmul.bf16.gmra.mxu0 %v470
  %v1857 = vpop.f32.mrf.mxu0
  %v1858 = vadd.f32 %v1825, %v1857
  %v1859 = vpop.f32.mrf.mxu0
  %v1860 = vadd.f32 %v1827, %v1859
  %1861 = vmatmul.bf16.gmra.mxu0 %v478
  %v1862 = vpop.f32.mrf.mxu0
  %v1863 = vadd.f32 %v1830, %v1862
  %v1864 = vpop.f32.mrf.mxu0
  %v1865 = vadd.f32 %v1832, %v1864
  %1866 = vmatmul.bf16.gmra.mxu0 %v481
  %v1867 = vpop.f32.mrf.mxu0
  %v1868 = vadd.f32 %v1835, %v1867
  %v1869 = vpop.f32.mrf.mxu0
  %1870 = vdwg.mxu0
  %1871 = vmatpush.bf16.msra.mxu0 %v1388
  %1872 = vmatpush.bf16.msra.mxu0 %v1387
  %1873 = vmatpush.bf16.msra.mxu0 %v1386
  %1874 = vmatpush.bf16.msra.mxu0 %v1385
  %1875 = vmatpush.bf16.msra.mxu0 %v1384
  %1876 = vmatpush.bf16.msra.mxu0 %v1383
  %1877 = vmatpush.bf16.msra.mxu0 %v1382
  %1878 = vmatpush.bf16.msra.mxu0 %v1381
  %1879 = vmatmul.bf16.gmra.mxu0 %v489
  %v1880 = vpop.f32.mrf.mxu0
  %v1881 = vadd.f32 %v1848, %v1880
  %v1882 = vpop.f32.mrf.mxu0
  %v1883 = vadd.f32 %v1850, %v1882
  %1884 = vmatmul.bf16.gmra.mxu0 %v491
  %v1885 = vpop.f32.mrf.mxu0
  %v1886 = vadd.f32 %v1853, %v1885
  %v1887 = vpop.f32.mrf.mxu0
  %v1888 = vadd.f32 %v1855, %v1887
  %1889 = vmatmul.bf16.gmra.mxu0 %v493
  %v1890 = vpop.f32.mrf.mxu0
  %v1891 = vadd.f32 %v1858, %v1890
  %v1892 = vpop.f32.mrf.mxu0
  %v1893 = vadd.f32 %v1860, %v1892
  %1894 = vmatmul.bf16.gmra.mxu0 %v495
  %v1895 = vpop.f32.mrf.mxu0
  %v1896 = vadd.f32 %v1863, %v1895
  %v1897 = vpop.f32.mrf.mxu0
  %v1898 = vadd.f32 %v1865, %v1897
  %1899 = vmatmul.bf16.gmra.mxu0 %v494
  %v1900 = vpop.f32.mrf.mxu0
  %v1901 = vadd.f32 %v1868, %v1900
  %v1902 = vpop.f32.mrf.mxu0
  %1903 = vdwg.mxu0
  %1904 = vmatpush.bf16.msra.mxu0 %v1396
  %1905 = vmatpush.bf16.msra.mxu0 %v1395
  %1906 = vmatpush.bf16.msra.mxu0 %v1394
  %1907 = vmatpush.bf16.msra.mxu0 %v1393
  %1908 = vmatpush.bf16.msra.mxu0 %v1392
  %1909 = vmatpush.bf16.msra.mxu0 %v1391
  %1910 = vmatpush.bf16.msra.mxu0 %v1390
  %1911 = vmatpush.bf16.msra.mxu0 %v1389
  %1912 = vmatmul.bf16.gmra.mxu0 %v507
  %v1913 = vpop.f32.mrf.mxu0
  %v1914 = vadd.f32 %v1881, %v1913
  %v1915 = vpop.f32.mrf.mxu0
  %v1916 = vadd.f32 %v1883, %v1915
  %1917 = vmatmul.bf16.gmra.mxu0 %v511
  %v1918 = vpop.f32.mrf.mxu0
  %v1919 = vadd.f32 %v1886, %v1918
  %v1920 = vpop.f32.mrf.mxu0
  %v1921 = vadd.f32 %v1888, %v1920
  %1922 = vmatmul.bf16.gmra.mxu0 %v515
  %v1923 = vpop.f32.mrf.mxu0
  %v1924 = vadd.f32 %v1891, %v1923
  %v1925 = vpop.f32.mrf.mxu0
  %v1926 = vadd.f32 %v1893, %v1925
  %1927 = vmatmul.bf16.gmra.mxu0 %v519
  %v1928 = vpop.f32.mrf.mxu0
  %v1929 = vadd.f32 %v1896, %v1928
  %v1930 = vpop.f32.mrf.mxu0
  %v1931 = vadd.f32 %v1898, %v1930
  %1932 = vmatmul.bf16.gmra.mxu0 %v518
  %v1933 = vpop.f32.mrf.mxu0
  %v1934 = vadd.f32 %v1901, %v1933
  %v1935 = vpop.f32.mrf.mxu0
  %1936 = vdwg.mxu0
  %1937 = vmatpush.bf16.msra.mxu0 %v1404
  %1938 = vmatpush.bf16.msra.mxu0 %v1403
  %1939 = vmatpush.bf16.msra.mxu0 %v1402
  %1940 = vmatpush.bf16.msra.mxu0 %v1401
  %1941 = vmatpush.bf16.msra.mxu0 %v1400
  %1942 = vmatpush.bf16.msra.mxu0 %v1399
  %1943 = vmatpush.bf16.msra.mxu0 %v1398
  %1944 = vmatpush.bf16.msra.mxu0 %v1397
  %1945 = vmatmul.bf16.gmra.mxu0 %v527
  %v1946 = vpop.f32.mrf.mxu0
  %v1947 = vadd.f32 %v1914, %v1946
  %v1948 = vpop.f32.mrf.mxu0
  %v1949 = vadd.f32 %v1916, %v1948
  %1950 = vmatmul.bf16.gmra.mxu0 %v529
  %v1951 = vpop.f32.mrf.mxu0
  %v1952 = vadd.f32 %v1919, %v1951
  %v1953 = vpop.f32.mrf.mxu0
  %v1954 = vadd.f32 %v1921, %v1953
  %1955 = vmatmul.bf16.gmra.mxu0 %v531
  %v1956 = vpop.f32.mrf.mxu0
  %v1957 = vadd.f32 %v1924, %v1956
  %v1958 = vpop.f32.mrf.mxu0
  %v1959 = vadd.f32 %v1926, %v1958
  %1960 = vmatmul.bf16.gmra.mxu0 %v533
  %v1961 = vpop.f32.mrf.mxu0
  %v1962 = vadd.f32 %v1929, %v1961
  %v1963 = vpop.f32.mrf.mxu0
  %v1964 = vadd.f32 %v1931, %v1963
  %1965 = vmatmul.bf16.gmra.mxu0 %v532
  %v1966 = vpop.f32.mrf.mxu0
  %v1967 = vadd.f32 %v1934, %v1966
  %v1968 = vpop.f32.mrf.mxu0
  %1969 = vdwg.mxu0
  %1970 = vmatpush.bf16.msra.mxu0 %v1412
  %1971 = vmatpush.bf16.msra.mxu0 %v1411
  %1972 = vmatpush.bf16.msra.mxu0 %v1410
  %1973 = vmatpush.bf16.msra.mxu0 %v1409
  %1974 = vmatpush.bf16.msra.mxu0 %v1408
  %1975 = vmatpush.bf16.msra.mxu0 %v1407
  %1976 = vmatpush.bf16.msra.mxu0 %v1406
  %1977 = vmatpush.bf16.msra.mxu0 %v1405
  %1978 = vmatmul.bf16.gmra.mxu0 %v545
  %v1979 = vpop.f32.mrf.mxu0
  %v1980 = vadd.f32 %v1947, %v1979
  %v1981 = vpop.f32.mrf.mxu0
  %v1982 = vadd.f32 %v1949, %v1981
  %1983 = vmatmul.bf16.gmra.mxu0 %v549
  %v1984 = vpop.f32.mrf.mxu0
  %v1985 = vadd.f32 %v1952, %v1984
  %v1986 = vpop.f32.mrf.mxu0
  %v1987 = vadd.f32 %v1954, %v1986
  %1988 = vmatmul.bf16.gmra.mxu0 %v553
  %v1989 = vpop.f32.mrf.mxu0
  %v1990 = vadd.f32 %v1957, %v1989
  %v1991 = vpop.f32.mrf.mxu0
  %v1992 = vadd.f32 %v1959, %v1991
  %1993 = vmatmul.bf16.gmra.mxu0 %v557
  %v1994 = vpop.f32.mrf.mxu0
  %v1995 = vadd.f32 %v1962, %v1994
  %v1996 = vpop.f32.mrf.mxu0
  %v1997 = vadd.f32 %v1964, %v1996
  %1998 = vmatmul.bf16.gmra.mxu0 %v556
  %v1999 = vpop.f32.mrf.mxu0
  %v2000 = vadd.f32 %v1967, %v1999
  %v2001 = vpop.f32.mrf.mxu0
  %2002 = vdwg.mxu0
  %2003 = vmatpush.bf16.msra.mxu0 %v1420
  %2004 = vmatpush.bf16.msra.mxu0 %v1419
  %2005 = vmatpush.bf16.msra.mxu0 %v1418
  %2006 = vmatpush.bf16.msra.mxu0 %v1417
  %2007 = vmatpush.bf16.msra.mxu0 %v1416
  %2008 = vmatpush.bf16.msra.mxu0 %v1415
  %2009 = vmatpush.bf16.msra.mxu0 %v1414
  %2010 = vmatpush.bf16.msra.mxu0 %v1413
  %2011 = vmatmul.bf16.gmra.mxu0 %v565
  %v2012 = vpop.f32.mrf.mxu0
  %v2013 = vadd.f32 %v1980, %v2012
  %v2014 = vpop.f32.mrf.mxu0
  %v2015 = vadd.f32 %v1982, %v2014
  %2016 = vmatmul.bf16.gmra.mxu0 %v567
  %v2017 = vpop.f32.mrf.mxu0
  %v2018 = vadd.f32 %v1985, %v2017
  %v2019 = vpop.f32.mrf.mxu0
  %v2020 = vadd.f32 %v1987, %v2019
  %2021 = vmatmul.bf16.gmra.mxu0 %v569
  %v2022 = vpop.f32.mrf.mxu0
  %v2023 = vadd.f32 %v1990, %v2022
  %v2024 = vpop.f32.mrf.mxu0
  %v2025 = vadd.f32 %v1992, %v2024
  %2026 = vmatmul.bf16.gmra.mxu0 %v571
  %v2027 = vpop.f32.mrf.mxu0
  %v2028 = vadd.f32 %v1995, %v2027
  %v2029 = vpop.f32.mrf.mxu0
  %v2030 = vadd.f32 %v1997, %v2029
  %2031 = vmatmul.bf16.gmra.mxu0 %v570
  %v2032 = vpop.f32.mrf.mxu0
  %v2033 = vadd.f32 %v2000, %v2032
  %v2034 = vpop.f32.mrf.mxu0
  %2035 = vdwg.mxu0
  %v2036 = vmul.f32 %v2013, 0.05
  %v2037 = vmul.f32 %v2015, 0.05
  %v2038 = vmul.f32 %v2018, 0.05
  %v2039 = vmul.f32 %v2020, 0.05
  %v2040 = vmul.f32 %v2023, 0.05
  %v2041 = vmul.f32 %v2025, 0.05
  %v2042 = vmul.f32 %v2028, 0.05
  %v2043 = vmul.f32 %v2030, 0.05
  %v2044 = vmul.f32 %v2033, 0.05
  %v2045 = vmax.f32 %v2013, %v2036
  %v2046 = vmax.f32 %v2015, %v2037
  %v2047 = vmax.f32 %v2018, %v2038
  %v2048 = vmax.f32 %v2020, %v2039
  %v2049 = vmax.f32 %v2023, %v2040
  %v2050 = vmax.f32 %v2025, %v2041
  %v2051 = vmax.f32 %v2028, %v2042
  %v2052 = vmax.f32 %v2030, %v2043
  %v2053 = vmax.f32 %v2033, %v2044
  %v2054 = vpack.c.bf16 %v2045, %v2045
  %v2055 = vpack.c.bf16 %v2046, %v2046
  %v2056 = vpack.c.bf16 %v2047, %v2047
  %v2057 = vpack.c.bf16 %v2048, %v2048
  %v2058 = vpack.c.bf16 %v2049, %v2049
  %v2059 = vpack.c.bf16 %v2050, %v2050
  %v2060 = vpack.c.bf16 %v2051, %v2051
  %v2061 = vpack.c.bf16 %v2052, %v2052
  %v2062 = vpack.c.bf16 %v2053, %v2053
  %v2071 = vunpack.c.l.b16 %v2054
  %v2072 = vunpack.c.l.b16 %v2055
  %v2073 = vunpack.c.l.b16 %v2056
  %v2074 = vunpack.c.l.b16 %v2057
  %v2075 = vunpack.c.l.b16 %v2058
  %v2076 = vunpack.c.l.b16 %v2059
  %v2077 = vunpack.c.l.b16 %v2060
  %v2078 = vunpack.c.l.b16 %v2061
  %v2079 = vpack.c.b16 %v2072, %v2071
  %v2080 = vpack.c.b16 %v2074, %v2073
  %v2081 = vpack.c.b16 %v2076, %v2075
  %v2082 = vpack.c.b16 %v2078, %v2077
  %v2088 = vshrl.u32 %v2079, 16
  %v2090 = vshll.u32 %v2079, 16
  %v2092 = vrot.slane %v2090, 1
  %v2093 = vor.u32 %v2088, %v2092
  %v2095 = vshll.u32 %v2080, 16
  %v2097 = vrot.slane %v2095, 1
  %v2098 = vsel %vm260, %v2093, %v2097
  %v2099 = vshrl.u32 %v2080, 16
  %v2101 = vor.u32 %v2099, %v2097
  %v2103 = vshll.u32 %v2081, 16
  %v2105 = vrot.slane %v2103, 1
  %v2106 = vsel %vm260, %v2101, %v2105
  %v2107 = vshrl.u32 %v2081, 16
  %v2109 = vor.u32 %v2107, %v2105
  %v2111 = vshll.u32 %v2082, 16
  %v2113 = vrot.slane %v2111, 1
  %v2114 = vsel %vm260, %v2109, %v2113
  %v2115 = vshrl.u32 %v2082, 16
  %v2117 = vor.u32 %v2115, %v2113
  %v2122 = vrot.slane %v2079, 1
  %v2123 = vrot.slane %v2080, 1
  %v2124 = vsel %vm305, %v2122, %v2123
  %v2125 = vrot.slane %v2081, 1
  %v2126 = vsel %vm305, %v2123, %v2125
  %v2127 = vrot.slane %v2082, 1
  %v2128 = vsel %vm305, %v2125, %v2127
  %v2133 = vrot.slane %v2088, 1
  %v2134 = vrot.slane %v2090, 2
  %v2135 = vor.u32 %v2133, %v2134
  %v2136 = vrot.slane %v2099, 1
  %v2137 = vrot.slane %v2095, 2
  %v2138 = vor.u32 %v2136, %v2137
  %v2139 = vsel %vm320, %v2135, %v2138
  %v2140 = vrot.slane %v2107, 1
  %v2141 = vrot.slane %v2103, 2
  %v2142 = vor.u32 %v2140, %v2141
  %v2143 = vsel %vm320, %v2138, %v2142
  %v2144 = vrot.slane %v2115, 1
  %v2145 = vrot.slane %v2111, 2
  %v2146 = vor.u32 %v2144, %v2145
  %v2147 = vsel %vm320, %v2142, %v2146
  %v2152 = vrot.slane %v2079, 2
  %v2153 = vrot.slane %v2080, 2
  %v2154 = vsel %vm345, %v2152, %v2153
  %v2155 = vrot.slane %v2081, 2
  %v2156 = vsel %vm345, %v2153, %v2155
  %v2157 = vrot.slane %v2082, 2
  %v2158 = vsel %vm345, %v2155, %v2157
  %v2163 = vrot.slane %v2088, 2
  %v2164 = vrot.slane %v2090, 3
  %v2165 = vor.u32 %v2163, %v2164
  %v2166 = vrot.slane %v2099, 2
  %v2167 = vrot.slane %v2095, 3
  %v2168 = vor.u32 %v2166, %v2167
  %v2169 = vsel %vm360, %v2165, %v2168
  %v2170 = vrot.slane %v2107, 2
  %v2171 = vrot.slane %v2103, 3
  %v2172 = vor.u32 %v2170, %v2171
  %v2173 = vsel %vm360, %v2168, %v2172
  %v2174 = vrot.slane %v2115, 2
  %v2175 = vrot.slane %v2111, 3
  %v2176 = vor.u32 %v2174, %v2175
  %v2177 = vsel %vm360, %v2172, %v2176
  %v2182 = vrot.slane %v2079, 3
  %v2183 = vrot.slane %v2080, 3
  %v2184 = vsel %vm385, %v2182, %v2183
  %v2185 = vrot.slane %v2081, 3
  %v2186 = vsel %vm385, %v2183, %v2185
  %v2187 = vrot.slane %v2082, 3
  %v2188 = vsel %vm385, %v2185, %v2187
  %v2194 = vunpack.c.l.b16 %v2062
  %v2195 = vpack.c.b16 %v2194, %v2194
  %v2196 = vrot.slane %v2088, 3
  %v2197 = vrot.slane %v2090, 4
  %v2198 = vor.u32 %v2196, %v2197
  %v2199 = vrot.slane %v2099, 3
  %v2200 = vrot.slane %v2095, 4
  %v2201 = vor.u32 %v2199, %v2200
  %v2202 = vsel %vm403, %v2198, %v2201
  %v2203 = vrot.slane %v2107, 3
  %v2204 = vrot.slane %v2103, 4
  %v2205 = vor.u32 %v2203, %v2204
  %v2206 = vsel %vm403, %v2201, %v2205
  %v2207 = vrot.slane %v2115, 3
  %v2208 = vrot.slane %v2111, 4
  %v2209 = vor.u32 %v2207, %v2208
  %v2210 = vsel %vm403, %v2205, %v2209
  %v2212 = vshll.u32 %v2195, 16
  %v2214 = vrot.slane %v2212, 4
  %v2215 = vsel %vm403, %v2209, %v2214
  %v2220 = vpack.c.b16 %v2073, %v2072
  %v2221 = vpack.c.b16 %v2075, %v2074
  %v2222 = vpack.c.b16 %v2077, %v2076
  %v2223 = vpack.c.b16 %v2194, %v2078
  %v2228 = vld [vmem:[%s4] sm:$0xf]
  %v2229 = vld [vmem:[%s4 + $0x4] sm:$0xf]
  %v2230 = vld [vmem:[%s4 + $0x8] sm:$0xf]
  %v2231 = vld [vmem:[%s4 + $0xc] sm:$0xf]
  %v2232 = vld [vmem:[%s4 + $0x10] sm:$0xf]
  %v2233 = vld [vmem:[%s4 + $0x14] sm:$0xf]
  %v2234 = vld [vmem:[%s4 + $0x18] sm:$0xf]
  %v2235 = vld [vmem:[%s4 + $0x1c] sm:$0xf]
  %v2236 = vld [vmem:[%s4 + $0x20] sm:$0xf]
  %v2237 = vld [vmem:[%s4 + $0x24] sm:$0xf]
  %v2238 = vld [vmem:[%s4 + $0x28] sm:$0xf]
  %v2239 = vld [vmem:[%s4 + $0x2c] sm:$0xf]
  %v2240 = vld [vmem:[%s4 + $0x30] sm:$0xf]
  %v2241 = vld [vmem:[%s4 + $0x34] sm:$0xf]
  %v2242 = vld [vmem:[%s4 + $0x38] sm:$0xf]
  %v2243 = vld [vmem:[%s4 + $0x3c] sm:$0xf]
  %v2244 = vld [vmem:[%s4 + $0x40] sm:$0xf]
  %v2245 = vld [vmem:[%s4 + $0x44] sm:$0xf]
  %v2246 = vld [vmem:[%s4 + $0x48] sm:$0xf]
  %v2247 = vld [vmem:[%s4 + $0x4c] sm:$0xf]
  %v2248 = vld [vmem:[%s4 + $0x50] sm:$0xf]
  %v2249 = vld [vmem:[%s4 + $0x54] sm:$0xf]
  %v2250 = vld [vmem:[%s4 + $0x58] sm:$0xf]
  %v2251 = vld [vmem:[%s4 + $0x5c] sm:$0xf]
  %v2252 = vld [vmem:[%s4 + $0x60] sm:$0xf]
  %v2253 = vld [vmem:[%s4 + $0x64] sm:$0xf]
  %v2254 = vld [vmem:[%s4 + $0x68] sm:$0xf]
  %v2255 = vld [vmem:[%s4 + $0x6c] sm:$0xf]
  %v2256 = vld [vmem:[%s4 + $0x70] sm:$0xf]
  %v2257 = vld [vmem:[%s4 + $0x74] sm:$0xf]
  %v2258 = vld [vmem:[%s4 + $0x78] sm:$0xf]
  %v2259 = vld [vmem:[%s4 + $0x7c] sm:$0xf]
  %v2260 = vld [vmem:[%s4 + $0x80] sm:$0xf]
  %v2261 = vld [vmem:[%s4 + $0x84] sm:$0xf]
  %v2262 = vld [vmem:[%s4 + $0x88] sm:$0xf]
  %v2263 = vld [vmem:[%s4 + $0x8c] sm:$0xf]
  %v2264 = vld [vmem:[%s4 + $0x90] sm:$0xf]
  %v2265 = vld [vmem:[%s4 + $0x94] sm:$0xf]
  %v2266 = vld [vmem:[%s4 + $0x98] sm:$0xf]
  %v2267 = vld [vmem:[%s4 + $0x9c] sm:$0xf]
  %v2268 = vld [vmem:[%s4 + $0xa0] sm:$0xf]
  %v2269 = vld [vmem:[%s4 + $0xa4] sm:$0xf]
  %v2270 = vld [vmem:[%s4 + $0xa8] sm:$0xf]
  %v2271 = vld [vmem:[%s4 + $0xac] sm:$0xf]
  %v2272 = vld [vmem:[%s4 + $0xb0] sm:$0xf]
  %v2273 = vld [vmem:[%s4 + $0xb4] sm:$0xf]
  %v2274 = vld [vmem:[%s4 + $0xb8] sm:$0xf]
  %v2275 = vld [vmem:[%s4 + $0xbc] sm:$0xf]
  %v2276 = vld [vmem:[%s4 + $0xc0] sm:$0xf]
  %v2277 = vld [vmem:[%s4 + $0xc4] sm:$0xf]
  %v2278 = vld [vmem:[%s4 + $0xc8] sm:$0xf]
  %v2279 = vld [vmem:[%s4 + $0xcc] sm:$0xf]
  %v2280 = vld [vmem:[%s4 + $0xd0] sm:$0xf]
  %v2281 = vld [vmem:[%s4 + $0xd4] sm:$0xf]
  %v2282 = vld [vmem:[%s4 + $0xd8] sm:$0xf]
  %v2283 = vld [vmem:[%s4 + $0xdc] sm:$0xf]
  %v2284 = vld [vmem:[%s4 + $0xe0] sm:$0xf]
  %v2285 = vld [vmem:[%s4 + $0xe4] sm:$0xf]
  %v2286 = vld [vmem:[%s4 + $0xe8] sm:$0xf]
  %v2287 = vld [vmem:[%s4 + $0xec] sm:$0xf]
  %v2288 = vld [vmem:[%s4 + $0xf0] sm:$0xf]
  %v2289 = vld [vmem:[%s4 + $0xf4] sm:$0xf]
  %v2290 = vld [vmem:[%s4 + $0xf8] sm:$0xf]
  %v2291 = vld [vmem:[%s4 + $0xfc] sm:$0xf]
  %v2292 = vld [vmem:[%s4 + $0x100] sm:$0xf]
  %v2293 = vld [vmem:[%s4 + $0x104] sm:$0xf]
  %v2294 = vld [vmem:[%s4 + $0x108] sm:$0xf]
  %v2295 = vld [vmem:[%s4 + $0x10c] sm:$0xf]
  %v2296 = vld [vmem:[%s4 + $0x110] sm:$0xf]
  %v2297 = vld [vmem:[%s4 + $0x114] sm:$0xf]
  %v2298 = vld [vmem:[%s4 + $0x118] sm:$0xf]
  %v2299 = vld [vmem:[%s4 + $0x11c] sm:$0xf]
  %v2300 = vld [vmem:[%s4 + $0x120] sm:$0xf]
  %v2301 = vld [vmem:[%s4 + $0x124] sm:$0xf]
  %v2302 = vld [vmem:[%s4 + $0x128] sm:$0xf]
  %v2303 = vld [vmem:[%s4 + $0x12c] sm:$0xf]
  %v2304 = vld [vmem:[%s4 + $0x130] sm:$0xf]
  %v2305 = vld [vmem:[%s4 + $0x134] sm:$0xf]
  %v2306 = vld [vmem:[%s4 + $0x138] sm:$0xf]
  %v2307 = vld [vmem:[%s4 + $0x13c] sm:$0xf]
  %v2308 = vld [vmem:[%s4 + $0x140] sm:$0xf]
  %v2309 = vld [vmem:[%s4 + $0x144] sm:$0xf]
  %v2310 = vld [vmem:[%s4 + $0x148] sm:$0xf]
  %v2311 = vld [vmem:[%s4 + $0x14c] sm:$0xf]
  %v2312 = vld [vmem:[%s4 + $0x150] sm:$0xf]
  %v2313 = vld [vmem:[%s4 + $0x154] sm:$0xf]
  %v2314 = vld [vmem:[%s4 + $0x158] sm:$0xf]
  %v2315 = vld [vmem:[%s4 + $0x15c] sm:$0xf]
  %v2316 = vld [vmem:[%s4 + $0x160] sm:$0xf]
  %v2317 = vld [vmem:[%s4 + $0x164] sm:$0xf]
  %v2318 = vld [vmem:[%s4 + $0x168] sm:$0xf]
  %v2319 = vld [vmem:[%s4 + $0x16c] sm:$0xf]
  %v2320 = vld [vmem:[%s4 + $0x170] sm:$0xf]
  %v2321 = vld [vmem:[%s4 + $0x174] sm:$0xf]
  %v2322 = vld [vmem:[%s4 + $0x178] sm:$0xf]
  %v2323 = vld [vmem:[%s4 + $0x17c] sm:$0xf]
  %v2324 = vld [vmem:[%s4 + $0x180] sm:$0xf]
  %v2325 = vld [vmem:[%s4 + $0x184] sm:$0xf]
  %v2326 = vld [vmem:[%s4 + $0x188] sm:$0xf]
  %v2327 = vld [vmem:[%s4 + $0x18c] sm:$0xf]
  %v2328 = vld [vmem:[%s4 + $0x190] sm:$0xf]
  %v2329 = vld [vmem:[%s4 + $0x194] sm:$0xf]
  %v2330 = vld [vmem:[%s4 + $0x198] sm:$0xf]
  %v2331 = vld [vmem:[%s4 + $0x19c] sm:$0xf]
  %v2332 = vld [vmem:[%s4 + $0x1a0] sm:$0xf]
  %v2333 = vld [vmem:[%s4 + $0x1a4] sm:$0xf]
  %v2334 = vld [vmem:[%s4 + $0x1a8] sm:$0xf]
  %v2335 = vld [vmem:[%s4 + $0x1ac] sm:$0xf]
  %v2336 = vld [vmem:[%s4 + $0x1b0] sm:$0xf]
  %v2337 = vld [vmem:[%s4 + $0x1b4] sm:$0xf]
  %v2338 = vld [vmem:[%s4 + $0x1b8] sm:$0xf]
  %v2339 = vld [vmem:[%s4 + $0x1bc] sm:$0xf]
  %v2340 = vld [vmem:[%s4 + $0x1c0] sm:$0xf]
  %v2341 = vld [vmem:[%s4 + $0x1c4] sm:$0xf]
  %v2342 = vld [vmem:[%s4 + $0x1c8] sm:$0xf]
  %v2343 = vld [vmem:[%s4 + $0x1cc] sm:$0xf]
  %v2344 = vld [vmem:[%s4 + $0x1d0] sm:$0xf]
  %v2345 = vld [vmem:[%s4 + $0x1d4] sm:$0xf]
  %v2346 = vld [vmem:[%s4 + $0x1d8] sm:$0xf]
  %v2347 = vld [vmem:[%s4 + $0x1dc] sm:$0xf]
  %v2348 = vld [vmem:[%s4 + $0x1e0] sm:$0xf]
  %v2349 = vld [vmem:[%s4 + $0x1e4] sm:$0xf]
  %v2350 = vld [vmem:[%s4 + $0x1e8] sm:$0xf]
  %v2351 = vld [vmem:[%s4 + $0x1ec] sm:$0xf]
  %v2352 = vld [vmem:[%s4 + $0x1f0] sm:$0xf]
  %v2353 = vld [vmem:[%s4 + $0x1f4] sm:$0xf]
  %v2354 = vld [vmem:[%s4 + $0x1f8] sm:$0xf]
  %v2355 = vld [vmem:[%s4 + $0x1fc] sm:$0xf]
  %v2356 = vld [vmem:[%s4 + $0x200] sm:$0xf]
  %v2357 = vld [vmem:[%s4 + $0x204] sm:$0xf]
  %v2358 = vld [vmem:[%s4 + $0x208] sm:$0xf]
  %v2359 = vld [vmem:[%s4 + $0x20c] sm:$0xf]
  %v2360 = vld [vmem:[%s4 + $0x210] sm:$0xf]
  %v2361 = vld [vmem:[%s4 + $0x214] sm:$0xf]
  %v2362 = vld [vmem:[%s4 + $0x218] sm:$0xf]
  %v2363 = vld [vmem:[%s4 + $0x21c] sm:$0xf]
  %v2364 = vld [vmem:[%s4 + $0x220] sm:$0xf]
  %v2365 = vld [vmem:[%s4 + $0x224] sm:$0xf]
  %v2366 = vld [vmem:[%s4 + $0x228] sm:$0xf]
  %v2367 = vld [vmem:[%s4 + $0x22c] sm:$0xf]
  %v2368 = vld [vmem:[%s4 + $0x230] sm:$0xf]
  %v2369 = vld [vmem:[%s4 + $0x234] sm:$0xf]
  %v2370 = vld [vmem:[%s4 + $0x238] sm:$0xf]
  %v2371 = vld [vmem:[%s4 + $0x23c] sm:$0xf]
  %v2372 = vld [vmem:[%s5] sm:$0x1]
  %v2374 = vperm.slane %v2372, 0
  %v2520 = vunpack.c.l.b16 %v2228
  %v2521 = vunpack.c.l.b16 %v2229
  %v2522 = vunpack.c.l.b16 %v2230
  %v2523 = vunpack.c.l.b16 %v2231
  %v2524 = vunpack.c.l.b16 %v2232
  %v2525 = vunpack.c.l.b16 %v2233
  %v2526 = vunpack.c.l.b16 %v2234
  %v2527 = vunpack.c.l.b16 %v2235
  %v2528 = vunpack.c.l.b16 %v2236
  %v2529 = vunpack.c.l.b16 %v2237
  %v2530 = vunpack.c.l.b16 %v2238
  %v2531 = vunpack.c.l.b16 %v2239
  %v2532 = vunpack.c.l.b16 %v2240
  %v2533 = vunpack.c.l.b16 %v2241
  %v2534 = vunpack.c.l.b16 %v2242
  %v2535 = vunpack.c.l.b16 %v2243
  %v2536 = vunpack.c.l.b16 %v2244
  %v2537 = vunpack.c.l.b16 %v2245
  %v2538 = vunpack.c.l.b16 %v2246
  %v2539 = vunpack.c.l.b16 %v2247
  %v2540 = vunpack.c.l.b16 %v2248
  %v2541 = vunpack.c.l.b16 %v2249
  %v2542 = vunpack.c.l.b16 %v2250
  %v2543 = vunpack.c.l.b16 %v2251
  %v2544 = vunpack.c.l.b16 %v2252
  %v2545 = vunpack.c.l.b16 %v2253
  %v2546 = vunpack.c.l.b16 %v2254
  %v2547 = vunpack.c.l.b16 %v2255
  %v2548 = vunpack.c.l.b16 %v2256
  %v2549 = vunpack.c.l.b16 %v2257
  %v2550 = vunpack.c.l.b16 %v2258
  %v2551 = vunpack.c.l.b16 %v2259
  %v2552 = vunpack.c.l.b16 %v2260
  %v2553 = vunpack.c.l.b16 %v2261
  %v2554 = vunpack.c.l.b16 %v2262
  %v2555 = vunpack.c.l.b16 %v2263
  %v2556 = vunpack.c.l.b16 %v2264
  %v2557 = vunpack.c.l.b16 %v2265
  %v2558 = vunpack.c.l.b16 %v2266
  %v2559 = vunpack.c.l.b16 %v2267
  %v2560 = vunpack.c.l.b16 %v2268
  %v2561 = vunpack.c.l.b16 %v2269
  %v2562 = vunpack.c.l.b16 %v2270
  %v2563 = vunpack.c.l.b16 %v2271
  %v2564 = vunpack.c.l.b16 %v2272
  %v2565 = vunpack.c.l.b16 %v2273
  %v2566 = vunpack.c.l.b16 %v2274
  %v2567 = vunpack.c.l.b16 %v2275
  %v2568 = vunpack.c.l.b16 %v2276
  %v2569 = vunpack.c.l.b16 %v2277
  %v2570 = vunpack.c.l.b16 %v2278
  %v2571 = vunpack.c.l.b16 %v2279
  %v2572 = vunpack.c.l.b16 %v2280
  %v2573 = vunpack.c.l.b16 %v2281
  %v2574 = vunpack.c.l.b16 %v2282
  %v2575 = vunpack.c.l.b16 %v2283
  %v2576 = vunpack.c.l.b16 %v2284
  %v2577 = vunpack.c.l.b16 %v2285
  %v2578 = vunpack.c.l.b16 %v2286
  %v2579 = vunpack.c.l.b16 %v2287
  %v2580 = vunpack.c.l.b16 %v2288
  %v2581 = vunpack.c.l.b16 %v2289
  %v2582 = vunpack.c.l.b16 %v2290
  %v2583 = vunpack.c.l.b16 %v2291
  %v2584 = vunpack.c.l.b16 %v2292
  %v2585 = vunpack.c.l.b16 %v2293
  %v2586 = vunpack.c.l.b16 %v2294
  %v2587 = vunpack.c.l.b16 %v2295
  %v2588 = vunpack.c.l.b16 %v2296
  %v2589 = vunpack.c.l.b16 %v2297
  %v2590 = vunpack.c.l.b16 %v2298
  %v2591 = vunpack.c.l.b16 %v2299
  %v2592 = vunpack.c.l.b16 %v2300
  %v2593 = vunpack.c.l.b16 %v2301
  %v2594 = vunpack.c.l.b16 %v2302
  %v2595 = vunpack.c.l.b16 %v2303
  %v2596 = vunpack.c.l.b16 %v2304
  %v2597 = vunpack.c.l.b16 %v2305
  %v2598 = vunpack.c.l.b16 %v2306
  %v2599 = vunpack.c.l.b16 %v2307
  %v2600 = vunpack.c.l.b16 %v2308
  %v2601 = vunpack.c.l.b16 %v2309
  %v2602 = vunpack.c.l.b16 %v2310
  %v2603 = vunpack.c.l.b16 %v2311
  %v2604 = vunpack.c.l.b16 %v2312
  %v2605 = vunpack.c.l.b16 %v2313
  %v2606 = vunpack.c.l.b16 %v2314
  %v2607 = vunpack.c.l.b16 %v2315
  %v2608 = vunpack.c.l.b16 %v2316
  %v2609 = vunpack.c.l.b16 %v2317
  %v2610 = vunpack.c.l.b16 %v2318
  %v2611 = vunpack.c.l.b16 %v2319
  %v2612 = vunpack.c.l.b16 %v2320
  %v2613 = vunpack.c.l.b16 %v2321
  %v2614 = vunpack.c.l.b16 %v2322
  %v2615 = vunpack.c.l.b16 %v2323
  %v2616 = vunpack.c.l.b16 %v2324
  %v2617 = vunpack.c.l.b16 %v2325
  %v2618 = vunpack.c.l.b16 %v2326
  %v2619 = vunpack.c.l.b16 %v2327
  %v2620 = vunpack.c.l.b16 %v2328
  %v2621 = vunpack.c.l.b16 %v2329
  %v2622 = vunpack.c.l.b16 %v2330
  %v2623 = vunpack.c.l.b16 %v2331
  %v2624 = vunpack.c.l.b16 %v2332
  %v2625 = vunpack.c.l.b16 %v2333
  %v2626 = vunpack.c.l.b16 %v2334
  %v2627 = vunpack.c.l.b16 %v2335
  %v2628 = vunpack.c.l.b16 %v2336
  %v2629 = vunpack.c.l.b16 %v2337
  %v2630 = vunpack.c.l.b16 %v2338
  %v2631 = vunpack.c.l.b16 %v2339
  %v2632 = vunpack.c.l.b16 %v2340
  %v2633 = vunpack.c.l.b16 %v2341
  %v2634 = vunpack.c.l.b16 %v2342
  %v2635 = vunpack.c.l.b16 %v2343
  %v2636 = vunpack.c.l.b16 %v2344
  %v2637 = vunpack.c.l.b16 %v2345
  %v2638 = vunpack.c.l.b16 %v2346
  %v2639 = vunpack.c.l.b16 %v2347
  %v2640 = vunpack.c.l.b16 %v2348
  %v2641 = vunpack.c.l.b16 %v2349
  %v2642 = vunpack.c.l.b16 %v2350
  %v2643 = vunpack.c.l.b16 %v2351
  %v2644 = vunpack.c.l.b16 %v2352
  %v2645 = vunpack.c.l.b16 %v2353
  %v2646 = vunpack.c.l.b16 %v2354
  %v2647 = vunpack.c.l.b16 %v2355
  %v2648 = vunpack.c.l.b16 %v2356
  %v2649 = vunpack.c.l.b16 %v2357
  %v2650 = vunpack.c.l.b16 %v2358
  %v2651 = vunpack.c.l.b16 %v2359
  %v2652 = vunpack.c.l.b16 %v2360
  %v2653 = vunpack.c.l.b16 %v2361
  %v2654 = vunpack.c.l.b16 %v2362
  %v2655 = vunpack.c.l.b16 %v2363
  %v2656 = vunpack.c.l.b16 %v2364
  %v2657 = vunpack.c.l.b16 %v2365
  %v2658 = vunpack.c.l.b16 %v2366
  %v2659 = vunpack.c.l.b16 %v2367
  %v2660 = vunpack.c.l.b16 %v2368
  %v2661 = vunpack.c.l.b16 %v2369
  %v2662 = vunpack.c.l.b16 %v2370
  %v2663 = vunpack.c.l.b16 %v2371
  %v2664 = vpack.c.b16 %v2521, %v2520
  %v2665 = vpack.c.b16 %v2523, %v2522
  %v2666 = vpack.c.b16 %v2525, %v2524
  %v2667 = vpack.c.b16 %v2527, %v2526
  %v2668 = vpack.c.b16 %v2529, %v2528
  %v2669 = vpack.c.b16 %v2531, %v2530
  %v2670 = vpack.c.b16 %v2533, %v2532
  %v2671 = vpack.c.b16 %v2535, %v2534
  %v2672 = vpack.c.b16 %v2537, %v2536
  %v2673 = vpack.c.b16 %v2539, %v2538
  %v2674 = vpack.c.b16 %v2541, %v2540
  %v2675 = vpack.c.b16 %v2543, %v2542
  %v2676 = vpack.c.b16 %v2545, %v2544
  %v2677 = vpack.c.b16 %v2547, %v2546
  %v2678 = vpack.c.b16 %v2549, %v2548
  %v2679 = vpack.c.b16 %v2551, %v2550
  %v2680 = vpack.c.b16 %v2553, %v2552
  %v2681 = vpack.c.b16 %v2555, %v2554
  %v2682 = vpack.c.b16 %v2557, %v2556
  %v2683 = vpack.c.b16 %v2559, %v2558
  %v2684 = vpack.c.b16 %v2561, %v2560
  %v2685 = vpack.c.b16 %v2563, %v2562
  %v2686 = vpack.c.b16 %v2565, %v2564
  %v2687 = vpack.c.b16 %v2567, %v2566
  %v2688 = vpack.c.b16 %v2569, %v2568
  %v2689 = vpack.c.b16 %v2571, %v2570
  %v2690 = vpack.c.b16 %v2573, %v2572
  %v2691 = vpack.c.b16 %v2575, %v2574
  %v2692 = vpack.c.b16 %v2577, %v2576
  %v2693 = vpack.c.b16 %v2579, %v2578
  %v2694 = vpack.c.b16 %v2581, %v2580
  %v2695 = vpack.c.b16 %v2583, %v2582
  %v2696 = vpack.c.b16 %v2585, %v2584
  %v2697 = vpack.c.b16 %v2587, %v2586
  %v2698 = vpack.c.b16 %v2589, %v2588
  %v2699 = vpack.c.b16 %v2591, %v2590
  %v2700 = vpack.c.b16 %v2593, %v2592
  %v2701 = vpack.c.b16 %v2595, %v2594
  %v2702 = vpack.c.b16 %v2597, %v2596
  %v2703 = vpack.c.b16 %v2599, %v2598
  %v2704 = vpack.c.b16 %v2601, %v2600
  %v2705 = vpack.c.b16 %v2603, %v2602
  %v2706 = vpack.c.b16 %v2605, %v2604
  %v2707 = vpack.c.b16 %v2607, %v2606
  %v2708 = vpack.c.b16 %v2609, %v2608
  %v2709 = vpack.c.b16 %v2611, %v2610
  %v2710 = vpack.c.b16 %v2613, %v2612
  %v2711 = vpack.c.b16 %v2615, %v2614
  %v2712 = vpack.c.b16 %v2617, %v2616
  %v2713 = vpack.c.b16 %v2619, %v2618
  %v2714 = vpack.c.b16 %v2621, %v2620
  %v2715 = vpack.c.b16 %v2623, %v2622
  %v2716 = vpack.c.b16 %v2625, %v2624
  %v2717 = vpack.c.b16 %v2627, %v2626
  %v2718 = vpack.c.b16 %v2629, %v2628
  %v2719 = vpack.c.b16 %v2631, %v2630
  %v2720 = vpack.c.b16 %v2633, %v2632
  %v2721 = vpack.c.b16 %v2635, %v2634
  %v2722 = vpack.c.b16 %v2637, %v2636
  %v2723 = vpack.c.b16 %v2639, %v2638
  %v2724 = vpack.c.b16 %v2641, %v2640
  %v2725 = vpack.c.b16 %v2643, %v2642
  %v2726 = vpack.c.b16 %v2645, %v2644
  %v2727 = vpack.c.b16 %v2647, %v2646
  %v2728 = vpack.c.b16 %v2649, %v2648
  %v2729 = vpack.c.b16 %v2651, %v2650
  %v2730 = vpack.c.b16 %v2653, %v2652
  %v2731 = vpack.c.b16 %v2655, %v2654
  %v2732 = vpack.c.b16 %v2657, %v2656
  %v2733 = vpack.c.b16 %v2659, %v2658
  %v2734 = vpack.c.b16 %v2661, %v2660
  %v2735 = vpack.c.b16 %v2663, %v2662
  %2808 = vmatpush.bf16.msra.mxu0 %v2671
  %2809 = vmatpush.bf16.msra.mxu0 %v2670
  %2810 = vmatpush.bf16.msra.mxu0 %v2669
  %2811 = vmatpush.bf16.msra.mxu0 %v2668
  %2812 = vmatpush.bf16.msra.mxu0 %v2667
  %2813 = vmatpush.bf16.msra.mxu0 %v2666
  %2814 = vmatpush.bf16.msra.mxu0 %v2665
  %2815 = vmatpush.bf16.msra.mxu0 %v2664
  %2816 = vmatmul.bf16.gmra.mxu0 %v2079
  %v2817 = vpop.f32.mrf.mxu0
  %v2818 = vadd.f32 %v2374, %v2817
  %v2819 = vpop.f32.mrf.mxu0
  %v2820 = vadd.f32 %v2374, %v2819
  %2821 = vmatmul.bf16.gmra.mxu0 %v2080
  %v2822 = vpop.f32.mrf.mxu0
  %v2823 = vadd.f32 %v2374, %v2822
  %v2824 = vpop.f32.mrf.mxu0
  %v2825 = vadd.f32 %v2374, %v2824
  %2826 = vmatmul.bf16.gmra.mxu0 %v2081
  %v2827 = vpop.f32.mrf.mxu0
  %v2828 = vadd.f32 %v2374, %v2827
  %v2829 = vpop.f32.mrf.mxu0
  %v2830 = vadd.f32 %v2374, %v2829
  %2831 = vmatmul.bf16.gmra.mxu0 %v2082
  %v2832 = vpop.f32.mrf.mxu0
  %v2833 = vadd.f32 %v2374, %v2832
  %v2834 = vpop.f32.mrf.mxu0
  %v2835 = vadd.f32 %v2374, %v2834
  %2836 = vdwg.mxu0
  %2837 = vmatpush.bf16.msra.mxu0 %v2679
  %2838 = vmatpush.bf16.msra.mxu0 %v2678
  %2839 = vmatpush.bf16.msra.mxu0 %v2677
  %2840 = vmatpush.bf16.msra.mxu0 %v2676
  %2841 = vmatpush.bf16.msra.mxu0 %v2675
  %2842 = vmatpush.bf16.msra.mxu0 %v2674
  %2843 = vmatpush.bf16.msra.mxu0 %v2673
  %2844 = vmatpush.bf16.msra.mxu0 %v2672
  %2845 = vmatmul.bf16.gmra.mxu0 %v2098
  %v2846 = vpop.f32.mrf.mxu0
  %v2847 = vadd.f32 %v2818, %v2846
  %v2848 = vpop.f32.mrf.mxu0
  %v2849 = vadd.f32 %v2820, %v2848
  %2850 = vmatmul.bf16.gmra.mxu0 %v2106
  %v2851 = vpop.f32.mrf.mxu0
  %v2852 = vadd.f32 %v2823, %v2851
  %v2853 = vpop.f32.mrf.mxu0
  %v2854 = vadd.f32 %v2825, %v2853
  %2855 = vmatmul.bf16.gmra.mxu0 %v2114
  %v2856 = vpop.f32.mrf.mxu0
  %v2857 = vadd.f32 %v2828, %v2856
  %v2858 = vpop.f32.mrf.mxu0
  %v2859 = vadd.f32 %v2830, %v2858
  %2860 = vmatmul.bf16.gmra.mxu0 %v2117
  %v2861 = vpop.f32.mrf.mxu0
  %v2862 = vadd.f32 %v2833, %v2861
  %v2863 = vpop.f32.mrf.mxu0
  %v2864 = vadd.f32 %v2835, %v2863
  %2865 = vdwg.mxu0
  %2866 = vmatpush.bf16.msra.mxu0 %v2687
  %2867 = vmatpush.bf16.msra.mxu0 %v2686
  %2868 = vmatpush.bf16.msra.mxu0 %v2685
  %2869 = vmatpush.bf16.msra.mxu0 %v2684
  %2870 = vmatpush.bf16.msra.mxu0 %v2683
  %2871 = vmatpush.bf16.msra.mxu0 %v2682
  %2872 = vmatpush.bf16.msra.mxu0 %v2681
  %2873 = vmatpush.bf16.msra.mxu0 %v2680
  %2874 = vmatmul.bf16.gmra.mxu0 %v2124
  %v2875 = vpop.f32.mrf.mxu0
  %v2876 = vadd.f32 %v2847, %v2875
  %v2877 = vpop.f32.mrf.mxu0
  %v2878 = vadd.f32 %v2849, %v2877
  %2879 = vmatmul.bf16.gmra.mxu0 %v2126
  %v2880 = vpop.f32.mrf.mxu0
  %v2881 = vadd.f32 %v2852, %v2880
  %v2882 = vpop.f32.mrf.mxu0
  %v2883 = vadd.f32 %v2854, %v2882
  %2884 = vmatmul.bf16.gmra.mxu0 %v2128
  %v2885 = vpop.f32.mrf.mxu0
  %v2886 = vadd.f32 %v2857, %v2885
  %v2887 = vpop.f32.mrf.mxu0
  %v2888 = vadd.f32 %v2859, %v2887
  %2889 = vmatmul.bf16.gmra.mxu0 %v2127
  %v2890 = vpop.f32.mrf.mxu0
  %v2891 = vadd.f32 %v2862, %v2890
  %v2892 = vpop.f32.mrf.mxu0
  %v2893 = vadd.f32 %v2864, %v2892
  %2894 = vdwg.mxu0
  %2895 = vmatpush.bf16.msra.mxu0 %v2695
  %2896 = vmatpush.bf16.msra.mxu0 %v2694
  %2897 = vmatpush.bf16.msra.mxu0 %v2693
  %2898 = vmatpush.bf16.msra.mxu0 %v2692
  %2899 = vmatpush.bf16.msra.mxu0 %v2691
  %2900 = vmatpush.bf16.msra.mxu0 %v2690
  %2901 = vmatpush.bf16.msra.mxu0 %v2689
  %2902 = vmatpush.bf16.msra.mxu0 %v2688
  %2903 = vmatmul.bf16.gmra.mxu0 %v2139
  %v2904 = vpop.f32.mrf.mxu0
  %v2905 = vadd.f32 %v2876, %v2904
  %v2906 = vpop.f32.mrf.mxu0
  %v2907 = vadd.f32 %v2878, %v2906
  %2908 = vmatmul.bf16.gmra.mxu0 %v2143
  %v2909 = vpop.f32.mrf.mxu0
  %v2910 = vadd.f32 %v2881, %v2909
  %v2911 = vpop.f32.mrf.mxu0
  %v2912 = vadd.f32 %v2883, %v2911
  %2913 = vmatmul.bf16.gmra.mxu0 %v2147
  %v2914 = vpop.f32.mrf.mxu0
  %v2915 = vadd.f32 %v2886, %v2914
  %v2916 = vpop.f32.mrf.mxu0
  %v2917 = vadd.f32 %v2888, %v2916
  %2918 = vmatmul.bf16.gmra.mxu0 %v2146
  %v2919 = vpop.f32.mrf.mxu0
  %v2920 = vadd.f32 %v2891, %v2919
  %v2921 = vpop.f32.mrf.mxu0
  %v2922 = vadd.f32 %v2893, %v2921
  %2923 = vdwg.mxu0
  %2924 = vmatpush.bf16.msra.mxu0 %v2703
  %2925 = vmatpush.bf16.msra.mxu0 %v2702
  %2926 = vmatpush.bf16.msra.mxu0 %v2701
  %2927 = vmatpush.bf16.msra.mxu0 %v2700
  %2928 = vmatpush.bf16.msra.mxu0 %v2699
  %2929 = vmatpush.bf16.msra.mxu0 %v2698
  %2930 = vmatpush.bf16.msra.mxu0 %v2697
  %2931 = vmatpush.bf16.msra.mxu0 %v2696
  %2932 = vmatmul.bf16.gmra.mxu0 %v2154
  %v2933 = vpop.f32.mrf.mxu0
  %v2934 = vadd.f32 %v2905, %v2933
  %v2935 = vpop.f32.mrf.mxu0
  %v2936 = vadd.f32 %v2907, %v2935
  %2937 = vmatmul.bf16.gmra.mxu0 %v2156
  %v2938 = vpop.f32.mrf.mxu0
  %v2939 = vadd.f32 %v2910, %v2938
  %v2940 = vpop.f32.mrf.mxu0
  %v2941 = vadd.f32 %v2912, %v2940
  %2942 = vmatmul.bf16.gmra.mxu0 %v2158
  %v2943 = vpop.f32.mrf.mxu0
  %v2944 = vadd.f32 %v2915, %v2943
  %v2945 = vpop.f32.mrf.mxu0
  %v2946 = vadd.f32 %v2917, %v2945
  %2947 = vmatmul.bf16.gmra.mxu0 %v2157
  %v2948 = vpop.f32.mrf.mxu0
  %v2949 = vadd.f32 %v2920, %v2948
  %v2950 = vpop.f32.mrf.mxu0
  %v2951 = vadd.f32 %v2922, %v2950
  %2952 = vdwg.mxu0
  %2953 = vmatpush.bf16.msra.mxu0 %v2711
  %2954 = vmatpush.bf16.msra.mxu0 %v2710
  %2955 = vmatpush.bf16.msra.mxu0 %v2709
  %2956 = vmatpush.bf16.msra.mxu0 %v2708
  %2957 = vmatpush.bf16.msra.mxu0 %v2707
  %2958 = vmatpush.bf16.msra.mxu0 %v2706
  %2959 = vmatpush.bf16.msra.mxu0 %v2705
  %2960 = vmatpush.bf16.msra.mxu0 %v2704
  %2961 = vmatmul.bf16.gmra.mxu0 %v2169
  %v2962 = vpop.f32.mrf.mxu0
  %v2963 = vadd.f32 %v2934, %v2962
  %v2964 = vpop.f32.mrf.mxu0
  %v2965 = vadd.f32 %v2936, %v2964
  %2966 = vmatmul.bf16.gmra.mxu0 %v2173
  %v2967 = vpop.f32.mrf.mxu0
  %v2968 = vadd.f32 %v2939, %v2967
  %v2969 = vpop.f32.mrf.mxu0
  %v2970 = vadd.f32 %v2941, %v2969
  %2971 = vmatmul.bf16.gmra.mxu0 %v2177
  %v2972 = vpop.f32.mrf.mxu0
  %v2973 = vadd.f32 %v2944, %v2972
  %v2974 = vpop.f32.mrf.mxu0
  %v2975 = vadd.f32 %v2946, %v2974
  %2976 = vmatmul.bf16.gmra.mxu0 %v2176
  %v2977 = vpop.f32.mrf.mxu0
  %v2978 = vadd.f32 %v2949, %v2977
  %v2979 = vpop.f32.mrf.mxu0
  %v2980 = vadd.f32 %v2951, %v2979
  %2981 = vdwg.mxu0
  %2982 = vmatpush.bf16.msra.mxu0 %v2719
  %2983 = vmatpush.bf16.msra.mxu0 %v2718
  %2984 = vmatpush.bf16.msra.mxu0 %v2717
  %2985 = vmatpush.bf16.msra.mxu0 %v2716
  %2986 = vmatpush.bf16.msra.mxu0 %v2715
  %2987 = vmatpush.bf16.msra.mxu0 %v2714
  %2988 = vmatpush.bf16.msra.mxu0 %v2713
  %2989 = vmatpush.bf16.msra.mxu0 %v2712
  %2990 = vmatmul.bf16.gmra.mxu0 %v2184
  %v2991 = vpop.f32.mrf.mxu0
  %v2992 = vadd.f32 %v2963, %v2991
  %v2993 = vpop.f32.mrf.mxu0
  %v2994 = vadd.f32 %v2965, %v2993
  %2995 = vmatmul.bf16.gmra.mxu0 %v2186
  %v2996 = vpop.f32.mrf.mxu0
  %v2997 = vadd.f32 %v2968, %v2996
  %v2998 = vpop.f32.mrf.mxu0
  %v2999 = vadd.f32 %v2970, %v2998
  %3000 = vmatmul.bf16.gmra.mxu0 %v2188
  %v3001 = vpop.f32.mrf.mxu0
  %v3002 = vadd.f32 %v2973, %v3001
  %v3003 = vpop.f32.mrf.mxu0
  %v3004 = vadd.f32 %v2975, %v3003
  %3005 = vmatmul.bf16.gmra.mxu0 %v2187
  %v3006 = vpop.f32.mrf.mxu0
  %v3007 = vadd.f32 %v2978, %v3006
  %v3008 = vpop.f32.mrf.mxu0
  %v3009 = vadd.f32 %v2980, %v3008
  %3010 = vdwg.mxu0
  %3011 = vmatpush.bf16.msra.mxu0 %v2727
  %3012 = vmatpush.bf16.msra.mxu0 %v2726
  %3013 = vmatpush.bf16.msra.mxu0 %v2725
  %3014 = vmatpush.bf16.msra.mxu0 %v2724
  %3015 = vmatpush.bf16.msra.mxu0 %v2723
  %3016 = vmatpush.bf16.msra.mxu0 %v2722
  %3017 = vmatpush.bf16.msra.mxu0 %v2721
  %3018 = vmatpush.bf16.msra.mxu0 %v2720
  %3019 = vmatmul.bf16.gmra.mxu0 %v2202
  %v3020 = vpop.f32.mrf.mxu0
  %v3021 = vadd.f32 %v2992, %v3020
  %v3022 = vpop.f32.mrf.mxu0
  %v3023 = vadd.f32 %v2994, %v3022
  %3024 = vmatmul.bf16.gmra.mxu0 %v2206
  %v3025 = vpop.f32.mrf.mxu0
  %v3026 = vadd.f32 %v2997, %v3025
  %v3027 = vpop.f32.mrf.mxu0
  %v3028 = vadd.f32 %v2999, %v3027
  %3029 = vmatmul.bf16.gmra.mxu0 %v2210
  %v3030 = vpop.f32.mrf.mxu0
  %v3031 = vadd.f32 %v3002, %v3030
  %v3032 = vpop.f32.mrf.mxu0
  %v3033 = vadd.f32 %v3004, %v3032
  %3034 = vmatmul.bf16.gmra.mxu0 %v2215
  %v3035 = vpop.f32.mrf.mxu0
  %v3036 = vadd.f32 %v3007, %v3035
  %v3037 = vpop.f32.mrf.mxu0
  %v3038 = vadd.f32 %v3009, %v3037
  %3039 = vdwg.mxu0
  %3040 = vmatpush.bf16.msra.mxu0 %v2735
  %3041 = vmatpush.bf16.msra.mxu0 %v2734
  %3042 = vmatpush.bf16.msra.mxu0 %v2733
  %3043 = vmatpush.bf16.msra.mxu0 %v2732
  %3044 = vmatpush.bf16.msra.mxu0 %v2731
  %3045 = vmatpush.bf16.msra.mxu0 %v2730
  %3046 = vmatpush.bf16.msra.mxu0 %v2729
  %3047 = vmatpush.bf16.msra.mxu0 %v2728
  %3048 = vmatmul.bf16.gmra.mxu0 %v2220
  %v3049 = vpop.f32.mrf.mxu0
  %v3050 = vadd.f32 %v3021, %v3049
  %v3051 = vpop.f32.mrf.mxu0
  %v3052 = vadd.f32 %v3023, %v3051
  %3053 = vmatmul.bf16.gmra.mxu0 %v2221
  %v3054 = vpop.f32.mrf.mxu0
  %v3055 = vadd.f32 %v3026, %v3054
  %v3056 = vpop.f32.mrf.mxu0
  %v3057 = vadd.f32 %v3028, %v3056
  %3058 = vmatmul.bf16.gmra.mxu0 %v2222
  %v3059 = vpop.f32.mrf.mxu0
  %v3060 = vadd.f32 %v3031, %v3059
  %v3061 = vpop.f32.mrf.mxu0
  %v3062 = vadd.f32 %v3033, %v3061
  %3063 = vmatmul.bf16.gmra.mxu0 %v2223
  %v3064 = vpop.f32.mrf.mxu0
  %v3065 = vadd.f32 %v3036, %v3064
  %v3066 = vpop.f32.mrf.mxu0
  %v3067 = vadd.f32 %v3038, %v3066
  %3068 = vdwg.mxu0
  %v3069 = vmul.f32 %v3050, 0.05
  %v3070 = vmul.f32 %v3052, 0.05
  %v3071 = vmul.f32 %v3055, 0.05
  %v3072 = vmul.f32 %v3057, 0.05
  %v3073 = vmul.f32 %v3060, 0.05
  %v3074 = vmul.f32 %v3062, 0.05
  %v3075 = vmul.f32 %v3065, 0.05
  %v3076 = vmul.f32 %v3067, 0.05
  %v3077 = vmax.f32 %v3050, %v3069
  %v3078 = vmax.f32 %v3052, %v3070
  %v3079 = vmax.f32 %v3055, %v3071
  %v3080 = vmax.f32 %v3057, %v3072
  %v3081 = vmax.f32 %v3060, %v3073
  %v3082 = vmax.f32 %v3062, %v3074
  %v3083 = vmax.f32 %v3065, %v3075
  %v3084 = vmax.f32 %v3067, %v3076
  %v3085 = vpack.c.bf16 %v3077, %v3077
  %v3086 = vpack.c.bf16 %v3078, %v3078
  %v3087 = vpack.c.bf16 %v3079, %v3079
  %v3088 = vpack.c.bf16 %v3080, %v3080
  %v3089 = vpack.c.bf16 %v3081, %v3081
  %v3090 = vpack.c.bf16 %v3082, %v3082
  %v3091 = vpack.c.bf16 %v3083, %v3083
  %v3092 = vpack.c.bf16 %v3084, %v3084
  %v3093 = vld [vmem:[%s6] sm:$0xf]
  %v3094 = vld [vmem:[%s6 + $0x4] sm:$0xf]
  %v3095 = vld [vmem:[%s6 + $0x8] sm:$0xf]
  %v3096 = vld [vmem:[%s6 + $0xc] sm:$0xf]
  %v3097 = vld [vmem:[%s6 + $0x10] sm:$0xf]
  %v3098 = vld [vmem:[%s6 + $0x14] sm:$0xf]
  %v3099 = vld [vmem:[%s6 + $0x18] sm:$0xf]
  %v3100 = vld [vmem:[%s6 + $0x1c] sm:$0xf]
  %v3101 = vld [vmem:[%s6 + $0x20] sm:$0xf]
  %v3102 = vld [vmem:[%s6 + $0x24] sm:$0xf]
  %v3103 = vld [vmem:[%s6 + $0x28] sm:$0xf]
  %v3104 = vld [vmem:[%s6 + $0x2c] sm:$0xf]
  %v3105 = vld [vmem:[%s6 + $0x30] sm:$0xf]
  %v3106 = vld [vmem:[%s6 + $0x34] sm:$0xf]
  %v3107 = vld [vmem:[%s6 + $0x38] sm:$0xf]
  %v3108 = vld [vmem:[%s6 + $0x3c] sm:$0xf]
  %v3116 = vunpack.c.l.b16 %v3085
  %v3117 = vunpack.c.l.b16 %v3086
  %v3118 = vunpack.c.l.b16 %v3087
  %v3119 = vunpack.c.l.b16 %v3088
  %v3120 = vunpack.c.l.b16 %v3089
  %v3121 = vunpack.c.l.b16 %v3090
  %v3122 = vunpack.c.l.b16 %v3091
  %v3123 = vpack.c.b16 %v3117, %v3116
  %v3124 = vpack.c.b16 %v3119, %v3118
  %v3125 = vpack.c.b16 %v3121, %v3120
  %v3126 = vpack.c.b16 %v3122, %v3122
  %v3128 = vshrl.u32 %v3123, 16
  %v3130 = vshll.u32 %v3123, 16
  %v3132 = vrot.slane %v3130, 1
  %v3133 = vor.u32 %v3128, %v3132
  %v3135 = vshll.u32 %v3124, 16
  %v3137 = vrot.slane %v3135, 1
  %v3138 = vsel %vm260, %v3133, %v3137
  %v3139 = vshrl.u32 %v3124, 16
  %v3141 = vor.u32 %v3139, %v3137
  %v3143 = vshll.u32 %v3125, 16
  %v3145 = vrot.slane %v3143, 1
  %v3146 = vsel %vm260, %v3141, %v3145
  %v3147 = vshrl.u32 %v3125, 16
  %v3149 = vor.u32 %v3147, %v3145
  %v3151 = vshll.u32 %v3126, 16
  %v3153 = vrot.slane %v3151, 1
  %v3154 = vsel %vm260, %v3149, %v3153
  %v3155 = vshrl.u32 %v3126, 16
  %v3157 = vor.u32 %v3155, %v3153
  %v3166 = vunpack.c.l.b16 %v3101
  %v3167 = vunpack.c.l.b16 %v3102
  %v3168 = vunpack.c.l.b16 %v3103
  %v3169 = vunpack.c.l.b16 %v3104
  %v3170 = vunpack.c.l.b16 %v3105
  %v3171 = vunpack.c.l.b16 %v3106
  %v3172 = vunpack.c.l.b16 %v3107
  %v3173 = vunpack.c.l.b16 %v3108
  %v3174 = vpack.c.b16 %v3167, %v3166
  %v3175 = vpack.c.b16 %v3169, %v3168
  %v3176 = vpack.c.b16 %v3171, %v3170
  %v3177 = vpack.c.b16 %v3173, %v3172
  %vm3182 = vcmask 523264
  %v3184 = vsel %vm3182, %v3138, 0
  %v3187 = vsel %vm3182, %v3146, 0
  %v3190 = vsel %vm3182, %v3154, 0
  %v3193 = vsel %vm3182, %v3157, 0
  %3195 = vmatpush.bf16.msra.mxu0 0
  %3196 = vmatpush.bf16.msra.mxu0 0
  %3197 = vmatpush.bf16.msra.mxu0 0
  %3198 = vmatpush.bf16.msra.mxu0 0
  %3199 = vmatpush.bf16.msra.mxu0 %v3177
  %3200 = vmatpush.bf16.msra.mxu0 %v3176
  %3201 = vmatpush.bf16.msra.mxu0 %v3175
  %3202 = vmatpush.bf16.msra.mxu0 %v3174
  %3203 = vmatmul.bf16.gmra.mxu0 %v3184
  %v3204 = vpop.f32.mrf.mxu0
  %v3205 = vadd.f32 0.0, %v3204
  %v3206 = vpop.f32.mrf.mxu0
  %v3207 = vadd.f32 0.0, %v3206
  %3208 = vmatmul.bf16.gmra.mxu0 %v3187
  %v3209 = vpop.f32.mrf.mxu0
  %v3210 = vadd.f32 0.0, %v3209
  %v3211 = vpop.f32.mrf.mxu0
  %v3212 = vadd.f32 0.0, %v3211
  %3213 = vmatmul.bf16.gmra.mxu0 %v3190
  %v3214 = vpop.f32.mrf.mxu0
  %v3215 = vadd.f32 0.0, %v3214
  %v3216 = vpop.f32.mrf.mxu0
  %v3217 = vadd.f32 0.0, %v3216
  %3218 = vmatmul.bf16.gmra.mxu0 %v3193
  %v3219 = vpop.f32.mrf.mxu0
  %v3220 = vadd.f32 0.0, %v3219
  %v3221 = vpop.f32.mrf.mxu0
  %3222 = vdwg.mxu0
  %v3231 = vunpack.c.l.b16 %v3093
  %v3232 = vunpack.c.l.b16 %v3094
  %v3233 = vunpack.c.l.b16 %v3095
  %v3234 = vunpack.c.l.b16 %v3096
  %v3235 = vunpack.c.l.b16 %v3097
  %v3236 = vunpack.c.l.b16 %v3098
  %v3237 = vunpack.c.l.b16 %v3099
  %v3238 = vunpack.c.l.b16 %v3100
  %v3239 = vpack.c.b16 %v3232, %v3231
  %v3240 = vpack.c.b16 %v3234, %v3233
  %v3241 = vpack.c.b16 %v3236, %v3235
  %v3242 = vpack.c.b16 %v3238, %v3237
  %v3247 = vsel %vm3182, %v3123, 0
  %v3249 = vsel %vm3182, %v3124, 0
  %v3251 = vsel %vm3182, %v3125, 0
  %v3253 = vsel %vm3182, %v3126, 0
  %3255 = vmatpush.bf16.msra.mxu0 0
  %3256 = vmatpush.bf16.msra.mxu0 0
  %3257 = vmatpush.bf16.msra.mxu0 0
  %3258 = vmatpush.bf16.msra.mxu0 0
  %3259 = vmatpush.bf16.msra.mxu0 %v3242
  %3260 = vmatpush.bf16.msra.mxu0 %v3241
  %3261 = vmatpush.bf16.msra.mxu0 %v3240
  %3262 = vmatpush.bf16.msra.mxu0 %v3239
  %3263 = vmatmul.bf16.gmra.mxu0 %v3247
  %v3264 = vpop.f32.mrf.mxu0
  %v3265 = vadd.f32 %v3205, %v3264
  %v3266 = vpop.f32.mrf.mxu0
  %v3267 = vadd.f32 %v3207, %v3266
  %3268 = vmatmul.bf16.gmra.mxu0 %v3249
  %v3269 = vpop.f32.mrf.mxu0
  %v3270 = vadd.f32 %v3210, %v3269
  %v3271 = vpop.f32.mrf.mxu0
  %v3272 = vadd.f32 %v3212, %v3271
  %3273 = vmatmul.bf16.gmra.mxu0 %v3251
  %v3274 = vpop.f32.mrf.mxu0
  %v3275 = vadd.f32 %v3215, %v3274
  %v3276 = vpop.f32.mrf.mxu0
  %v3277 = vadd.f32 %v3217, %v3276
  %3278 = vmatmul.bf16.gmra.mxu0 %v3253
  %v3279 = vpop.f32.mrf.mxu0
  %v3280 = vadd.f32 %v3220, %v3279
  %v3281 = vpop.f32.mrf.mxu0
  %3282 = vdwg.mxu0
  %v3283 = vld [vmem:[%s6 + $0x40] sm:$0xf]
  %v3284 = vld [vmem:[%s6 + $0x44] sm:$0xf]
  %v3285 = vld [vmem:[%s6 + $0x48] sm:$0xf]
  %v3286 = vld [vmem:[%s6 + $0x4c] sm:$0xf]
  %v3287 = vld [vmem:[%s6 + $0x50] sm:$0xf]
  %v3288 = vld [vmem:[%s6 + $0x54] sm:$0xf]
  %v3289 = vld [vmem:[%s6 + $0x58] sm:$0xf]
  %v3290 = vld [vmem:[%s6 + $0x5c] sm:$0xf]
  %v3291 = vrot.slane %v3123, 1
  %v3292 = vrot.slane %v3124, 1
  %v3293 = vsel %vm305, %v3291, %v3292
  %v3294 = vrot.slane %v3125, 1
  %v3295 = vsel %vm305, %v3292, %v3294
  %v3296 = vrot.slane %v3126, 1
  %v3297 = vsel %vm305, %v3294, %v3296
  %v3306 = vunpack.c.l.b16 %v3283
  %v3307 = vunpack.c.l.b16 %v3284
  %v3308 = vunpack.c.l.b16 %v3285
  %v3309 = vunpack.c.l.b16 %v3286
  %v3310 = vunpack.c.l.b16 %v3287
  %v3311 = vunpack.c.l.b16 %v3288
  %v3312 = vunpack.c.l.b16 %v3289
  %v3313 = vunpack.c.l.b16 %v3290
  %v3314 = vpack.c.b16 %v3307, %v3306
  %v3315 = vpack.c.b16 %v3309, %v3308
  %v3316 = vpack.c.b16 %v3311, %v3310
  %v3317 = vpack.c.b16 %v3313, %v3312
  %v3323 = vsel %vm3182, %v3293, 0
  %v3326 = vsel %vm3182, %v3295, 0
  %v3329 = vsel %vm3182, %v3297, 0
  %v3332 = vsel %vm3182, %v3296, 0
  %3334 = vmatpush.bf16.msra.mxu0 0
  %3335 = vmatpush.bf16.msra.mxu0 0
  %3336 = vmatpush.bf16.msra.mxu0 0
  %3337 = vmatpush.bf16.msra.mxu0 0
  %3338 = vmatpush.bf16.msra.mxu0 %v3317
  %3339 = vmatpush.bf16.msra.mxu0 %v3316
  %3340 = vmatpush.bf16.msra.mxu0 %v3315
  %3341 = vmatpush.bf16.msra.mxu0 %v3314
  %3342 = vmatmul.bf16.gmra.mxu0 %v3323
  %v3343 = vpop.f32.mrf.mxu0
  %v3344 = vadd.f32 0.0, %v3343
  %v3345 = vpop.f32.mrf.mxu0
  %v3346 = vadd.f32 0.0, %v3345
  %3347 = vmatmul.bf16.gmra.mxu0 %v3326
  %v3348 = vpop.f32.mrf.mxu0
  %v3349 = vadd.f32 0.0, %v3348
  %v3350 = vpop.f32.mrf.mxu0
  %v3351 = vadd.f32 0.0, %v3350
  %3352 = vmatmul.bf16.gmra.mxu0 %v3329
  %v3353 = vpop.f32.mrf.mxu0
  %v3354 = vadd.f32 0.0, %v3353
  %v3355 = vpop.f32.mrf.mxu0
  %v3356 = vadd.f32 0.0, %v3355
  %3357 = vmatmul.bf16.gmra.mxu0 %v3332
  %v3358 = vpop.f32.mrf.mxu0
  %v3359 = vadd.f32 0.0, %v3358
  %v3360 = vpop.f32.mrf.mxu0
  %3361 = vdwg.mxu0
  %v3362 = vadd.f32 %v3265, %v3344
  %v3363 = vadd.f32 %v3267, %v3346
  %v3364 = vadd.f32 %v3270, %v3349
  %v3365 = vadd.f32 %v3272, %v3351
  %v3366 = vadd.f32 %v3275, %v3354
  %v3367 = vadd.f32 %v3277, %v3356
  %v3368 = vadd.f32 %v3280, %v3359
  %v3369 = vld [vmem:[%s6 + $0x60] sm:$0xf]
  %v3370 = vld [vmem:[%s6 + $0x64] sm:$0xf]
  %v3371 = vld [vmem:[%s6 + $0x68] sm:$0xf]
  %v3372 = vld [vmem:[%s6 + $0x6c] sm:$0xf]
  %v3373 = vld [vmem:[%s6 + $0x70] sm:$0xf]
  %v3374 = vld [vmem:[%s6 + $0x74] sm:$0xf]
  %v3375 = vld [vmem:[%s6 + $0x78] sm:$0xf]
  %v3376 = vld [vmem:[%s6 + $0x7c] sm:$0xf]
  %v3378 = vunpack.c.l.b16 %v3092
  %v3379 = vpack.c.b16 %v3378, %v3122
  %v3380 = vrot.slane %v3128, 1
  %v3381 = vrot.slane %v3130, 2
  %v3382 = vor.u32 %v3380, %v3381
  %v3383 = vrot.slane %v3139, 1
  %v3384 = vrot.slane %v3135, 2
  %v3385 = vor.u32 %v3383, %v3384
  %v3386 = vsel %vm320, %v3382, %v3385
  %v3387 = vrot.slane %v3147, 1
  %v3388 = vrot.slane %v3143, 2
  %v3389 = vor.u32 %v3387, %v3388
  %v3390 = vsel %vm320, %v3385, %v3389
  %v3392 = vshrl.u32 %v3379, 16
  %v3394 = vrot.slane %v3392, 1
  %v3395 = vshll.u32 %v3379, 16
  %v3397 = vrot.slane %v3395, 2
  %v3398 = vor.u32 %v3394, %v3397
  %v3399 = vsel %vm320, %v3389, %v3398
  %v3408 = vunpack.c.l.b16 %v3369
  %v3409 = vunpack.c.l.b16 %v3370
  %v3410 = vunpack.c.l.b16 %v3371
  %v3411 = vunpack.c.l.b16 %v3372
  %v3412 = vunpack.c.l.b16 %v3373
  %v3413 = vunpack.c.l.b16 %v3374
  %v3414 = vunpack.c.l.b16 %v3375
  %v3415 = vunpack.c.l.b16 %v3376
  %v3416 = vpack.c.b16 %v3409, %v3408
  %v3417 = vpack.c.b16 %v3411, %v3410
  %v3418 = vpack.c.b16 %v3413, %v3412
  %v3419 = vpack.c.b16 %v3415, %v3414
  %v3425 = vsel %vm3182, %v3386, 0
  %v3428 = vsel %vm3182, %v3390, 0
  %v3431 = vsel %vm3182, %v3399, 0
  %v3434 = vsel %vm3182, %v3398, 0
  %3436 = vmatpush.bf16.msra.mxu0 0
  %3437 = vmatpush.bf16.msra.mxu0 0
  %3438 = vmatpush.bf16.msra.mxu0 0
  %3439 = vmatpush.bf16.msra.mxu0 0
  %3440 = vmatpush.bf16.msra.mxu0 %v3419
  %3441 = vmatpush.bf16.msra.mxu0 %v3418
  %3442 = vmatpush.bf16.msra.mxu0 %v3417
  %3443 = vmatpush.bf16.msra.mxu0 %v3416
  %3444 = vmatmul.bf16.gmra.mxu0 %v3425
  %v3445 = vpop.f32.mrf.mxu0
  %v3446 = vadd.f32 0.0, %v3445
  %v3447 = vpop.f32.mrf.mxu0
  %v3448 = vadd.f32 0.0, %v3447
  %3449 = vmatmul.bf16.gmra.mxu0 %v3428
  %v3450 = vpop.f32.mrf.mxu0
  %v3451 = vadd.f32 0.0, %v3450
  %v3452 = vpop.f32.mrf.mxu0
  %v3453 = vadd.f32 0.0, %v3452
  %3454 = vmatmul.bf16.gmra.mxu0 %v3431
  %v3455 = vpop.f32.mrf.mxu0
  %v3456 = vadd.f32 0.0, %v3455
  %v3457 = vpop.f32.mrf.mxu0
  %v3458 = vadd.f32 0.0, %v3457
  %3459 = vmatmul.bf16.gmra.mxu0 %v3434
  %v3460 = vpop.f32.mrf.mxu0
  %v3461 = vadd.f32 0.0, %v3460
  %v3462 = vpop.f32.mrf.mxu0
  %3463 = vdwg.mxu0
  %v3464 = vadd.f32 %v3362, %v3446
  %v3465 = vadd.f32 %v3363, %v3448
  %v3466 = vadd.f32 %v3364, %v3451
  %v3467 = vadd.f32 %v3365, %v3453
  %v3468 = vadd.f32 %v3366, %v3456
  %v3469 = vadd.f32 %v3367, %v3458
  %v3470 = vadd.f32 %v3368, %v3461
  %v3471 = vld [vmem:[%s6 + $0x80] sm:$0xf]
  %v3472 = vld [vmem:[%s6 + $0x84] sm:$0xf]
  %v3473 = vld [vmem:[%s6 + $0x88] sm:$0xf]
  %v3474 = vld [vmem:[%s6 + $0x8c] sm:$0xf]
  %v3475 = vld [vmem:[%s6 + $0x90] sm:$0xf]
  %v3476 = vld [vmem:[%s6 + $0x94] sm:$0xf]
  %v3477 = vld [vmem:[%s6 + $0x98] sm:$0xf]
  %v3478 = vld [vmem:[%s6 + $0x9c] sm:$0xf]
  %v3479 = vrot.slane %v3123, 2
  %v3480 = vrot.slane %v3124, 2
  %v3481 = vsel %vm345, %v3479, %v3480
  %v3482 = vrot.slane %v3125, 2
  %v3483 = vsel %vm345, %v3480, %v3482
  %v3484 = vrot.slane %v3379, 2
  %v3485 = vsel %vm345, %v3482, %v3484
  %v3494 = vunpack.c.l.b16 %v3471
  %v3495 = vunpack.c.l.b16 %v3472
  %v3496 = vunpack.c.l.b16 %v3473
  %v3497 = vunpack.c.l.b16 %v3474
  %v3498 = vunpack.c.l.b16 %v3475
  %v3499 = vunpack.c.l.b16 %v3476
  %v3500 = vunpack.c.l.b16 %v3477
  %v3501 = vunpack.c.l.b16 %v3478
  %v3502 = vpack.c.b16 %v3495, %v3494
  %v3503 = vpack.c.b16 %v3497, %v3496
  %v3504 = vpack.c.b16 %v3499, %v3498
  %v3505 = vpack.c.b16 %v3501, %v3500
  %v3511 = vsel %vm3182, %v3481, 0
  %v3514 = vsel %vm3182, %v3483, 0
  %v3517 = vsel %vm3182, %v3485, 0
  %v3520 = vsel %vm3182, %v3484, 0
  %3522 = vmatpush.bf16.msra.mxu0 0
  %3523 = vmatpush.bf16.msra.mxu0 0
  %3524 = vmatpush.bf16.msra.mxu0 0
  %3525 = vmatpush.bf16.msra.mxu0 0
  %3526 = vmatpush.bf16.msra.mxu0 %v3505
  %3527 = vmatpush.bf16.msra.mxu0 %v3504
  %3528 = vmatpush.bf16.msra.mxu0 %v3503
  %3529 = vmatpush.bf16.msra.mxu0 %v3502
  %3530 = vmatmul.bf16.gmra.mxu0 %v3511
  %v3531 = vpop.f32.mrf.mxu0
  %v3532 = vadd.f32 0.0, %v3531
  %v3533 = vpop.f32.mrf.mxu0
  %v3534 = vadd.f32 0.0, %v3533
  %3535 = vmatmul.bf16.gmra.mxu0 %v3514
  %v3536 = vpop.f32.mrf.mxu0
  %v3537 = vadd.f32 0.0, %v3536
  %v3538 = vpop.f32.mrf.mxu0
  %v3539 = vadd.f32 0.0, %v3538
  %3540 = vmatmul.bf16.gmra.mxu0 %v3517
  %v3541 = vpop.f32.mrf.mxu0
  %v3542 = vadd.f32 0.0, %v3541
  %v3543 = vpop.f32.mrf.mxu0
  %v3544 = vadd.f32 0.0, %v3543
  %3545 = vmatmul.bf16.gmra.mxu0 %v3520
  %v3546 = vpop.f32.mrf.mxu0
  %v3547 = vadd.f32 0.0, %v3546
  %v3548 = vpop.f32.mrf.mxu0
  %3549 = vdwg.mxu0
  %v3550 = vadd.f32 %v3464, %v3532
  %v3551 = vadd.f32 %v3465, %v3534
  %v3552 = vadd.f32 %v3466, %v3537
  %v3553 = vadd.f32 %v3467, %v3539
  %v3554 = vadd.f32 %v3468, %v3542
  %v3555 = vadd.f32 %v3469, %v3544
  %v3556 = vadd.f32 %v3470, %v3547
  %v3557 = vld [vmem:[%s7] sm:$0x1]
  %v3559 = vperm.slane %v3557, 0
  %v3561 = vadd.f32 %v3550, %v3559
  %v3562 = vadd.f32 %v3551, %v3559
  %v3563 = vadd.f32 %v3552, %v3559
  %v3564 = vadd.f32 %v3553, %v3559
  %v3565 = vadd.f32 %v3554, %v3559
  %v3566 = vadd.f32 %v3555, %v3559
  %v3567 = vadd.f32 %v3556, %v3559
  %v3568 = vmul.f32 %v3561, 0.05
  %v3569 = vmul.f32 %v3562, 0.05
  %v3570 = vmul.f32 %v3563, 0.05
  %v3571 = vmul.f32 %v3564, 0.05
  %v3572 = vmul.f32 %v3565, 0.05
  %v3573 = vmul.f32 %v3566, 0.05
  %v3574 = vmul.f32 %v3567, 0.05
  %v3575 = vmax.f32 %v3561, %v3568
  %v3576 = vmax.f32 %v3562, %v3569
  %v3577 = vmax.f32 %v3563, %v3570
  %v3578 = vmax.f32 %v3564, %v3571
  %v3579 = vmax.f32 %v3565, %v3572
  %v3580 = vmax.f32 %v3566, %v3573
  %v3581 = vmax.f32 %v3567, %v3574
  %v3582 = vpack.c.bf16 %v3575, %v3575
  %v3583 = vpack.c.bf16 %v3576, %v3576
  %v3584 = vpack.c.bf16 %v3577, %v3577
  %v3585 = vpack.c.bf16 %v3578, %v3578
  %v3586 = vpack.c.bf16 %v3579, %v3579
  %v3587 = vpack.c.bf16 %v3580, %v3580
  %v3588 = vpack.c.bf16 %v3581, %v3581
  %v3589 = vld [vmem:[%s8] sm:$0xf]
  %v3590 = vld [vmem:[%s8 + $0x4] sm:$0xf]
  %v3591 = vld [vmem:[%s8 + $0x8] sm:$0xf]
  %v3592 = vld [vmem:[%s8 + $0xc] sm:$0xf]
  %v3593 = vld [vmem:[%s8 + $0x10] sm:$0xf]
  %v3594 = vld [vmem:[%s8 + $0x14] sm:$0xf]
  %v3595 = vld [vmem:[%s8 + $0x18] sm:$0xf]
  %v3596 = vld [vmem:[%s8 + $0x1c] sm:$0xf]
  %v3604 = vunpack.c.l.b16 %v3582
  %v3605 = vunpack.c.l.b16 %v3583
  %v3606 = vunpack.c.l.b16 %v3584
  %v3607 = vunpack.c.l.b16 %v3585
  %v3608 = vunpack.c.l.b16 %v3586
  %v3609 = vunpack.c.l.b16 %v3587
  %v3610 = vunpack.c.l.b16 %v3588
  %v3611 = vpack.c.b16 %v3605, %v3604
  %v3612 = vpack.c.b16 %v3607, %v3606
  %v3613 = vpack.c.b16 %v3609, %v3608
  %v3614 = vpack.c.b16 %v3610, %v3610
  %v3616 = vshrl.u32 %v3611, 16
  %v3618 = vshll.u32 %v3611, 16
  %v3620 = vrot.slane %v3618, 1
  %v3621 = vor.u32 %v3616, %v3620
  %v3623 = vshll.u32 %v3612, 16
  %v3625 = vrot.slane %v3623, 1
  %v3626 = vsel %vm260, %v3621, %v3625
  %v3627 = vshrl.u32 %v3612, 16
  %v3629 = vor.u32 %v3627, %v3625
  %v3631 = vshll.u32 %v3613, 16
  %v3633 = vrot.slane %v3631, 1
  %v3634 = vsel %vm260, %v3629, %v3633
  %v3635 = vshrl.u32 %v3613, 16
  %v3637 = vor.u32 %v3635, %v3633
  %v3639 = vshll.u32 %v3614, 16
  %v3641 = vrot.slane %v3639, 1
  %v3642 = vsel %vm260, %v3637, %v3641
  %v3643 = vshrl.u32 %v3614, 16
  %v3645 = vor.u32 %v3643, %v3641
  %v3650 = vunpack.c.l.b16 %v3593
  %v3651 = vunpack.c.l.b16 %v3594
  %v3652 = vunpack.c.l.b16 %v3595
  %v3653 = vunpack.c.l.b16 %v3596
  %v3654 = vpack.c.b16 %v3651, %v3650
  %v3655 = vpack.c.b16 %v3653, %v3652
  %vm3658 = vcmask 261120
  %v3660 = vsel %vm3658, %v3626, 0
  %v3663 = vsel %vm3658, %v3634, 0
  %v3666 = vsel %vm3658, %v3642, 0
  %v3669 = vsel %vm3658, %v3645, 0
  %3671 = vmatpush.bf16.msra.mxu0 0
  %3672 = vmatpush.bf16.msra.mxu0 0
  %3673 = vmatpush.bf16.msra.mxu0 0
  %3674 = vmatpush.bf16.msra.mxu0 0
  %3675 = vmatpush.bf16.msra.mxu0 0
  %3676 = vmatpush.bf16.msra.mxu0 0
  %3677 = vmatpush.bf16.msra.mxu0 %v3655
  %3678 = vmatpush.bf16.msra.mxu0 %v3654
  %3679 = vmatmul.bf16.gmra.mxu0 %v3660
  %v3680 = vpop.f32.mrf.mxu0
  %v3681 = vadd.f32 0.0, %v3680
  %v3682 = vpop.f32.mrf.mxu0
  %v3683 = vadd.f32 0.0, %v3682
  %3684 = vmatmul.bf16.gmra.mxu0 %v3663
  %v3685 = vpop.f32.mrf.mxu0
  %v3686 = vadd.f32 0.0, %v3685
  %v3687 = vpop.f32.mrf.mxu0
  %v3688 = vadd.f32 0.0, %v3687
  %3689 = vmatmul.bf16.gmra.mxu0 %v3666
  %v3690 = vpop.f32.mrf.mxu0
  %v3691 = vadd.f32 0.0, %v3690
  %v3692 = vpop.f32.mrf.mxu0
  %v3693 = vadd.f32 0.0, %v3692
  %3694 = vmatmul.bf16.gmra.mxu0 %v3669
  %v3695 = vpop.f32.mrf.mxu0
  %v3696 = vadd.f32 0.0, %v3695
  %v3697 = vpop.f32.mrf.mxu0
  %3698 = vdwg.mxu0
  %v3703 = vunpack.c.l.b16 %v3589
  %v3704 = vunpack.c.l.b16 %v3590
  %v3705 = vunpack.c.l.b16 %v3591
  %v3706 = vunpack.c.l.b16 %v3592
  %v3707 = vpack.c.b16 %v3704, %v3703
  %v3708 = vpack.c.b16 %v3706, %v3705
  %v3711 = vsel %vm3658, %v3611, 0
  %v3713 = vsel %vm3658, %v3612, 0
  %v3715 = vsel %vm3658, %v3613, 0
  %v3717 = vsel %vm3658, %v3614, 0
  %3719 = vmatpush.bf16.msra.mxu0 0
  %3720 = vmatpush.bf16.msra.mxu0 0
  %3721 = vmatpush.bf16.msra.mxu0 0
  %3722 = vmatpush.bf16.msra.mxu0 0
  %3723 = vmatpush.bf16.msra.mxu0 0
  %3724 = vmatpush.bf16.msra.mxu0 0
  %3725 = vmatpush.bf16.msra.mxu0 %v3708
  %3726 = vmatpush.bf16.msra.mxu0 %v3707
  %3727 = vmatmul.bf16.gmra.mxu0 %v3711
  %v3728 = vpop.f32.mrf.mxu0
  %v3729 = vadd.f32 %v3681, %v3728
  %v3730 = vpop.f32.mrf.mxu0
  %v3731 = vadd.f32 %v3683, %v3730
  %3732 = vmatmul.bf16.gmra.mxu0 %v3713
  %v3733 = vpop.f32.mrf.mxu0
  %v3734 = vadd.f32 %v3686, %v3733
  %v3735 = vpop.f32.mrf.mxu0
  %v3736 = vadd.f32 %v3688, %v3735
  %3737 = vmatmul.bf16.gmra.mxu0 %v3715
  %v3738 = vpop.f32.mrf.mxu0
  %v3739 = vadd.f32 %v3691, %v3738
  %v3740 = vpop.f32.mrf.mxu0
  %v3741 = vadd.f32 %v3693, %v3740
  %3742 = vmatmul.bf16.gmra.mxu0 %v3717
  %v3743 = vpop.f32.mrf.mxu0
  %v3744 = vadd.f32 %v3696, %v3743
  %v3745 = vpop.f32.mrf.mxu0
  %3746 = vdwg.mxu0
  %v3747 = vld [vmem:[%s8 + $0x20] sm:$0xf]
  %v3748 = vld [vmem:[%s8 + $0x24] sm:$0xf]
  %v3749 = vld [vmem:[%s8 + $0x28] sm:$0xf]
  %v3750 = vld [vmem:[%s8 + $0x2c] sm:$0xf]
  %v3751 = vrot.slane %v3611, 1
  %v3752 = vrot.slane %v3612, 1
  %v3753 = vsel %vm305, %v3751, %v3752
  %v3754 = vrot.slane %v3613, 1
  %v3755 = vsel %vm305, %v3752, %v3754
  %v3756 = vrot.slane %v3614, 1
  %v3757 = vsel %vm305, %v3754, %v3756
  %v3762 = vunpack.c.l.b16 %v3747
  %v3763 = vunpack.c.l.b16 %v3748
  %v3764 = vunpack.c.l.b16 %v3749
  %v3765 = vunpack.c.l.b16 %v3750
  %v3766 = vpack.c.b16 %v3763, %v3762
  %v3767 = vpack.c.b16 %v3765, %v3764
  %v3771 = vsel %vm3658, %v3753, 0
  %v3774 = vsel %vm3658, %v3755, 0
  %v3777 = vsel %vm3658, %v3757, 0
  %v3780 = vsel %vm3658, %v3756, 0
  %3782 = vmatpush.bf16.msra.mxu0 0
  %3783 = vmatpush.bf16.msra.mxu0 0
  %3784 = vmatpush.bf16.msra.mxu0 0
  %3785 = vmatpush.bf16.msra.mxu0 0
  %3786 = vmatpush.bf16.msra.mxu0 0
  %3787 = vmatpush.bf16.msra.mxu0 0
  %3788 = vmatpush.bf16.msra.mxu0 %v3767
  %3789 = vmatpush.bf16.msra.mxu0 %v3766
  %3790 = vmatmul.bf16.gmra.mxu0 %v3771
  %v3791 = vpop.f32.mrf.mxu0
  %v3792 = vadd.f32 0.0, %v3791
  %v3793 = vpop.f32.mrf.mxu0
  %v3794 = vadd.f32 0.0, %v3793
  %3795 = vmatmul.bf16.gmra.mxu0 %v3774
  %v3796 = vpop.f32.mrf.mxu0
  %v3797 = vadd.f32 0.0, %v3796
  %v3798 = vpop.f32.mrf.mxu0
  %v3799 = vadd.f32 0.0, %v3798
  %3800 = vmatmul.bf16.gmra.mxu0 %v3777
  %v3801 = vpop.f32.mrf.mxu0
  %v3802 = vadd.f32 0.0, %v3801
  %v3803 = vpop.f32.mrf.mxu0
  %v3804 = vadd.f32 0.0, %v3803
  %3805 = vmatmul.bf16.gmra.mxu0 %v3780
  %v3806 = vpop.f32.mrf.mxu0
  %v3807 = vadd.f32 0.0, %v3806
  %v3808 = vpop.f32.mrf.mxu0
  %3809 = vdwg.mxu0
  %v3810 = vadd.f32 %v3729, %v3792
  %v3811 = vadd.f32 %v3731, %v3794
  %v3812 = vadd.f32 %v3734, %v3797
  %v3813 = vadd.f32 %v3736, %v3799
  %v3814 = vadd.f32 %v3739, %v3802
  %v3815 = vadd.f32 %v3741, %v3804
  %v3816 = vadd.f32 %v3744, %v3807
  %v3817 = vld [vmem:[%s8 + $0x30] sm:$0xf]
  %v3818 = vld [vmem:[%s8 + $0x34] sm:$0xf]
  %v3819 = vld [vmem:[%s8 + $0x38] sm:$0xf]
  %v3820 = vld [vmem:[%s8 + $0x3c] sm:$0xf]
  %v3821 = vrot.slane %v3616, 1
  %v3822 = vrot.slane %v3618, 2
  %v3823 = vor.u32 %v3821, %v3822
  %v3824 = vrot.slane %v3627, 1
  %v3825 = vrot.slane %v3623, 2
  %v3826 = vor.u32 %v3824, %v3825
  %v3827 = vsel %vm320, %v3823, %v3826
  %v3828 = vrot.slane %v3635, 1
  %v3829 = vrot.slane %v3631, 2
  %v3830 = vor.u32 %v3828, %v3829
  %v3831 = vsel %vm320, %v3826, %v3830
  %v3832 = vrot.slane %v3643, 1
  %v3833 = vrot.slane %v3639, 2
  %v3834 = vor.u32 %v3832, %v3833
  %v3835 = vsel %vm320, %v3830, %v3834
  %v3840 = vunpack.c.l.b16 %v3817
  %v3841 = vunpack.c.l.b16 %v3818
  %v3842 = vunpack.c.l.b16 %v3819
  %v3843 = vunpack.c.l.b16 %v3820
  %v3844 = vpack.c.b16 %v3841, %v3840
  %v3845 = vpack.c.b16 %v3843, %v3842
  %v3849 = vsel %vm3658, %v3827, 0
  %v3852 = vsel %vm3658, %v3831, 0
  %v3855 = vsel %vm3658, %v3835, 0
  %v3858 = vsel %vm3658, %v3834, 0
  %3860 = vmatpush.bf16.msra.mxu0 0
  %3861 = vmatpush.bf16.msra.mxu0 0
  %3862 = vmatpush.bf16.msra.mxu0 0
  %3863 = vmatpush.bf16.msra.mxu0 0
  %3864 = vmatpush.bf16.msra.mxu0 0
  %3865 = vmatpush.bf16.msra.mxu0 0
  %3866 = vmatpush.bf16.msra.mxu0 %v3845
  %3867 = vmatpush.bf16.msra.mxu0 %v3844
  %3868 = vmatmul.bf16.gmra.mxu0 %v3849
  %v3869 = vpop.f32.mrf.mxu0
  %v3870 = vadd.f32 0.0, %v3869
  %v3871 = vpop.f32.mrf.mxu0
  %v3872 = vadd.f32 0.0, %v3871
  %3873 = vmatmul.bf16.gmra.mxu0 %v3852
  %v3874 = vpop.f32.mrf.mxu0
  %v3875 = vadd.f32 0.0, %v3874
  %v3876 = vpop.f32.mrf.mxu0
  %v3877 = vadd.f32 0.0, %v3876
  %3878 = vmatmul.bf16.gmra.mxu0 %v3855
  %v3879 = vpop.f32.mrf.mxu0
  %v3880 = vadd.f32 0.0, %v3879
  %v3881 = vpop.f32.mrf.mxu0
  %v3882 = vadd.f32 0.0, %v3881
  %3883 = vmatmul.bf16.gmra.mxu0 %v3858
  %v3884 = vpop.f32.mrf.mxu0
  %v3885 = vadd.f32 0.0, %v3884
  %v3886 = vpop.f32.mrf.mxu0
  %3887 = vdwg.mxu0
  %v3888 = vadd.f32 %v3810, %v3870
  %v3889 = vadd.f32 %v3811, %v3872
  %v3890 = vadd.f32 %v3812, %v3875
  %v3891 = vadd.f32 %v3813, %v3877
  %v3892 = vadd.f32 %v3814, %v3880
  %v3893 = vadd.f32 %v3815, %v3882
  %v3894 = vadd.f32 %v3816, %v3885
  %v3895 = vld [vmem:[%s8 + $0x40] sm:$0xf]
  %v3896 = vld [vmem:[%s8 + $0x44] sm:$0xf]
  %v3897 = vld [vmem:[%s8 + $0x48] sm:$0xf]
  %v3898 = vld [vmem:[%s8 + $0x4c] sm:$0xf]
  %v3899 = vrot.slane %v3611, 2
  %v3900 = vrot.slane %v3612, 2
  %v3901 = vsel %vm345, %v3899, %v3900
  %v3902 = vrot.slane %v3613, 2
  %v3903 = vsel %vm345, %v3900, %v3902
  %v3904 = vrot.slane %v3614, 2
  %v3905 = vsel %vm345, %v3902, %v3904
  %v3910 = vunpack.c.l.b16 %v3895
  %v3911 = vunpack.c.l.b16 %v3896
  %v3912 = vunpack.c.l.b16 %v3897
  %v3913 = vunpack.c.l.b16 %v3898
  %v3914 = vpack.c.b16 %v3911, %v3910
  %v3915 = vpack.c.b16 %v3913, %v3912
  %v3919 = vsel %vm3658, %v3901, 0
  %v3922 = vsel %vm3658, %v3903, 0
  %v3925 = vsel %vm3658, %v3905, 0
  %v3928 = vsel %vm3658, %v3904, 0
  %3930 = vmatpush.bf16.msra.mxu0 0
  %3931 = vmatpush.bf16.msra.mxu0 0
  %3932 = vmatpush.bf16.msra.mxu0 0
  %3933 = vmatpush.bf16.msra.mxu0 0
  %3934 = vmatpush.bf16.msra.mxu0 0
  %3935 = vmatpush.bf16.msra.mxu0 0
  %3936 = vmatpush.bf16.msra.mxu0 %v3915
  %3937 = vmatpush.bf16.msra.mxu0 %v3914
  %3938 = vmatmul.bf16.gmra.mxu0 %v3919
  %v3939 = vpop.f32.mrf.mxu0
  %v3940 = vadd.f32 0.0, %v3939
  %v3941 = vpop.f32.mrf.mxu0
  %v3942 = vadd.f32 0.0, %v3941
  %3943 = vmatmul.bf16.gmra.mxu0 %v3922
  %v3944 = vpop.f32.mrf.mxu0
  %v3945 = vadd.f32 0.0, %v3944
  %v3946 = vpop.f32.mrf.mxu0
  %v3947 = vadd.f32 0.0, %v3946
  %3948 = vmatmul.bf16.gmra.mxu0 %v3925
  %v3949 = vpop.f32.mrf.mxu0
  %v3950 = vadd.f32 0.0, %v3949
  %v3951 = vpop.f32.mrf.mxu0
  %v3952 = vadd.f32 0.0, %v3951
  %3953 = vmatmul.bf16.gmra.mxu0 %v3928
  %v3954 = vpop.f32.mrf.mxu0
  %v3955 = vadd.f32 0.0, %v3954
  %v3956 = vpop.f32.mrf.mxu0
  %3957 = vdwg.mxu0
  %v3958 = vadd.f32 %v3888, %v3940
  %v3959 = vadd.f32 %v3889, %v3942
  %v3960 = vadd.f32 %v3890, %v3945
  %v3961 = vadd.f32 %v3891, %v3947
  %v3962 = vadd.f32 %v3892, %v3950
  %v3963 = vadd.f32 %v3893, %v3952
  %v3964 = vadd.f32 %v3894, %v3955
  %v3965 = vld [vmem:[%s9] sm:$0x1]
  %v3967 = vperm.slane %v3965, 0
  %v3969 = vadd.f32 %v3958, %v3967
  %v3970 = vadd.f32 %v3959, %v3967
  %v3971 = vadd.f32 %v3960, %v3967
  %v3972 = vadd.f32 %v3961, %v3967
  %v3973 = vadd.f32 %v3962, %v3967
  %v3974 = vadd.f32 %v3963, %v3967
  %v3975 = vadd.f32 %v3964, %v3967
  %v3976 = vmul.f32 %v3969, 0.05
  %v3977 = vmul.f32 %v3970, 0.05
  %v3978 = vmul.f32 %v3971, 0.05
  %v3979 = vmul.f32 %v3972, 0.05
  %v3980 = vmul.f32 %v3973, 0.05
  %v3981 = vmul.f32 %v3974, 0.05
  %v3982 = vmul.f32 %v3975, 0.05
  %v3983 = vmax.f32 %v3969, %v3976
  %v3984 = vmax.f32 %v3970, %v3977
  %v3985 = vmax.f32 %v3971, %v3978
  %v3986 = vmax.f32 %v3972, %v3979
  %v3987 = vmax.f32 %v3973, %v3980
  %v3988 = vmax.f32 %v3974, %v3981
  %v3989 = vmax.f32 %v3975, %v3982
  %v3990 = vld [vmem:[%s10] sm:$0x3]
  %vm3991 = vcmask 408576
  %v3993 = vsel %vm3991, %v3990, 0
  %vm3995 = vcmask 1041408
  %v3997 = vsel %vm3995, %v3989, 0
  %3999 = vmatpush.msra.mxu0 0.0
  %4000 = vmatpush.msra.mxu0 0.0
  %4001 = vmatpush.msra.mxu0 0.0
  %4002 = vmatpush.msra.mxu0 0.0
  %4003 = vmatpush.msra.mxu0 0.0
  %4004 = vmatpush.msra.mxu0 0.0
  %4005 = vmatpush.msra.mxu0 0.0
  %4006 = vmatpush.msra.mxu0 0.0
  %4007 = vmatpush.msra.mxu0 0.0
  %4008 = vmatpush.msra.mxu0 %v3997
  %4009 = vmatpush.msra.mxu0 %v3988
  %4010 = vmatpush.msra.mxu0 %v3987
  %4011 = vmatpush.msra.mxu0 %v3986
  %4012 = vmatpush.msra.mxu0 %v3985
  %4013 = vmatpush.msra.mxu0 %v3984
  %4014 = vmatpush.msra.mxu0 %v3983
  %4015 = vmatmul.f32.gmra.mxu0 %v3993
  %v4016 = vpop.f32.mrf.mxu0
  %v4017 = vadd.f32 0.0, %v4016
  %4018 = vdwg.mxu0
  %v4019 = vld [vmem:[%s11] sm:$0xff]
  %v4020 = vld [vmem:[%s11 + $0x8] sm:$0xff]
  %v4021 = vld [vmem:[%s11 + $0x10] sm:$0xff]
  %v4022 = vld [vmem:[%s11 + $0x18] sm:$0xff]
  %v4023 = vld [vmem:[#allocation2] sm:$0x1]
  %v4025 = vperm.slane %v4023, 0
  %v4028 = vsel %vm3658, %v4017, 0
  %4030 = vmatpush.msra.mxu0 0.0
  %4031 = vmatpush.msra.mxu0 0.0
  %4032 = vmatpush.msra.mxu0 0.0
  %4033 = vmatpush.msra.mxu0 0.0
  %4034 = vmatpush.msra.mxu0 0.0
  %4035 = vmatpush.msra.mxu0 0.0
  %4036 = vmatpush.msra.mxu0 0.0
  %4037 = vmatpush.msra.mxu0 0.0
  %4038 = vmatpush.msra.mxu0 0.0
  %4039 = vmatpush.msra.mxu0 0.0
  %4040 = vmatpush.msra.mxu0 0.0
  %4041 = vmatpush.msra.mxu0 0.0
  %4042 = vmatpush.msra.mxu0 %v4022
  %4043 = vmatpush.msra.mxu0 %v4021
  %4044 = vmatpush.msra.mxu0 %v4020
  %4045 = vmatpush.msra.mxu0 %v4019
  %4046 = vmatmul.f32.gmra.mxu0 %v4028
  %v4047 = vpop.f32.mrf.mxu0
  %v4048 = vadd.f32 %v4025, %v4047
  %4049 = vdwg.mxu0
  %vm4050 = vcmask 1024
  %4051 = vst.msk [vmem:[%s13] sm:$0x3] %vm4050, %v4048
  // Predicated region
  $region54: #{similarity_net_forward.1} parent=0 // pred_check
    _
  $region55: #{similarity_net_forward.1} parent=0 // pred_check_branch
    %4053 = sbr.rel (0) target = $region57
  $region56: #{similarity_net_forward.1} parent=0 // pred_region
    _
  $region57: #{similarity_net_forward.1} parent=0 // pred_fallthru
    _
  // Predicated region
  $region58: #{similarity_net_forward.1} parent=0 // pred_check
    _
  $region59: #{similarity_net_forward.1} parent=0 // pred_check_branch
    %4055 = sbr.rel (0) target = $region61
  $region60: #{similarity_net_forward.1} parent=0 // pred_region
    _
  $region61: #{similarity_net_forward.1} parent=0 // pred_fallthru
    _

</llo_original>
